<compile_context>
chip_gen: v7x
topology: tpu7x:2x2x1
jax: 0.10.0
libtpu: 0.0.40
codegen_flags: <defaults>
</compile_context>

<pallas_src>
import functools
import math

import jax
import jax.numpy as jnp
from jax.experimental import pallas as pl
from jax.experimental.pallas import tpu as pltpu


# ---------------------------------------------------------------------------
# Fused EncoderLayer kernel: one grid step == (batch element, query tile).
# ---------------------------------------------------------------------------
def _encoder_layer_kernel(
    q_ref, k_ref, v_ref,                        # (1, TQ, D), (1, Nk, D), (1, Nk, D)  f32
    wq_ref, bq_ref, wk_ref, bk_ref,             # bf16 weights, f32 biases
    wv_ref, bv_ref, wo_ref, bo_ref,
    mha_g_ref, mha_b_ref, enc_g_ref, enc_b_ref,  # (1, D) f32
    w1_ref, b1_ref, w2_ref, b2_ref,             # (D, d_ff) bf16, (1, d_ff) f32, ...
    ff_g_ref, ff_b_ref,                         # (1, D) f32
    o_ref,                                      # (1, TQ, D)
    *, h, d_k, d_v, d_ff, ff_chunk, eps,
):
    f32 = jnp.float32
    bf16 = jnp.bfloat16

    q_res = q_ref[0]                      # (TQ, D)  f32 residual path (exact)
    x_q = q_res.astype(bf16)              # bf16 MXU operand
    x_k = k_ref[0].astype(bf16)           # (Nk, D)
    x_v = v_ref[0].astype(bf16)

    # ---- QKV projections: bf16 operands, f32 accumulation.
    # Wq / bq are pre-scaled by 1/sqrt(d_k) in the wrapper.
    q = (jnp.dot(x_q, wq_ref[...], preferred_element_type=f32) + bq_ref[...]).astype(bf16)
    k = (jnp.dot(x_k, wk_ref[...], preferred_element_type=f32) + bk_ref[...]).astype(bf16)
    v = (jnp.dot(x_v, wv_ref[...], preferred_element_type=f32) + bv_ref[...]).astype(bf16)

    # contract last dims of q_h and k_h (q @ k^T without an explicit transpose)
    qk_dims = (((1,), (1,)), ((), ()))

    # ---- attention: per-head softmax, head outputs gathered for ONE fc_o matmul
    heads = []
    for i in range(h):
        qh = q[:, i * d_k:(i + 1) * d_k]          # (TQ, dk) bf16
        kh = k[:, i * d_k:(i + 1) * d_k]          # (Nk, dk) bf16
        vh = v[:, i * d_v:(i + 1) * d_v]          # (Nk, dv) bf16
        s = jax.lax.dot_general(qh, kh, qk_dims, preferred_element_type=f32)  # (TQ, Nk)
        s = s - jnp.max(s, axis=-1, keepdims=True)
        p = jnp.exp(s)
        p = p * pl.reciprocal(jnp.sum(p, axis=-1, keepdims=True), approx=True)
        heads.append(jnp.dot(p.astype(bf16), vh, preferred_element_type=f32))  # (TQ, dv)

    # fused head merge + fc_o: single (TQ, h*dv) @ (h*dv, D) MXU op
    o_cat = jnp.concatenate(heads, axis=-1).astype(bf16)
    att_out = jnp.dot(o_cat, wo_ref[...], preferred_element_type=f32) + bo_ref[...]

    def layer_norm(x, g_ref, b_ref):
        mu = jnp.mean(x, axis=-1, keepdims=True)
        var = jnp.mean(jnp.square(x - mu), axis=-1, keepdims=True)
        return (x - mu) * jax.lax.rsqrt(var + eps) * g_ref[...] + b_ref[...]

    # ---- fused double residual + LayerNorm (MHA-internal LN, then enc LN[m])
    att = layer_norm(q_res + att_out, mha_g_ref, mha_b_ref)
    att = layer_norm(q_res + att, enc_g_ref, enc_b_ref)

    # ---- FFN: fc1 -> ReLU -> fc2, d_ff chunked so the hidden stays small
    att_bf = att.astype(bf16)
    ff = jnp.zeros(att.shape, f32)
    for c in range(0, d_ff, ff_chunk):
        hid = jnp.dot(att_bf, w1_ref[:, c:c + ff_chunk], preferred_element_type=f32)
        hid = jnp.maximum(hid + b1_ref[:, c:c + ff_chunk], 0.0).astype(bf16)
        ff = ff + jnp.dot(hid, w2_ref[c:c + ff_chunk, :], preferred_element_type=f32)
    ff = ff + b2_ref[...]

    out = layer_norm(att + ff, ff_g_ref, ff_b_ref)
    o_ref[0] = out.astype(o_ref.dtype)


def _pick_tile(n, target):
    t = max(1, min(target, n))
    while n % t != 0:
        t -= 1
    return t


# ---------------------------------------------------------------------------
# Wrapper: single pallas_call for the whole layer, grid over (batch, q-tile).
# ---------------------------------------------------------------------------
def encoder_layer_forward(params, queries, keys, values, m=0,
                          q_tile=256, ff_chunk_target=512):
    cfg = params["cfg"]
    h, d_k, d_v = cfg["h"], cfg["d_k"], cfg["d_v"]
    B, Nq, D = queries.shape
    Nk = keys.shape[1]
    d_ff = params["W1"].shape[1]

    TQ = _pick_tile(Nq, q_tile)
    FC = _pick_tile(d_ff, ff_chunk_target)
    n_qt = Nq // TQ
    scale = 1.0 / math.sqrt(float(d_k))

    bf16 = jnp.bfloat16
    f32 = jnp.float32
    row = lambda a: a.reshape(1, -1).astype(f32)

    # weights to bf16 once (halves weight DMA / VMEM residency); biases & LN f32
    wq = (params["Wq"] * scale).astype(bf16)          # pre-scaled -> no in-kernel scale
    bq = row(params["bq"] * scale)
    wk = params["Wk"].astype(bf16); bk = row(params["bk"])
    wv = params["Wv"].astype(bf16); bv = row(params["bv"])
    wo = params["Wo"].astype(bf16); bo = row(params["bo"])
    w1 = params["W1"].astype(bf16); b1 = row(params["b1"])
    w2 = params["W2"].astype(bf16); b2 = row(params["b2"])
    enc_g, enc_b = params["enc_ln"][m]
    ff_g, ff_b = params["pwff_ln"][m]

    kernel = functools.partial(
        _encoder_layer_kernel,
        h=h, d_k=d_k, d_v=d_v, d_ff=d_ff, ff_chunk=FC, eps=1e-5,
    )

    def const_spec(shape, single_buffer):
        n = len(shape)
        idx = lambda b, t: (0,) * n
        if single_buffer:
            # grid-invariant weights: no double buffering needed
            return pl.BlockSpec(shape, idx, pipeline_mode=pl.Buffered(1))
        return pl.BlockSpec(shape, idx)

    def build(single_buffer):
        w = lambda shape: const_spec(shape, single_buffer)
        in_specs = [
            pl.BlockSpec((1, TQ, D), lambda b, t: (b, t, 0)),   # queries (tiled)
            pl.BlockSpec((1, Nk, D), lambda b, t: (b, 0, 0)),   # keys (per batch)
            pl.BlockSpec((1, Nk, D), lambda b, t: (b, 0, 0)),   # values (per batch)
            w((D, h * d_k)), w((1, h * d_k)),
            w((D, h * d_k)), w((1, h * d_k)),
            w((D, h * d_v)), w((1, h * d_v)),
            w((h * d_v, D)), w((1, D)),
            w((1, D)), w((1, D)), w((1, D)), w((1, D)),
            w((D, d_ff)), w((1, d_ff)),
            w((d_ff, D)), w((1, D)),
            w((1, D)), w((1, D)),
        ]
        return pl.pallas_call(
            kernel,
            out_shape=jax.ShapeDtypeStruct((B, Nq, D), queries.dtype),
            grid=(B, n_qt),
            in_specs=in_specs,
            out_specs=pl.BlockSpec((1, TQ, D), lambda b, t: (b, t, 0)),
            compiler_params=pltpu.CompilerParams(
                dimension_semantics=("parallel", "parallel"),
                vmem_limit_bytes=64 * 1024 * 1024,
            ),
        )

    args = (
        queries, keys, values,
        wq, bq, wk, bk, wv, bv, wo, bo,
        row(params["mha_ln_g"]), row(params["mha_ln_b"]),
        row(enc_g), row(enc_b),
        w1, b1, w2, b2,
        row(ff_g), row(ff_b),
    )

    try:
        out = build(True)(*args)
        return jax.block_until_ready(out)
    except Exception:
        # Installed jax/Mosaic rejects single-buffered pipeline_mode: use defaults.
        return build(False)(*args)


# ---------------------------------------------------------------------------
# Pure-JAX reference (f32) for a numerical sanity check
# ---------------------------------------------------------------------------
def _reference_forward(params, queries, keys, values, m=0):
    cfg = params["cfg"]
    h, d_k, d_v = cfg["h"], cfg["d_k"], cfg["d_v"]
    B, Nq, D = queries.shape
    Nk = keys.shape[1]

    def ln(x, g, b, eps=1e-5):
        mu = jnp.mean(x, -1, keepdims=True)
        var = jnp.mean((x - mu) ** 2, -1, keepdims=True)
        return (x - mu) / jnp.sqrt(var + eps) * g + b

    q = queries @ params["Wq"] + params["bq"]
    k = keys @ params["Wk"] + params["bk"]
    v = values @ params["Wv"] + params["bv"]
    q = q.reshape(B, Nq, h, d_k).transpose(0, 2, 1, 3)
    k = k.reshape(B, Nk, h, d_k).transpose(0, 2, 1, 3)
    v = v.reshape(B, Nk, h, d_v).transpose(0, 2, 1, 3)
    s = jnp.einsum("bhqd,bhkd->bhqk", q, k) / math.sqrt(float(d_k))
    p = jax.nn.softmax(s, axis=-1)
    o = jnp.einsum("bhqk,bhkd->bhqd", p, v).transpose(0, 2, 1, 3).reshape(B, Nq, h * d_v)
    att_out = o @ params["Wo"] + params["bo"]
    att = ln(queries + att_out, params["mha_ln_g"], params["mha_ln_b"])
    g, b = params["enc_ln"][m]
    att = ln(queries + att, g, b)
    hdn = jax.nn.relu(att @ params["W1"] + params["b1"])
    ff = hdn @ params["W2"] + params["b2"]
    g2, b2 = params["pwff_ln"][m]
    return ln(att + ff, g2, b2)


# ---------------------------------------------------------------------------
# Deterministic parameter construction
# ---------------------------------------------------------------------------
def make_params(key, d_model, d_k, d_v, h, d_ff):
    ks = jax.random.split(key, 12)

    def init(k, shape, scale=0.05):
        return (scale * jax.random.normal(k, shape)).astype(jnp.float32)

    ones = lambda n: jnp.ones((n,), jnp.float32)
    zeros = lambda n: jnp.zeros((n,), jnp.float32)

    return {
        "cfg": {"h": h, "d_k": d_k, "d_v": d_v},
        "Wq": init(ks[0], (d_model, h * d_k)), "bq": init(ks[1], (h * d_k,)),
        "Wk": init(ks[2], (d_model, h * d_k)), "bk": init(ks[3], (h * d_k,)),
        "Wv": init(ks[4], (d_model, h * d_v)), "bv": init(ks[5], (h * d_v,)),
        "Wo": init(ks[6], (h * d_v, d_model)), "bo": init(ks[7], (d_model,)),
        "mha_ln_g": ones(d_model), "mha_ln_b": zeros(d_model),
        "enc_ln": [(ones(d_model), zeros(d_model)) for _ in range(3)],
        "W1": init(ks[8], (d_model, d_ff)), "b1": init(ks[9], (d_ff,)),
        "W2": init(ks[10], (d_ff, d_model)), "b2": init(ks[11], (d_model,)),
        "pwff_ln": [(ones(d_model), zeros(d_model)) for _ in range(3)],
    }


if __name__ == "__main__":
    # small shapes consistent with the module (scaled-down d_model / heads / d_ff)
    B, N, d_model = 2, 8, 32
    h, d_k, d_v, d_ff = 4, 8, 8, 64

    root = jax.random.PRNGKey(0)
    k_param, k_x = jax.random.split(root)
    params = make_params(k_param, d_model, d_k, d_v, h, d_ff)
    x = jax.random.normal(k_x, (B, N, d_model), dtype=jnp.float32)

    # self-attention: queries = keys = values = x, m = 0
    out = encoder_layer_forward(params, x, x, x, m=0)
    out = jax.block_until_ready(out)
    assert out.shape == (B, N, d_model) and out.dtype == jnp.float32

    ref = _reference_forward(params, x, x, x, m=0)
    # bf16 MXU operands change results at ~1e-2 level vs the f32 reference
    assert jnp.max(jnp.abs(out - ref)) < 2e-2, "mismatch vs pure-JAX reference"

    print("KERNEL_OK")
</pallas_src>

<mosaic_0001>
module attributes {stable_mosaic.version = 11 : i64} {
  func.func @_encoder_layer_kernel(%arg0: i32, %arg1: i32, %arg2: memref<1x8x32xf32, #tpu.memory_space<vmem>>, %arg3: memref<1x8x32xf32, #tpu.memory_space<vmem>>, %arg4: memref<1x8x32xf32, #tpu.memory_space<vmem>>, %arg5: memref<32x32xbf16, #tpu.memory_space<vmem>>, %arg6: memref<1x32xf32, #tpu.memory_space<vmem>>, %arg7: memref<32x32xbf16, #tpu.memory_space<vmem>>, %arg8: memref<1x32xf32, #tpu.memory_space<vmem>>, %arg9: memref<32x32xbf16, #tpu.memory_space<vmem>>, %arg10: memref<1x32xf32, #tpu.memory_space<vmem>>, %arg11: memref<32x32xbf16, #tpu.memory_space<vmem>>, %arg12: memref<1x32xf32, #tpu.memory_space<vmem>>, %arg13: memref<1x32xf32, #tpu.memory_space<vmem>>, %arg14: memref<1x32xf32, #tpu.memory_space<vmem>>, %arg15: memref<1x32xf32, #tpu.memory_space<vmem>>, %arg16: memref<1x32xf32, #tpu.memory_space<vmem>>, %arg17: memref<32x64xbf16, #tpu.memory_space<vmem>>, %arg18: memref<1x64xf32, #tpu.memory_space<vmem>>, %arg19: memref<64x32xbf16, #tpu.memory_space<vmem>>, %arg20: memref<1x32xf32, #tpu.memory_space<vmem>>, %arg21: memref<1x32xf32, #tpu.memory_space<vmem>>, %arg22: memref<1x32xf32, #tpu.memory_space<vmem>>, %arg23: memref<1x8x32xf32, #tpu.memory_space<vmem>>) attributes {dimension_semantics = [#tpu.dimension_semantics<parallel>, #tpu.dimension_semantics<parallel>], iteration_bounds = array<i64: 2, 1>, scalar_prefetch = 0 : i64, scratch_operands = 0 : i64, tpu.core_type = #tpu.core_type<tc>, window_params = [{transform_indices = @transform_0, window_bounds = array<i64: 1, 8, 32>}, {transform_indices = @transform_1, window_bounds = array<i64: 1, 8, 32>}, {transform_indices = @transform_2, window_bounds = array<i64: 1, 8, 32>}, {pipeline_mode = #tpu.pipeline_mode<synchronous>, transform_indices = @transform_3, window_bounds = array<i64: 32, 32>}, {pipeline_mode = #tpu.pipeline_mode<synchronous>, transform_indices = @transform_4, window_bounds = array<i64: 1, 32>}, {pipeline_mode = #tpu.pipeline_mode<synchronous>, transform_indices = @transform_5, window_bounds = array<i64: 32, 32>}, {pipeline_mode = #tpu.pipeline_mode<synchronous>, transform_indices = @transform_6, window_bounds = array<i64: 1, 32>}, {pipeline_mode = #tpu.pipeline_mode<synchronous>, transform_indices = @transform_7, window_bounds = array<i64: 32, 32>}, {pipeline_mode = #tpu.pipeline_mode<synchronous>, transform_indices = @transform_8, window_bounds = array<i64: 1, 32>}, {pipeline_mode = #tpu.pipeline_mode<synchronous>, transform_indices = @transform_9, window_bounds = array<i64: 32, 32>}, {pipeline_mode = #tpu.pipeline_mode<synchronous>, transform_indices = @transform_10, window_bounds = array<i64: 1, 32>}, {pipeline_mode = #tpu.pipeline_mode<synchronous>, transform_indices = @transform_11, window_bounds = array<i64: 1, 32>}, {pipeline_mode = #tpu.pipeline_mode<synchronous>, transform_indices = @transform_12, window_bounds = array<i64: 1, 32>}, {pipeline_mode = #tpu.pipeline_mode<synchronous>, transform_indices = @transform_13, window_bounds = array<i64: 1, 32>}, {pipeline_mode = #tpu.pipeline_mode<synchronous>, transform_indices = @transform_14, window_bounds = array<i64: 1, 32>}, {pipeline_mode = #tpu.pipeline_mode<synchronous>, transform_indices = @transform_15, window_bounds = array<i64: 32, 64>}, {pipeline_mode = #tpu.pipeline_mode<synchronous>, transform_indices = @transform_16, window_bounds = array<i64: 1, 64>}, {pipeline_mode = #tpu.pipeline_mode<synchronous>, transform_indices = @transform_17, window_bounds = array<i64: 64, 32>}, {pipeline_mode = #tpu.pipeline_mode<synchronous>, transform_indices = @transform_18, window_bounds = array<i64: 1, 32>}, {pipeline_mode = #tpu.pipeline_mode<synchronous>, transform_indices = @transform_19, window_bounds = array<i64: 1, 32>}, {pipeline_mode = #tpu.pipeline_mode<synchronous>, transform_indices = @transform_20, window_bounds = array<i64: 1, 32>}, {transform_indices = @transform_21, window_bounds = array<i64: 1, 8, 32>}]} {
    %c0 = arith.constant 0 : index
    %c0_0 = arith.constant 0 : index
    %c0_1 = arith.constant 0 : index
    %0 = vector.load %arg2[%c0, %c0_0, %c0_1] : memref<1x8x32xf32, #tpu.memory_space<vmem>>, vector<1x8x32xf32>
    %1 = vector.shape_cast %0 : vector<1x8x32xf32> to vector<8x32xf32>
    %2 = arith.truncf %1 : vector<8x32xf32> to vector<8x32xbf16>
    %c0_2 = arith.constant 0 : index
    %c0_3 = arith.constant 0 : index
    %c0_4 = arith.constant 0 : index
    %3 = vector.load %arg3[%c0_2, %c0_3, %c0_4] : memref<1x8x32xf32, #tpu.memory_space<vmem>>, vector<1x8x32xf32>
    %4 = vector.shape_cast %3 : vector<1x8x32xf32> to vector<8x32xf32>
    %5 = arith.truncf %4 : vector<8x32xf32> to vector<8x32xbf16>
    %c0_5 = arith.constant 0 : index
    %c0_6 = arith.constant 0 : index
    %c0_7 = arith.constant 0 : index
    %6 = vector.load %arg4[%c0_5, %c0_6, %c0_7] : memref<1x8x32xf32, #tpu.memory_space<vmem>>, vector<1x8x32xf32>
    %7 = vector.shape_cast %6 : vector<1x8x32xf32> to vector<8x32xf32>
    %8 = arith.truncf %7 : vector<8x32xf32> to vector<8x32xbf16>
    %c0_8 = arith.constant 0 : index
    %c0_9 = arith.constant 0 : index
    %9 = vector.load %arg5[%c0_8, %c0_9] : memref<32x32xbf16, #tpu.memory_space<vmem>>, vector<32x32xbf16>
    %cst = arith.constant dense<0.000000e+00> : vector<8x32xf32>
    %10 = tpu.matmul %2, %9, %cst {dimension_numbers = #tpu.dot_dimension_numbers<[1], [0], [0], [1], [0, 0, 1, 1], [], []>} : vector<8x32xbf16>, vector<32x32xbf16>, vector<8x32xf32> -> vector<8x32xf32>
    %c0_10 = arith.constant 0 : index
    %c0_11 = arith.constant 0 : index
    %11 = vector.load %arg6[%c0_10, %c0_11] : memref<1x32xf32, #tpu.memory_space<vmem>>, vector<1x32xf32>
    %12 = vector.broadcast %11 : vector<1x32xf32> to vector<8x32xf32>
    %13 = arith.addf %10, %12 : vector<8x32xf32>
    %14 = arith.truncf %13 : vector<8x32xf32> to vector<8x32xbf16>
    %c0_12 = arith.constant 0 : index
    %c0_13 = arith.constant 0 : index
    %15 = vector.load %arg7[%c0_12, %c0_13] : memref<32x32xbf16, #tpu.memory_space<vmem>>, vector<32x32xbf16>
    %cst_14 = arith.constant dense<0.000000e+00> : vector<8x32xf32>
    %16 = tpu.matmul %5, %15, %cst_14 {dimension_numbers = #tpu.dot_dimension_numbers<[1], [0], [0], [1], [0, 0, 1, 1], [], []>} : vector<8x32xbf16>, vector<32x32xbf16>, vector<8x32xf32> -> vector<8x32xf32>
    %c0_15 = arith.constant 0 : index
    %c0_16 = arith.constant 0 : index
    %17 = vector.load %arg8[%c0_15, %c0_16] : memref<1x32xf32, #tpu.memory_space<vmem>>, vector<1x32xf32>
    %18 = vector.broadcast %17 : vector<1x32xf32> to vector<8x32xf32>
    %19 = arith.addf %16, %18 : vector<8x32xf32>
    %20 = arith.truncf %19 : vector<8x32xf32> to vector<8x32xbf16>
    %c0_17 = arith.constant 0 : index
    %c0_18 = arith.constant 0 : index
    %21 = vector.load %arg9[%c0_17, %c0_18] : memref<32x32xbf16, #tpu.memory_space<vmem>>, vector<32x32xbf16>
    %cst_19 = arith.constant dense<0.000000e+00> : vector<8x32xf32>
    %22 = tpu.matmul %8, %21, %cst_19 {dimension_numbers = #tpu.dot_dimension_numbers<[1], [0], [0], [1], [0, 0, 1, 1], [], []>} : vector<8x32xbf16>, vector<32x32xbf16>, vector<8x32xf32> -> vector<8x32xf32>
    %c0_20 = arith.constant 0 : index
    %c0_21 = arith.constant 0 : index
    %23 = vector.load %arg10[%c0_20, %c0_21] : memref<1x32xf32, #tpu.memory_space<vmem>>, vector<1x32xf32>
    %24 = vector.broadcast %23 : vector<1x32xf32> to vector<8x32xf32>
    %25 = arith.addf %22, %24 : vector<8x32xf32>
    %26 = arith.truncf %25 : vector<8x32xf32> to vector<8x32xbf16>
    %27 = vector.extract_strided_slice %14 {offsets = [0, 0], sizes = [8, 8], strides = [1, 1]} : vector<8x32xbf16> to vector<8x8xbf16>
    %28 = vector.extract_strided_slice %20 {offsets = [0, 0], sizes = [8, 8], strides = [1, 1]} : vector<8x32xbf16> to vector<8x8xbf16>
    %29 = vector.extract_strided_slice %26 {offsets = [0, 0], sizes = [8, 8], strides = [1, 1]} : vector<8x32xbf16> to vector<8x8xbf16>
    %cst_22 = arith.constant dense<0.000000e+00> : vector<8x8xf32>
    %30 = tpu.matmul %27, %28, %cst_22 {dimension_numbers = #tpu.dot_dimension_numbers<[1], [1], [0], [0], [0, 0, 1, 0], [], []>} : vector<8x8xbf16>, vector<8x8xbf16>, vector<8x8xf32> -> vector<8x8xf32>
    %cst_23 = arith.constant dense<0xFF800000> : vector<8xf32>
    %31 = vector.multi_reduction <maximumf>, %30, %cst_23 [1] : vector<8x8xf32> to vector<8xf32>
    %32 = vector.shape_cast %31 : vector<8xf32> to vector<8x1xf32>
    %33 = vector.broadcast %32 : vector<8x1xf32> to vector<8x8xf32>
    %34 = arith.subf %30, %33 : vector<8x8xf32>
    %35 = math.exp %34 : vector<8x8xf32>
    %cst_24 = arith.constant dense<0.000000e+00> : vector<8xf32>
    %36 = vector.multi_reduction <add>, %35, %cst_24 [1] : vector<8x8xf32> to vector<8xf32>
    %37 = vector.shape_cast %36 : vector<8xf32> to vector<8x1xf32>
    %38 = tpu.reciprocal %37 {approx = true} : vector<8x1xf32> -> vector<8x1xf32>
    %39 = vector.broadcast %38 : vector<8x1xf32> to vector<8x8xf32>
    %40 = arith.mulf %35, %39 : vector<8x8xf32>
    %41 = arith.truncf %40 : vector<8x8xf32> to vector<8x8xbf16>
    %cst_25 = arith.constant dense<0.000000e+00> : vector<8x8xf32>
    %42 = tpu.matmul %41, %29, %cst_25 {dimension_numbers = #tpu.dot_dimension_numbers<[1], [0], [0], [1], [0, 0, 1, 1], [], []>} : vector<8x8xbf16>, vector<8x8xbf16>, vector<8x8xf32> -> vector<8x8xf32>
    %43 = vector.extract_strided_slice %14 {offsets = [0, 8], sizes = [8, 8], strides = [1, 1]} : vector<8x32xbf16> to vector<8x8xbf16>
    %44 = vector.extract_strided_slice %20 {offsets = [0, 8], sizes = [8, 8], strides = [1, 1]} : vector<8x32xbf16> to vector<8x8xbf16>
    %45 = vector.extract_strided_slice %26 {offsets = [0, 8], sizes = [8, 8], strides = [1, 1]} : vector<8x32xbf16> to vector<8x8xbf16>
    %cst_26 = arith.constant dense<0.000000e+00> : vector<8x8xf32>
    %46 = tpu.matmul %43, %44, %cst_26 {dimension_numbers = #tpu.dot_dimension_numbers<[1], [1], [0], [0], [0, 0, 1, 0], [], []>} : vector<8x8xbf16>, vector<8x8xbf16>, vector<8x8xf32> -> vector<8x8xf32>
    %cst_27 = arith.constant dense<0xFF800000> : vector<8xf32>
    %47 = vector.multi_reduction <maximumf>, %46, %cst_27 [1] : vector<8x8xf32> to vector<8xf32>
    %48 = vector.shape_cast %47 : vector<8xf32> to vector<8x1xf32>
    %49 = vector.broadcast %48 : vector<8x1xf32> to vector<8x8xf32>
    %50 = arith.subf %46, %49 : vector<8x8xf32>
    %51 = math.exp %50 : vector<8x8xf32>
    %cst_28 = arith.constant dense<0.000000e+00> : vector<8xf32>
    %52 = vector.multi_reduction <add>, %51, %cst_28 [1] : vector<8x8xf32> to vector<8xf32>
    %53 = vector.shape_cast %52 : vector<8xf32> to vector<8x1xf32>
    %54 = tpu.reciprocal %53 {approx = true} : vector<8x1xf32> -> vector<8x1xf32>
    %55 = vector.broadcast %54 : vector<8x1xf32> to vector<8x8xf32>
    %56 = arith.mulf %51, %55 : vector<8x8xf32>
    %57 = arith.truncf %56 : vector<8x8xf32> to vector<8x8xbf16>
    %cst_29 = arith.constant dense<0.000000e+00> : vector<8x8xf32>
    %58 = tpu.matmul %57, %45, %cst_29 {dimension_numbers = #tpu.dot_dimension_numbers<[1], [0], [0], [1], [0, 0, 1, 1], [], []>} : vector<8x8xbf16>, vector<8x8xbf16>, vector<8x8xf32> -> vector<8x8xf32>
    %59 = vector.extract_strided_slice %14 {offsets = [0, 16], sizes = [8, 8], strides = [1, 1]} : vector<8x32xbf16> to vector<8x8xbf16>
    %60 = vector.extract_strided_slice %20 {offsets = [0, 16], sizes = [8, 8], strides = [1, 1]} : vector<8x32xbf16> to vector<8x8xbf16>
    %61 = vector.extract_strided_slice %26 {offsets = [0, 16], sizes = [8, 8], strides = [1, 1]} : vector<8x32xbf16> to vector<8x8xbf16>
    %cst_30 = arith.constant dense<0.000000e+00> : vector<8x8xf32>
    %62 = tpu.matmul %59, %60, %cst_30 {dimension_numbers = #tpu.dot_dimension_numbers<[1], [1], [0], [0], [0, 0, 1, 0], [], []>} : vector<8x8xbf16>, vector<8x8xbf16>, vector<8x8xf32> -> vector<8x8xf32>
    %cst_31 = arith.constant dense<0xFF800000> : vector<8xf32>
    %63 = vector.multi_reduction <maximumf>, %62, %cst_31 [1] : vector<8x8xf32> to vector<8xf32>
    %64 = vector.shape_cast %63 : vector<8xf32> to vector<8x1xf32>
    %65 = vector.broadcast %64 : vector<8x1xf32> to vector<8x8xf32>
    %66 = arith.subf %62, %65 : vector<8x8xf32>
    %67 = math.exp %66 : vector<8x8xf32>
    %cst_32 = arith.constant dense<0.000000e+00> : vector<8xf32>
    %68 = vector.multi_reduction <add>, %67, %cst_32 [1] : vector<8x8xf32> to vector<8xf32>
    %69 = vector.shape_cast %68 : vector<8xf32> to vector<8x1xf32>
    %70 = tpu.reciprocal %69 {approx = true} : vector<8x1xf32> -> vector<8x1xf32>
    %71 = vector.broadcast %70 : vector<8x1xf32> to vector<8x8xf32>
    %72 = arith.mulf %67, %71 : vector<8x8xf32>
    %73 = arith.truncf %72 : vector<8x8xf32> to vector<8x8xbf16>
    %cst_33 = arith.constant dense<0.000000e+00> : vector<8x8xf32>
    %74 = tpu.matmul %73, %61, %cst_33 {dimension_numbers = #tpu.dot_dimension_numbers<[1], [0], [0], [1], [0, 0, 1, 1], [], []>} : vector<8x8xbf16>, vector<8x8xbf16>, vector<8x8xf32> -> vector<8x8xf32>
    %75 = vector.extract_strided_slice %14 {offsets = [0, 24], sizes = [8, 8], strides = [1, 1]} : vector<8x32xbf16> to vector<8x8xbf16>
    %76 = vector.extract_strided_slice %20 {offsets = [0, 24], sizes = [8, 8], strides = [1, 1]} : vector<8x32xbf16> to vector<8x8xbf16>
    %77 = vector.extract_strided_slice %26 {offsets = [0, 24], sizes = [8, 8], strides = [1, 1]} : vector<8x32xbf16> to vector<8x8xbf16>
    %cst_34 = arith.constant dense<0.000000e+00> : vector<8x8xf32>
    %78 = tpu.matmul %75, %76, %cst_34 {dimension_numbers = #tpu.dot_dimension_numbers<[1], [1], [0], [0], [0, 0, 1, 0], [], []>} : vector<8x8xbf16>, vector<8x8xbf16>, vector<8x8xf32> -> vector<8x8xf32>
    %cst_35 = arith.constant dense<0xFF800000> : vector<8xf32>
    %79 = vector.multi_reduction <maximumf>, %78, %cst_35 [1] : vector<8x8xf32> to vector<8xf32>
    %80 = vector.shape_cast %79 : vector<8xf32> to vector<8x1xf32>
    %81 = vector.broadcast %80 : vector<8x1xf32> to vector<8x8xf32>
    %82 = arith.subf %78, %81 : vector<8x8xf32>
    %83 = math.exp %82 : vector<8x8xf32>
    %cst_36 = arith.constant dense<0.000000e+00> : vector<8xf32>
    %84 = vector.multi_reduction <add>, %83, %cst_36 [1] : vector<8x8xf32> to vector<8xf32>
    %85 = vector.shape_cast %84 : vector<8xf32> to vector<8x1xf32>
    %86 = tpu.reciprocal %85 {approx = true} : vector<8x1xf32> -> vector<8x1xf32>
    %87 = vector.broadcast %86 : vector<8x1xf32> to vector<8x8xf32>
    %88 = arith.mulf %83, %87 : vector<8x8xf32>
    %89 = arith.truncf %88 : vector<8x8xf32> to vector<8x8xbf16>
    %cst_37 = arith.constant dense<0.000000e+00> : vector<8x8xf32>
    %90 = tpu.matmul %89, %77, %cst_37 {dimension_numbers = #tpu.dot_dimension_numbers<[1], [0], [0], [1], [0, 0, 1, 1], [], []>} : vector<8x8xbf16>, vector<8x8xbf16>, vector<8x8xf32> -> vector<8x8xf32>
    %91 = tpu.concatenate %42, %58, %74, %90 in 1 : vector<8x8xf32>, vector<8x8xf32>, vector<8x8xf32>, vector<8x8xf32> -> vector<8x32xf32>
    %92 = arith.truncf %91 : vector<8x32xf32> to vector<8x32xbf16>
    %c0_38 = arith.constant 0 : index
    %c0_39 = arith.constant 0 : index
    %93 = vector.load %arg11[%c0_38, %c0_39] : memref<32x32xbf16, #tpu.memory_space<vmem>>, vector<32x32xbf16>
    %cst_40 = arith.constant dense<0.000000e+00> : vector<8x32xf32>
    %94 = tpu.matmul %92, %93, %cst_40 {dimension_numbers = #tpu.dot_dimension_numbers<[1], [0], [0], [1], [0, 0, 1, 1], [], []>} : vector<8x32xbf16>, vector<32x32xbf16>, vector<8x32xf32> -> vector<8x32xf32>
    %c0_41 = arith.constant 0 : index
    %c0_42 = arith.constant 0 : index
    %95 = vector.load %arg12[%c0_41, %c0_42] : memref<1x32xf32, #tpu.memory_space<vmem>>, vector<1x32xf32>
    %96 = vector.broadcast %95 : vector<1x32xf32> to vector<8x32xf32>
    %97 = arith.addf %94, %96 : vector<8x32xf32>
    %98 = arith.addf %1, %97 : vector<8x32xf32>
    %cst_43 = arith.constant dense<0.000000e+00> : vector<8xf32>
    %99 = vector.multi_reduction <add>, %98, %cst_43 [1] : vector<8x32xf32> to vector<8xf32>
    %100 = vector.shape_cast %99 : vector<8xf32> to vector<8x1xf32>
    %cst_44 = arith.constant 3.200000e+01 : f32
    %101 = vector.broadcast %cst_44 : f32 to vector<8x1xf32>
    %102 = arith.divf %100, %101 : vector<8x1xf32>
    %103 = vector.broadcast %102 : vector<8x1xf32> to vector<8x32xf32>
    %104 = arith.subf %98, %103 : vector<8x32xf32>
    %105 = arith.mulf %104, %104 : vector<8x32xf32>
    %cst_45 = arith.constant dense<0.000000e+00> : vector<8xf32>
    %106 = vector.multi_reduction <add>, %105, %cst_45 [1] : vector<8x32xf32> to vector<8xf32>
    %107 = vector.shape_cast %106 : vector<8xf32> to vector<8x1xf32>
    %cst_46 = arith.constant 3.200000e+01 : f32
    %108 = vector.broadcast %cst_46 : f32 to vector<8x1xf32>
    %109 = arith.divf %107, %108 : vector<8x1xf32>
    %110 = vector.broadcast %102 : vector<8x1xf32> to vector<8x32xf32>
    %111 = arith.subf %98, %110 : vector<8x32xf32>
    %cst_47 = arith.constant 9.99999974E-6 : f32
    %112 = vector.broadcast %cst_47 : f32 to vector<8x1xf32>
    %113 = arith.addf %109, %112 : vector<8x1xf32>
    %114 = math.rsqrt %113 : vector<8x1xf32>
    %115 = vector.broadcast %114 : vector<8x1xf32> to vector<8x32xf32>
    %116 = arith.mulf %111, %115 : vector<8x32xf32>
    %c0_48 = arith.constant 0 : index
    %c0_49 = arith.constant 0 : index
    %117 = vector.load %arg13[%c0_48, %c0_49] : memref<1x32xf32, #tpu.memory_space<vmem>>, vector<1x32xf32>
    %118 = vector.broadcast %117 : vector<1x32xf32> to vector<8x32xf32>
    %119 = arith.mulf %116, %118 : vector<8x32xf32>
    %c0_50 = arith.constant 0 : index
    %c0_51 = arith.constant 0 : index
    %120 = vector.load %arg14[%c0_50, %c0_51] : memref<1x32xf32, #tpu.memory_space<vmem>>, vector<1x32xf32>
    %121 = vector.broadcast %120 : vector<1x32xf32> to vector<8x32xf32>
    %122 = arith.addf %119, %121 : vector<8x32xf32>
    %123 = arith.addf %1, %122 : vector<8x32xf32>
    %cst_52 = arith.constant dense<0.000000e+00> : vector<8xf32>
    %124 = vector.multi_reduction <add>, %123, %cst_52 [1] : vector<8x32xf32> to vector<8xf32>
    %125 = vector.shape_cast %124 : vector<8xf32> to vector<8x1xf32>
    %cst_53 = arith.constant 3.200000e+01 : f32
    %126 = vector.broadcast %cst_53 : f32 to vector<8x1xf32>
    %127 = arith.divf %125, %126 : vector<8x1xf32>
    %128 = vector.broadcast %127 : vector<8x1xf32> to vector<8x32xf32>
    %129 = arith.subf %123, %128 : vector<8x32xf32>
    %130 = arith.mulf %129, %129 : vector<8x32xf32>
    %cst_54 = arith.constant dense<0.000000e+00> : vector<8xf32>
    %131 = vector.multi_reduction <add>, %130, %cst_54 [1] : vector<8x32xf32> to vector<8xf32>
    %132 = vector.shape_cast %131 : vector<8xf32> to vector<8x1xf32>
    %cst_55 = arith.constant 3.200000e+01 : f32
    %133 = vector.broadcast %cst_55 : f32 to vector<8x1xf32>
    %134 = arith.divf %132, %133 : vector<8x1xf32>
    %135 = vector.broadcast %127 : vector<8x1xf32> to vector<8x32xf32>
    %136 = arith.subf %123, %135 : vector<8x32xf32>
    %cst_56 = arith.constant 9.99999974E-6 : f32
    %137 = vector.broadcast %cst_56 : f32 to vector<8x1xf32>
    %138 = arith.addf %134, %137 : vector<8x1xf32>
    %139 = math.rsqrt %138 : vector<8x1xf32>
    %140 = vector.broadcast %139 : vector<8x1xf32> to vector<8x32xf32>
    %141 = arith.mulf %136, %140 : vector<8x32xf32>
    %c0_57 = arith.constant 0 : index
    %c0_58 = arith.constant 0 : index
    %142 = vector.load %arg15[%c0_57, %c0_58] : memref<1x32xf32, #tpu.memory_space<vmem>>, vector<1x32xf32>
    %143 = vector.broadcast %142 : vector<1x32xf32> to vector<8x32xf32>
    %144 = arith.mulf %141, %143 : vector<8x32xf32>
    %c0_59 = arith.constant 0 : index
    %c0_60 = arith.constant 0 : index
    %145 = vector.load %arg16[%c0_59, %c0_60] : memref<1x32xf32, #tpu.memory_space<vmem>>, vector<1x32xf32>
    %146 = vector.broadcast %145 : vector<1x32xf32> to vector<8x32xf32>
    %147 = arith.addf %144, %146 : vector<8x32xf32>
    %148 = arith.truncf %147 : vector<8x32xf32> to vector<8x32xbf16>
    %cst_61 = arith.constant 0.000000e+00 : f32
    %149 = vector.broadcast %cst_61 : f32 to vector<8x32xf32>
    %c0_62 = arith.constant 0 : index
    %c0_63 = arith.constant 0 : index
    %150 = vector.load %arg17[%c0_62, %c0_63] : memref<32x64xbf16, #tpu.memory_space<vmem>>, vector<32x64xbf16>
    %cst_64 = arith.constant dense<0.000000e+00> : vector<8x64xf32>
    %151 = tpu.matmul %148, %150, %cst_64 {dimension_numbers = #tpu.dot_dimension_numbers<[1], [0], [0], [1], [0, 0, 1, 1], [], []>} : vector<8x32xbf16>, vector<32x64xbf16>, vector<8x64xf32> -> vector<8x64xf32>
    %c0_65 = arith.constant 0 : index
    %c0_66 = arith.constant 0 : index
    %152 = vector.load %arg18[%c0_65, %c0_66] : memref<1x64xf32, #tpu.memory_space<vmem>>, vector<1x64xf32>
    %153 = vector.broadcast %152 : vector<1x64xf32> to vector<8x64xf32>
    %154 = arith.addf %151, %153 : vector<8x64xf32>
    %cst_67 = arith.constant 0.000000e+00 : f32
    %155 = vector.broadcast %cst_67 : f32 to vector<8x64xf32>
    %156 = arith.maximumf %154, %155 : vector<8x64xf32>
    %157 = arith.truncf %156 : vector<8x64xf32> to vector<8x64xbf16>
    %c0_68 = arith.constant 0 : index
    %c0_69 = arith.constant 0 : index
    %158 = vector.load %arg19[%c0_68, %c0_69] : memref<64x32xbf16, #tpu.memory_space<vmem>>, vector<64x32xbf16>
    %cst_70 = arith.constant dense<0.000000e+00> : vector<8x32xf32>
    %159 = tpu.matmul %157, %158, %cst_70 {dimension_numbers = #tpu.dot_dimension_numbers<[1], [0], [0], [1], [0, 0, 1, 1], [], []>} : vector<8x64xbf16>, vector<64x32xbf16>, vector<8x32xf32> -> vector<8x32xf32>
    %160 = arith.addf %149, %159 : vector<8x32xf32>
    %c0_71 = arith.constant 0 : index
    %c0_72 = arith.constant 0 : index
    %161 = vector.load %arg20[%c0_71, %c0_72] : memref<1x32xf32, #tpu.memory_space<vmem>>, vector<1x32xf32>
    %162 = vector.broadcast %161 : vector<1x32xf32> to vector<8x32xf32>
    %163 = arith.addf %160, %162 : vector<8x32xf32>
    %164 = arith.addf %147, %163 : vector<8x32xf32>
    %cst_73 = arith.constant dense<0.000000e+00> : vector<8xf32>
    %165 = vector.multi_reduction <add>, %164, %cst_73 [1] : vector<8x32xf32> to vector<8xf32>
    %166 = vector.shape_cast %165 : vector<8xf32> to vector<8x1xf32>
    %cst_74 = arith.constant 3.200000e+01 : f32
    %167 = vector.broadcast %cst_74 : f32 to vector<8x1xf32>
    %168 = arith.divf %166, %167 : vector<8x1xf32>
    %169 = vector.broadcast %168 : vector<8x1xf32> to vector<8x32xf32>
    %170 = arith.subf %164, %169 : vector<8x32xf32>
    %171 = arith.mulf %170, %170 : vector<8x32xf32>
    %cst_75 = arith.constant dense<0.000000e+00> : vector<8xf32>
    %172 = vector.multi_reduction <add>, %171, %cst_75 [1] : vector<8x32xf32> to vector<8xf32>
    %173 = vector.shape_cast %172 : vector<8xf32> to vector<8x1xf32>
    %cst_76 = arith.constant 3.200000e+01 : f32
    %174 = vector.broadcast %cst_76 : f32 to vector<8x1xf32>
    %175 = arith.divf %173, %174 : vector<8x1xf32>
    %176 = vector.broadcast %168 : vector<8x1xf32> to vector<8x32xf32>
    %177 = arith.subf %164, %176 : vector<8x32xf32>
    %cst_77 = arith.constant 9.99999974E-6 : f32
    %178 = vector.broadcast %cst_77 : f32 to vector<8x1xf32>
    %179 = arith.addf %175, %178 : vector<8x1xf32>
    %180 = math.rsqrt %179 : vector<8x1xf32>
    %181 = vector.broadcast %180 : vector<8x1xf32> to vector<8x32xf32>
    %182 = arith.mulf %177, %181 : vector<8x32xf32>
    %c0_78 = arith.constant 0 : index
    %c0_79 = arith.constant 0 : index
    %183 = vector.load %arg21[%c0_78, %c0_79] : memref<1x32xf32, #tpu.memory_space<vmem>>, vector<1x32xf32>
    %184 = vector.broadcast %183 : vector<1x32xf32> to vector<8x32xf32>
    %185 = arith.mulf %182, %184 : vector<8x32xf32>
    %c0_80 = arith.constant 0 : index
    %c0_81 = arith.constant 0 : index
    %186 = vector.load %arg22[%c0_80, %c0_81] : memref<1x32xf32, #tpu.memory_space<vmem>>, vector<1x32xf32>
    %187 = vector.broadcast %186 : vector<1x32xf32> to vector<8x32xf32>
    %188 = arith.addf %185, %187 : vector<8x32xf32>
    %c0_82 = arith.constant 0 : index
    %c0_83 = arith.constant 0 : index
    %c0_84 = arith.constant 0 : index
    %189 = vector.load %arg23[%c0_82, %c0_83, %c0_84] : memref<1x8x32xf32, #tpu.memory_space<vmem>>, vector<1x8x32xf32>
    %190 = vector.shape_cast %189 : vector<1x8x32xf32> to vector<8x32xf32>
    %191 = vector.shape_cast %188 : vector<8x32xf32> to vector<1x8x32xf32>
    tpu.vector_store %arg23[%c0_82, %c0_83, %c0_84], %191 {strides = array<i32>} : memref<1x8x32xf32, #tpu.memory_space<vmem>>, vector<1x8x32xf32>,
    return
  }
  func.func @transform_0(%arg0: i32, %arg1: i32) -> (i32, i32, i32) {
    %c0_i32 = arith.constant 0 : i32
    %c0_i32_0 = arith.constant 0 : i32
    return %arg0, %arg1, %c0_i32 : i32, i32, i32
  }
  func.func @transform_1(%arg0: i32, %arg1: i32) -> (i32, i32, i32) {
    %c0_i32 = arith.constant 0 : i32
    %c0_i32_0 = arith.constant 0 : i32
    %c0_i32_1 = arith.constant 0 : i32
    return %arg0, %c0_i32, %c0_i32_0 : i32, i32, i32
  }
  func.func @transform_2(%arg0: i32, %arg1: i32) -> (i32, i32, i32) {
    %c0_i32 = arith.constant 0 : i32
    %c0_i32_0 = arith.constant 0 : i32
    %c0_i32_1 = arith.constant 0 : i32
    return %arg0, %c0_i32, %c0_i32_0 : i32, i32, i32
  }
  func.func @transform_3(%arg0: i32, %arg1: i32) -> (i32, i32) {
    %c0_i32 = arith.constant 0 : i32
    %c0_i32_0 = arith.constant 0 : i32
    %c0_i32_1 = arith.constant 0 : i32
    return %c0_i32, %c0_i32_0 : i32, i32
  }
  func.func @transform_4(%arg0: i32, %arg1: i32) -> (i32, i32) {
    %c0_i32 = arith.constant 0 : i32
    %c0_i32_0 = arith.constant 0 : i32
    %c0_i32_1 = arith.constant 0 : i32
    return %c0_i32, %c0_i32_0 : i32, i32
  }
  func.func @transform_5(%arg0: i32, %arg1: i32) -> (i32, i32) {
    %c0_i32 = arith.constant 0 : i32
    %c0_i32_0 = arith.constant 0 : i32
    %c0_i32_1 = arith.constant 0 : i32
    return %c0_i32, %c0_i32_0 : i32, i32
  }
  func.func @transform_6(%arg0: i32, %arg1: i32) -> (i32, i32) {
    %c0_i32 = arith.constant 0 : i32
    %c0_i32_0 = arith.constant 0 : i32
    %c0_i32_1 = arith.constant 0 : i32
    return %c0_i32, %c0_i32_0 : i32, i32
  }
  func.func @transform_7(%arg0: i32, %arg1: i32) -> (i32, i32) {
    %c0_i32 = arith.constant 0 : i32
    %c0_i32_0 = arith.constant 0 : i32
    %c0_i32_1 = arith.constant 0 : i32
    return %c0_i32, %c0_i32_0 : i32, i32
  }
  func.func @transform_8(%arg0: i32, %arg1: i32) -> (i32, i32) {
    %c0_i32 = arith.constant 0 : i32
    %c0_i32_0 = arith.constant 0 : i32
    %c0_i32_1 = arith.constant 0 : i32
    return %c0_i32, %c0_i32_0 : i32, i32
  }
  func.func @transform_9(%arg0: i32, %arg1: i32) -> (i32, i32) {
    %c0_i32 = arith.constant 0 : i32
    %c0_i32_0 = arith.constant 0 : i32
    %c0_i32_1 = arith.constant 0 : i32
    return %c0_i32, %c0_i32_0 : i32, i32
  }
  func.func @transform_10(%arg0: i32, %arg1: i32) -> (i32, i32) {
    %c0_i32 = arith.constant 0 : i32
    %c0_i32_0 = arith.constant 0 : i32
    %c0_i32_1 = arith.constant 0 : i32
    return %c0_i32, %c0_i32_0 : i32, i32
  }
  func.func @transform_11(%arg0: i32, %arg1: i32) -> (i32, i32) {
    %c0_i32 = arith.constant 0 : i32
    %c0_i32_0 = arith.constant 0 : i32
    %c0_i32_1 = arith.constant 0 : i32
    return %c0_i32, %c0_i32_0 : i32, i32
  }
  func.func @transform_12(%arg0: i32, %arg1: i32) -> (i32, i32) {
    %c0_i32 = arith.constant 0 : i32
    %c0_i32_0 = arith.constant 0 : i32
    %c0_i32_1 = arith.constant 0 : i32
    return %c0_i32, %c0_i32_0 : i32, i32
  }
  func.func @transform_13(%arg0: i32, %arg1: i32) -> (i32, i32) {
    %c0_i32 = arith.constant 0 : i32
    %c0_i32_0 = arith.constant 0 : i32
    %c0_i32_1 = arith.constant 0 : i32
    return %c0_i32, %c0_i32_0 : i32, i32
  }
  func.func @transform_14(%arg0: i32, %arg1: i32) -> (i32, i32) {
    %c0_i32 = arith.constant 0 : i32
    %c0_i32_0 = arith.constant 0 : i32
    %c0_i32_1 = arith.constant 0 : i32
    return %c0_i32, %c0_i32_0 : i32, i32
  }
  func.func @transform_15(%arg0: i32, %arg1: i32) -> (i32, i32) {
    %c0_i32 = arith.constant 0 : i32
    %c0_i32_0 = arith.constant 0 : i32
    %c0_i32_1 = arith.constant 0 : i32
    return %c0_i32, %c0_i32_0 : i32, i32
  }
  func.func @transform_16(%arg0: i32, %arg1: i32) -> (i32, i32) {
    %c0_i32 = arith.constant 0 : i32
    %c0_i32_0 = arith.constant 0 : i32
    %c0_i32_1 = arith.constant 0 : i32
    return %c0_i32, %c0_i32_0 : i32, i32
  }
  func.func @transform_17(%arg0: i32, %arg1: i32) -> (i32, i32) {
    %c0_i32 = arith.constant 0 : i32
    %c0_i32_0 = arith.constant 0 : i32
    %c0_i32_1 = arith.constant 0 : i32
    return %c0_i32, %c0_i32_0 : i32, i32
  }
  func.func @transform_18(%arg0: i32, %arg1: i32) -> (i32, i32) {
    %c0_i32 = arith.constant 0 : i32
    %c0_i32_0 = arith.constant 0 : i32
    %c0_i32_1 = arith.constant 0 : i32
    return %c0_i32, %c0_i32_0 : i32, i32
  }
  func.func @transform_19(%arg0: i32, %arg1: i32) -> (i32, i32) {
    %c0_i32 = arith.constant 0 : i32
    %c0_i32_0 = arith.constant 0 : i32
    %c0_i32_1 = arith.constant 0 : i32
    return %c0_i32, %c0_i32_0 : i32, i32
  }
  func.func @transform_20(%arg0: i32, %arg1: i32) -> (i32, i32) {
    %c0_i32 = arith.constant 0 : i32
    %c0_i32_0 = arith.constant 0 : i32
    %c0_i32_1 = arith.constant 0 : i32
    return %c0_i32, %c0_i32_0 : i32, i32
  }
  func.func @transform_21(%arg0: i32, %arg1: i32) -> (i32, i32, i32) {
    %c0_i32 = arith.constant 0 : i32
    %c0_i32_0 = arith.constant 0 : i32
    return %arg0, %arg1, %c0_i32 : i32, i32, i32
  }
}

module attributes {stable_mosaic.version = 11 : i64} {
  func.func @_encoder_layer_kernel(%arg0: i32, %arg1: i32, %arg2: memref<1x8x32xf32, #tpu.memory_space<vmem>>, %arg3: memref<1x8x32xf32, #tpu.memory_space<vmem>>, %arg4: memref<1x8x32xf32, #tpu.memory_space<vmem>>, %arg5: memref<32x32xbf16, #tpu.memory_space<vmem>>, %arg6: memref<1x32xf32, #tpu.memory_space<vmem>>, %arg7: memref<32x32xbf16, #tpu.memory_space<vmem>>, %arg8: memref<1x32xf32, #tpu.memory_space<vmem>>, %arg9: memref<32x32xbf16, #tpu.memory_space<vmem>>, %arg10: memref<1x32xf32, #tpu.memory_space<vmem>>, %arg11: memref<32x32xbf16, #tpu.memory_space<vmem>>, %arg12: memref<1x32xf32, #tpu.memory_space<vmem>>, %arg13: memref<1x32xf32, #tpu.memory_space<vmem>>, %arg14: memref<1x32xf32, #tpu.memory_space<vmem>>, %arg15: memref<1x32xf32, #tpu.memory_space<vmem>>, %arg16: memref<1x32xf32, #tpu.memory_space<vmem>>, %arg17: memref<32x64xbf16, #tpu.memory_space<vmem>>, %arg18: memref<1x64xf32, #tpu.memory_space<vmem>>, %arg19: memref<64x32xbf16, #tpu.memory_space<vmem>>, %arg20: memref<1x32xf32, #tpu.memory_space<vmem>>, %arg21: memref<1x32xf32, #tpu.memory_space<vmem>>, %arg22: memref<1x32xf32, #tpu.memory_space<vmem>>, %arg23: memref<1x8x32xf32, #tpu.memory_space<vmem>>) attributes {dimension_semantics = [#tpu.dimension_semantics<parallel>, #tpu.dimension_semantics<parallel>], iteration_bounds = array<i64: 2, 1>, scalar_prefetch = 0 : i64, scratch_operands = 0 : i64, tpu.core_type = #tpu.core_type<tc>, window_params = [{transform_indices = @transform_0, window_bounds = array<i64: 1, 8, 32>}, {transform_indices = @transform_1, window_bounds = array<i64: 1, 8, 32>}, {transform_indices = @transform_2, window_bounds = array<i64: 1, 8, 32>}, {pipeline_mode = #tpu.pipeline_mode<synchronous>, transform_indices = @transform_3, window_bounds = array<i64: 32, 32>}, {pipeline_mode = #tpu.pipeline_mode<synchronous>, transform_indices = @transform_4, window_bounds = array<i64: 1, 32>}, {pipeline_mode = #tpu.pipeline_mode<synchronous>, transform_indices = @transform_5, window_bounds = array<i64: 32, 32>}, {pipeline_mode = #tpu.pipeline_mode<synchronous>, transform_indices = @transform_6, window_bounds = array<i64: 1, 32>}, {pipeline_mode = #tpu.pipeline_mode<synchronous>, transform_indices = @transform_7, window_bounds = array<i64: 32, 32>}, {pipeline_mode = #tpu.pipeline_mode<synchronous>, transform_indices = @transform_8, window_bounds = array<i64: 1, 32>}, {pipeline_mode = #tpu.pipeline_mode<synchronous>, transform_indices = @transform_9, window_bounds = array<i64: 32, 32>}, {pipeline_mode = #tpu.pipeline_mode<synchronous>, transform_indices = @transform_10, window_bounds = array<i64: 1, 32>}, {pipeline_mode = #tpu.pipeline_mode<synchronous>, transform_indices = @transform_11, window_bounds = array<i64: 1, 32>}, {pipeline_mode = #tpu.pipeline_mode<synchronous>, transform_indices = @transform_12, window_bounds = array<i64: 1, 32>}, {pipeline_mode = #tpu.pipeline_mode<synchronous>, transform_indices = @transform_13, window_bounds = array<i64: 1, 32>}, {pipeline_mode = #tpu.pipeline_mode<synchronous>, transform_indices = @transform_14, window_bounds = array<i64: 1, 32>}, {pipeline_mode = #tpu.pipeline_mode<synchronous>, transform_indices = @transform_15, window_bounds = array<i64: 32, 64>}, {pipeline_mode = #tpu.pipeline_mode<synchronous>, transform_indices = @transform_16, window_bounds = array<i64: 1, 64>}, {pipeline_mode = #tpu.pipeline_mode<synchronous>, transform_indices = @transform_17, window_bounds = array<i64: 64, 32>}, {pipeline_mode = #tpu.pipeline_mode<synchronous>, transform_indices = @transform_18, window_bounds = array<i64: 1, 32>}, {pipeline_mode = #tpu.pipeline_mode<synchronous>, transform_indices = @transform_19, window_bounds = array<i64: 1, 32>}, {pipeline_mode = #tpu.pipeline_mode<synchronous>, transform_indices = @transform_20, window_bounds = array<i64: 1, 32>}, {transform_indices = @transform_21, window_bounds = array<i64: 1, 8, 32>}]} {
    %c0 = arith.constant 0 : index
    %c0_0 = arith.constant 0 : index
    %c0_1 = arith.constant 0 : index
    %0 = vector.load %arg2[%c0, %c0_0, %c0_1] : memref<1x8x32xf32, #tpu.memory_space<vmem>>, vector<1x8x32xf32>
    %1 = vector.shape_cast %0 : vector<1x8x32xf32> to vector<8x32xf32>
    %2 = arith.truncf %1 : vector<8x32xf32> to vector<8x32xbf16>
    %c0_2 = arith.constant 0 : index
    %c0_3 = arith.constant 0 : index
    %c0_4 = arith.constant 0 : index
    %3 = vector.load %arg3[%c0_2, %c0_3, %c0_4] : memref<1x8x32xf32, #tpu.memory_space<vmem>>, vector<1x8x32xf32>
    %4 = vector.shape_cast %3 : vector<1x8x32xf32> to vector<8x32xf32>
    %5 = arith.truncf %4 : vector<8x32xf32> to vector<8x32xbf16>
    %c0_5 = arith.constant 0 : index
    %c0_6 = arith.constant 0 : index
    %c0_7 = arith.constant 0 : index
    %6 = vector.load %arg4[%c0_5, %c0_6, %c0_7] : memref<1x8x32xf32, #tpu.memory_space<vmem>>, vector<1x8x32xf32>
    %7 = vector.shape_cast %6 : vector<1x8x32xf32> to vector<8x32xf32>
    %8 = arith.truncf %7 : vector<8x32xf32> to vector<8x32xbf16>
    %c0_8 = arith.constant 0 : index
    %c0_9 = arith.constant 0 : index
    %9 = vector.load %arg5[%c0_8, %c0_9] : memref<32x32xbf16, #tpu.memory_space<vmem>>, vector<32x32xbf16>
    %cst = arith.constant dense<0.000000e+00> : vector<8x32xf32>
    %10 = tpu.matmul %2, %9, %cst {dimension_numbers = #tpu.dot_dimension_numbers<[1], [0], [0], [1], [0, 0, 1, 1], [], []>} : vector<8x32xbf16>, vector<32x32xbf16>, vector<8x32xf32> -> vector<8x32xf32>
    %c0_10 = arith.constant 0 : index
    %c0_11 = arith.constant 0 : index
    %11 = vector.load %arg6[%c0_10, %c0_11] : memref<1x32xf32, #tpu.memory_space<vmem>>, vector<1x32xf32>
    %12 = vector.broadcast %11 : vector<1x32xf32> to vector<8x32xf32>
    %13 = arith.addf %10, %12 : vector<8x32xf32>
    %14 = arith.truncf %13 : vector<8x32xf32> to vector<8x32xbf16>
    %c0_12 = arith.constant 0 : index
    %c0_13 = arith.constant 0 : index
    %15 = vector.load %arg7[%c0_12, %c0_13] : memref<32x32xbf16, #tpu.memory_space<vmem>>, vector<32x32xbf16>
    %cst_14 = arith.constant dense<0.000000e+00> : vector<8x32xf32>
    %16 = tpu.matmul %5, %15, %cst_14 {dimension_numbers = #tpu.dot_dimension_numbers<[1], [0], [0], [1], [0, 0, 1, 1], [], []>} : vector<8x32xbf16>, vector<32x32xbf16>, vector<8x32xf32> -> vector<8x32xf32>
    %c0_15 = arith.constant 0 : index
    %c0_16 = arith.constant 0 : index
    %17 = vector.load %arg8[%c0_15, %c0_16] : memref<1x32xf32, #tpu.memory_space<vmem>>, vector<1x32xf32>
    %18 = vector.broadcast %17 : vector<1x32xf32> to vector<8x32xf32>
    %19 = arith.addf %16, %18 : vector<8x32xf32>
    %20 = arith.truncf %19 : vector<8x32xf32> to vector<8x32xbf16>
    %c0_17 = arith.constant 0 : index
    %c0_18 = arith.constant 0 : index
    %21 = vector.load %arg9[%c0_17, %c0_18] : memref<32x32xbf16, #tpu.memory_space<vmem>>, vector<32x32xbf16>
    %cst_19 = arith.constant dense<0.000000e+00> : vector<8x32xf32>
    %22 = tpu.matmul %8, %21, %cst_19 {dimension_numbers = #tpu.dot_dimension_numbers<[1], [0], [0], [1], [0, 0, 1, 1], [], []>} : vector<8x32xbf16>, vector<32x32xbf16>, vector<8x32xf32> -> vector<8x32xf32>
    %c0_20 = arith.constant 0 : index
    %c0_21 = arith.constant 0 : index
    %23 = vector.load %arg10[%c0_20, %c0_21] : memref<1x32xf32, #tpu.memory_space<vmem>>, vector<1x32xf32>
    %24 = vector.broadcast %23 : vector<1x32xf32> to vector<8x32xf32>
    %25 = arith.addf %22, %24 : vector<8x32xf32>
    %26 = arith.truncf %25 : vector<8x32xf32> to vector<8x32xbf16>
    %27 = vector.extract_strided_slice %14 {offsets = [0, 0], sizes = [8, 8], strides = [1, 1]} : vector<8x32xbf16> to vector<8x8xbf16>
    %28 = vector.extract_strided_slice %20 {offsets = [0, 0], sizes = [8, 8], strides = [1, 1]} : vector<8x32xbf16> to vector<8x8xbf16>
    %29 = vector.extract_strided_slice %26 {offsets = [0, 0], sizes = [8, 8], strides = [1, 1]} : vector<8x32xbf16> to vector<8x8xbf16>
    %cst_22 = arith.constant dense<0.000000e+00> : vector<8x8xf32>
    %30 = tpu.matmul %27, %28, %cst_22 {dimension_numbers = #tpu.dot_dimension_numbers<[1], [1], [0], [0], [0, 0, 1, 0], [], []>} : vector<8x8xbf16>, vector<8x8xbf16>, vector<8x8xf32> -> vector<8x8xf32>
    %cst_23 = arith.constant dense<0xFF800000> : vector<8xf32>
    %31 = vector.multi_reduction <maximumf>, %30, %cst_23 [1] : vector<8x8xf32> to vector<8xf32>
    %32 = vector.shape_cast %31 : vector<8xf32> to vector<8x1xf32>
    %33 = vector.broadcast %32 : vector<8x1xf32> to vector<8x8xf32>
    %34 = arith.subf %30, %33 : vector<8x8xf32>
    %35 = math.exp %34 : vector<8x8xf32>
    %cst_24 = arith.constant dense<0.000000e+00> : vector<8xf32>
    %36 = vector.multi_reduction <add>, %35, %cst_24 [1] : vector<8x8xf32> to vector<8xf32>
    %37 = vector.shape_cast %36 : vector<8xf32> to vector<8x1xf32>
    %38 = tpu.reciprocal %37 {approx = true} : vector<8x1xf32> -> vector<8x1xf32>
    %39 = vector.broadcast %38 : vector<8x1xf32> to vector<8x8xf32>
    %40 = arith.mulf %35, %39 : vector<8x8xf32>
    %41 = arith.truncf %40 : vector<8x8xf32> to vector<8x8xbf16>
    %cst_25 = arith.constant dense<0.000000e+00> : vector<8x8xf32>
    %42 = tpu.matmul %41, %29, %cst_25 {dimension_numbers = #tpu.dot_dimension_numbers<[1], [0], [0], [1], [0, 0, 1, 1], [], []>} : vector<8x8xbf16>, vector<8x8xbf16>, vector<8x8xf32> -> vector<8x8xf32>
    %43 = vector.extract_strided_slice %14 {offsets = [0, 8], sizes = [8, 8], strides = [1, 1]} : vector<8x32xbf16> to vector<8x8xbf16>
    %44 = vector.extract_strided_slice %20 {offsets = [0, 8], sizes = [8, 8], strides = [1, 1]} : vector<8x32xbf16> to vector<8x8xbf16>
    %45 = vector.extract_strided_slice %26 {offsets = [0, 8], sizes = [8, 8], strides = [1, 1]} : vector<8x32xbf16> to vector<8x8xbf16>
    %cst_26 = arith.constant dense<0.000000e+00> : vector<8x8xf32>
    %46 = tpu.matmul %43, %44, %cst_26 {dimension_numbers = #tpu.dot_dimension_numbers<[1], [1], [0], [0], [0, 0, 1, 0], [], []>} : vector<8x8xbf16>, vector<8x8xbf16>, vector<8x8xf32> -> vector<8x8xf32>
    %cst_27 = arith.constant dense<0xFF800000> : vector<8xf32>
    %47 = vector.multi_reduction <maximumf>, %46, %cst_27 [1] : vector<8x8xf32> to vector<8xf32>
    %48 = vector.shape_cast %47 : vector<8xf32> to vector<8x1xf32>
    %49 = vector.broadcast %48 : vector<8x1xf32> to vector<8x8xf32>
    %50 = arith.subf %46, %49 : vector<8x8xf32>
    %51 = math.exp %50 : vector<8x8xf32>
    %cst_28 = arith.constant dense<0.000000e+00> : vector<8xf32>
    %52 = vector.multi_reduction <add>, %51, %cst_28 [1] : vector<8x8xf32> to vector<8xf32>
    %53 = vector.shape_cast %52 : vector<8xf32> to vector<8x1xf32>
    %54 = tpu.reciprocal %53 {approx = true} : vector<8x1xf32> -> vector<8x1xf32>
    %55 = vector.broadcast %54 : vector<8x1xf32> to vector<8x8xf32>
    %56 = arith.mulf %51, %55 : vector<8x8xf32>
    %57 = arith.truncf %56 : vector<8x8xf32> to vector<8x8xbf16>
    %cst_29 = arith.constant dense<0.000000e+00> : vector<8x8xf32>
    %58 = tpu.matmul %57, %45, %cst_29 {dimension_numbers = #tpu.dot_dimension_numbers<[1], [0], [0], [1], [0, 0, 1, 1], [], []>} : vector<8x8xbf16>, vector<8x8xbf16>, vector<8x8xf32> -> vector<8x8xf32>
    %59 = vector.extract_strided_slice %14 {offsets = [0, 16], sizes = [8, 8], strides = [1, 1]} : vector<8x32xbf16> to vector<8x8xbf16>
    %60 = vector.extract_strided_slice %20 {offsets = [0, 16], sizes = [8, 8], strides = [1, 1]} : vector<8x32xbf16> to vector<8x8xbf16>
    %61 = vector.extract_strided_slice %26 {offsets = [0, 16], sizes = [8, 8], strides = [1, 1]} : vector<8x32xbf16> to vector<8x8xbf16>
    %cst_30 = arith.constant dense<0.000000e+00> : vector<8x8xf32>
    %62 = tpu.matmul %59, %60, %cst_30 {dimension_numbers = #tpu.dot_dimension_numbers<[1], [1], [0], [0], [0, 0, 1, 0], [], []>} : vector<8x8xbf16>, vector<8x8xbf16>, vector<8x8xf32> -> vector<8x8xf32>
    %cst_31 = arith.constant dense<0xFF800000> : vector<8xf32>
    %63 = vector.multi_reduction <maximumf>, %62, %cst_31 [1] : vector<8x8xf32> to vector<8xf32>
    %64 = vector.shape_cast %63 : vector<8xf32> to vector<8x1xf32>
    %65 = vector.broadcast %64 : vector<8x1xf32> to vector<8x8xf32>
    %66 = arith.subf %62, %65 : vector<8x8xf32>
    %67 = math.exp %66 : vector<8x8xf32>
    %cst_32 = arith.constant dense<0.000000e+00> : vector<8xf32>
    %68 = vector.multi_reduction <add>, %67, %cst_32 [1] : vector<8x8xf32> to vector<8xf32>
    %69 = vector.shape_cast %68 : vector<8xf32> to vector<8x1xf32>
    %70 = tpu.reciprocal %69 {approx = true} : vector<8x1xf32> -> vector<8x1xf32>
    %71 = vector.broadcast %70 : vector<8x1xf32> to vector<8x8xf32>
    %72 = arith.mulf %67, %71 : vector<8x8xf32>
    %73 = arith.truncf %72 : vector<8x8xf32> to vector<8x8xbf16>
    %cst_33 = arith.constant dense<0.000000e+00> : vector<8x8xf32>
    %74 = tpu.matmul %73, %61, %cst_33 {dimension_numbers = #tpu.dot_dimension_numbers<[1], [0], [0], [1], [0, 0, 1, 1], [], []>} : vector<8x8xbf16>, vector<8x8xbf16>, vector<8x8xf32> -> vector<8x8xf32>
    %75 = vector.extract_strided_slice %14 {offsets = [0, 24], sizes = [8, 8], strides = [1, 1]} : vector<8x32xbf16> to vector<8x8xbf16>
    %76 = vector.extract_strided_slice %20 {offsets = [0, 24], sizes = [8, 8], strides = [1, 1]} : vector<8x32xbf16> to vector<8x8xbf16>
    %77 = vector.extract_strided_slice %26 {offsets = [0, 24], sizes = [8, 8], strides = [1, 1]} : vector<8x32xbf16> to vector<8x8xbf16>
    %cst_34 = arith.constant dense<0.000000e+00> : vector<8x8xf32>
    %78 = tpu.matmul %75, %76, %cst_34 {dimension_numbers = #tpu.dot_dimension_numbers<[1], [1], [0], [0], [0, 0, 1, 0], [], []>} : vector<8x8xbf16>, vector<8x8xbf16>, vector<8x8xf32> -> vector<8x8xf32>
    %cst_35 = arith.constant dense<0xFF800000> : vector<8xf32>
    %79 = vector.multi_reduction <maximumf>, %78, %cst_35 [1] : vector<8x8xf32> to vector<8xf32>
    %80 = vector.shape_cast %79 : vector<8xf32> to vector<8x1xf32>
    %81 = vector.broadcast %80 : vector<8x1xf32> to vector<8x8xf32>
    %82 = arith.subf %78, %81 : vector<8x8xf32>
    %83 = math.exp %82 : vector<8x8xf32>
    %cst_36 = arith.constant dense<0.000000e+00> : vector<8xf32>
    %84 = vector.multi_reduction <add>, %83, %cst_36 [1] : vector<8x8xf32> to vector<8xf32>
    %85 = vector.shape_cast %84 : vector<8xf32> to vector<8x1xf32>
    %86 = tpu.reciprocal %85 {approx = true} : vector<8x1xf32> -> vector<8x1xf32>
    %87 = vector.broadcast %86 : vector<8x1xf32> to vector<8x8xf32>
    %88 = arith.mulf %83, %87 : vector<8x8xf32>
    %89 = arith.truncf %88 : vector<8x8xf32> to vector<8x8xbf16>
    %cst_37 = arith.constant dense<0.000000e+00> : vector<8x8xf32>
    %90 = tpu.matmul %89, %77, %cst_37 {dimension_numbers = #tpu.dot_dimension_numbers<[1], [0], [0], [1], [0, 0, 1, 1], [], []>} : vector<8x8xbf16>, vector<8x8xbf16>, vector<8x8xf32> -> vector<8x8xf32>
    %91 = tpu.concatenate %42, %58, %74, %90 in 1 : vector<8x8xf32>, vector<8x8xf32>, vector<8x8xf32>, vector<8x8xf32> -> vector<8x32xf32>
    %92 = arith.truncf %91 : vector<8x32xf32> to vector<8x32xbf16>
    %c0_38 = arith.constant 0 : index
    %c0_39 = arith.constant 0 : index
    %93 = vector.load %arg11[%c0_38, %c0_39] : memref<32x32xbf16, #tpu.memory_space<vmem>>, vector<32x32xbf16>
    %cst_40 = arith.constant dense<0.000000e+00> : vector<8x32xf32>
    %94 = tpu.matmul %92, %93, %cst_40 {dimension_numbers = #tpu.dot_dimension_numbers<[1], [0], [0], [1], [0, 0, 1, 1], [], []>} : vector<8x32xbf16>, vector<32x32xbf16>, vector<8x32xf32> -> vector<8x32xf32>
    %c0_41 = arith.constant 0 : index
    %c0_42 = arith.constant 0 : index
    %95 = vector.load %arg12[%c0_41, %c0_42] : memref<1x32xf32, #tpu.memory_space<vmem>>, vector<1x32xf32>
    %96 = vector.broadcast %95 : vector<1x32xf32> to vector<8x32xf32>
    %97 = arith.addf %94, %96 : vector<8x32xf32>
    %98 = arith.addf %1, %97 : vector<8x32xf32>
    %cst_43 = arith.constant dense<0.000000e+00> : vector<8xf32>
    %99 = vector.multi_reduction <add>, %98, %cst_43 [1] : vector<8x32xf32> to vector<8xf32>
    %100 = vector.shape_cast %99 : vector<8xf32> to vector<8x1xf32>
    %cst_44 = arith.constant 3.200000e+01 : f32
    %101 = vector.broadcast %cst_44 : f32 to vector<8x1xf32>
    %102 = arith.divf %100, %101 : vector<8x1xf32>
    %103 = vector.broadcast %102 : vector<8x1xf32> to vector<8x32xf32>
    %104 = arith.subf %98, %103 : vector<8x32xf32>
    %105 = arith.mulf %104, %104 : vector<8x32xf32>
    %cst_45 = arith.constant dense<0.000000e+00> : vector<8xf32>
    %106 = vector.multi_reduction <add>, %105, %cst_45 [1] : vector<8x32xf32> to vector<8xf32>
    %107 = vector.shape_cast %106 : vector<8xf32> to vector<8x1xf32>
    %cst_46 = arith.constant 3.200000e+01 : f32
    %108 = vector.broadcast %cst_46 : f32 to vector<8x1xf32>
    %109 = arith.divf %107, %108 : vector<8x1xf32>
    %110 = vector.broadcast %102 : vector<8x1xf32> to vector<8x32xf32>
    %111 = arith.subf %98, %110 : vector<8x32xf32>
    %cst_47 = arith.constant 9.99999974E-6 : f32
    %112 = vector.broadcast %cst_47 : f32 to vector<8x1xf32>
    %113 = arith.addf %109, %112 : vector<8x1xf32>
    %114 = math.rsqrt %113 : vector<8x1xf32>
    %115 = vector.broadcast %114 : vector<8x1xf32> to vector<8x32xf32>
    %116 = arith.mulf %111, %115 : vector<8x32xf32>
    %c0_48 = arith.constant 0 : index
    %c0_49 = arith.constant 0 : index
    %117 = vector.load %arg13[%c0_48, %c0_49] : memref<1x32xf32, #tpu.memory_space<vmem>>, vector<1x32xf32>
    %118 = vector.broadcast %117 : vector<1x32xf32> to vector<8x32xf32>
    %119 = arith.mulf %116, %118 : vector<8x32xf32>
    %c0_50 = arith.constant 0 : index
    %c0_51 = arith.constant 0 : index
    %120 = vector.load %arg14[%c0_50, %c0_51] : memref<1x32xf32, #tpu.memory_space<vmem>>, vector<1x32xf32>
    %121 = vector.broadcast %120 : vector<1x32xf32> to vector<8x32xf32>
    %122 = arith.addf %119, %121 : vector<8x32xf32>
    %123 = arith.addf %1, %122 : vector<8x32xf32>
    %cst_52 = arith.constant dense<0.000000e+00> : vector<8xf32>
    %124 = vector.multi_reduction <add>, %123, %cst_52 [1] : vector<8x32xf32> to vector<8xf32>
    %125 = vector.shape_cast %124 : vector<8xf32> to vector<8x1xf32>
    %cst_53 = arith.constant 3.200000e+01 : f32
    %126 = vector.broadcast %cst_53 : f32 to vector<8x1xf32>
    %127 = arith.divf %125, %126 : vector<8x1xf32>
    %128 = vector.broadcast %127 : vector<8x1xf32> to vector<8x32xf32>
    %129 = arith.subf %123, %128 : vector<8x32xf32>
    %130 = arith.mulf %129, %129 : vector<8x32xf32>
    %cst_54 = arith.constant dense<0.000000e+00> : vector<8xf32>
    %131 = vector.multi_reduction <add>, %130, %cst_54 [1] : vector<8x32xf32> to vector<8xf32>
    %132 = vector.shape_cast %131 : vector<8xf32> to vector<8x1xf32>
    %cst_55 = arith.constant 3.200000e+01 : f32
    %133 = vector.broadcast %cst_55 : f32 to vector<8x1xf32>
    %134 = arith.divf %132, %133 : vector<8x1xf32>
    %135 = vector.broadcast %127 : vector<8x1xf32> to vector<8x32xf32>
    %136 = arith.subf %123, %135 : vector<8x32xf32>
    %cst_56 = arith.constant 9.99999974E-6 : f32
    %137 = vector.broadcast %cst_56 : f32 to vector<8x1xf32>
    %138 = arith.addf %134, %137 : vector<8x1xf32>
    %139 = math.rsqrt %138 : vector<8x1xf32>
    %140 = vector.broadcast %139 : vector<8x1xf32> to vector<8x32xf32>
    %141 = arith.mulf %136, %140 : vector<8x32xf32>
    %c0_57 = arith.constant 0 : index
    %c0_58 = arith.constant 0 : index
    %142 = vector.load %arg15[%c0_57, %c0_58] : memref<1x32xf32, #tpu.memory_space<vmem>>, vector<1x32xf32>
    %143 = vector.broadcast %142 : vector<1x32xf32> to vector<8x32xf32>
    %144 = arith.mulf %141, %143 : vector<8x32xf32>
    %c0_59 = arith.constant 0 : index
    %c0_60 = arith.constant 0 : index
    %145 = vector.load %arg16[%c0_59, %c0_60] : memref<1x32xf32, #tpu.memory_space<vmem>>, vector<1x32xf32>
    %146 = vector.broadcast %145 : vector<1x32xf32> to vector<8x32xf32>
    %147 = arith.addf %144, %146 : vector<8x32xf32>
    %148 = arith.truncf %147 : vector<8x32xf32> to vector<8x32xbf16>
    %cst_61 = arith.constant 0.000000e+00 : f32
    %149 = vector.broadcast %cst_61 : f32 to vector<8x32xf32>
    %c0_62 = arith.constant 0 : index
    %c0_63 = arith.constant 0 : index
    %150 = vector.load %arg17[%c0_62, %c0_63] : memref<32x64xbf16, #tpu.memory_space<vmem>>, vector<32x64xbf16>
    %cst_64 = arith.constant dense<0.000000e+00> : vector<8x64xf32>
    %151 = tpu.matmul %148, %150, %cst_64 {dimension_numbers = #tpu.dot_dimension_numbers<[1], [0], [0], [1], [0, 0, 1, 1], [], []>} : vector<8x32xbf16>, vector<32x64xbf16>, vector<8x64xf32> -> vector<8x64xf32>
    %c0_65 = arith.constant 0 : index
    %c0_66 = arith.constant 0 : index
    %152 = vector.load %arg18[%c0_65, %c0_66] : memref<1x64xf32, #tpu.memory_space<vmem>>, vector<1x64xf32>
    %153 = vector.broadcast %152 : vector<1x64xf32> to vector<8x64xf32>
    %154 = arith.addf %151, %153 : vector<8x64xf32>
    %cst_67 = arith.constant 0.000000e+00 : f32
    %155 = vector.broadcast %cst_67 : f32 to vector<8x64xf32>
    %156 = arith.maximumf %154, %155 : vector<8x64xf32>
    %157 = arith.truncf %156 : vector<8x64xf32> to vector<8x64xbf16>
    %c0_68 = arith.constant 0 : index
    %c0_69 = arith.constant 0 : index
    %158 = vector.load %arg19[%c0_68, %c0_69] : memref<64x32xbf16, #tpu.memory_space<vmem>>, vector<64x32xbf16>
    %cst_70 = arith.constant dense<0.000000e+00> : vector<8x32xf32>
    %159 = tpu.matmul %157, %158, %cst_70 {dimension_numbers = #tpu.dot_dimension_numbers<[1], [0], [0], [1], [0, 0, 1, 1], [], []>} : vector<8x64xbf16>, vector<64x32xbf16>, vector<8x32xf32> -> vector<8x32xf32>
    %160 = arith.addf %149, %159 : vector<8x32xf32>
    %c0_71 = arith.constant 0 : index
    %c0_72 = arith.constant 0 : index
    %161 = vector.load %arg20[%c0_71, %c0_72] : memref<1x32xf32, #tpu.memory_space<vmem>>, vector<1x32xf32>
    %162 = vector.broadcast %161 : vector<1x32xf32> to vector<8x32xf32>
    %163 = arith.addf %160, %162 : vector<8x32xf32>
    %164 = arith.addf %147, %163 : vector<8x32xf32>
    %cst_73 = arith.constant dense<0.000000e+00> : vector<8xf32>
    %165 = vector.multi_reduction <add>, %164, %cst_73 [1] : vector<8x32xf32> to vector<8xf32>
    %166 = vector.shape_cast %165 : vector<8xf32> to vector<8x1xf32>
    %cst_74 = arith.constant 3.200000e+01 : f32
    %167 = vector.broadcast %cst_74 : f32 to vector<8x1xf32>
    %168 = arith.divf %166, %167 : vector<8x1xf32>
    %169 = vector.broadcast %168 : vector<8x1xf32> to vector<8x32xf32>
    %170 = arith.subf %164, %169 : vector<8x32xf32>
    %171 = arith.mulf %170, %170 : vector<8x32xf32>
    %cst_75 = arith.constant dense<0.000000e+00> : vector<8xf32>
    %172 = vector.multi_reduction <add>, %171, %cst_75 [1] : vector<8x32xf32> to vector<8xf32>
    %173 = vector.shape_cast %172 : vector<8xf32> to vector<8x1xf32>
    %cst_76 = arith.constant 3.200000e+01 : f32
    %174 = vector.broadcast %cst_76 : f32 to vector<8x1xf32>
    %175 = arith.divf %173, %174 : vector<8x1xf32>
    %176 = vector.broadcast %168 : vector<8x1xf32> to vector<8x32xf32>
    %177 = arith.subf %164, %176 : vector<8x32xf32>
    %cst_77 = arith.constant 9.99999974E-6 : f32
    %178 = vector.broadcast %cst_77 : f32 to vector<8x1xf32>
    %179 = arith.addf %175, %178 : vector<8x1xf32>
    %180 = math.rsqrt %179 : vector<8x1xf32>
    %181 = vector.broadcast %180 : vector<8x1xf32> to vector<8x32xf32>
    %182 = arith.mulf %177, %181 : vector<8x32xf32>
    %c0_78 = arith.constant 0 : index
    %c0_79 = arith.constant 0 : index
    %183 = vector.load %arg21[%c0_78, %c0_79] : memref<1x32xf32, #tpu.memory_space<vmem>>, vector<1x32xf32>
    %184 = vector.broadcast %183 : vector<1x32xf32> to vector<8x32xf32>
    %185 = arith.mulf %182, %184 : vector<8x32xf32>
    %c0_80 = arith.constant 0 : index
    %c0_81 = arith.constant 0 : index
    %186 = vector.load %arg22[%c0_80, %c0_81] : memref<1x32xf32, #tpu.memory_space<vmem>>, vector<1x32xf32>
    %187 = vector.broadcast %186 : vector<1x32xf32> to vector<8x32xf32>
    %188 = arith.addf %185, %187 : vector<8x32xf32>
    %c0_82 = arith.constant 0 : index
    %c0_83 = arith.constant 0 : index
    %c0_84 = arith.constant 0 : index
    %189 = vector.load %arg23[%c0_82, %c0_83, %c0_84] : memref<1x8x32xf32, #tpu.memory_space<vmem>>, vector<1x8x32xf32>
    %190 = vector.shape_cast %189 : vector<1x8x32xf32> to vector<8x32xf32>
    %191 = vector.shape_cast %188 : vector<8x32xf32> to vector<1x8x32xf32>
    tpu.vector_store %arg23[%c0_82, %c0_83, %c0_84], %191 {strides = array<i32>} : memref<1x8x32xf32, #tpu.memory_space<vmem>>, vector<1x8x32xf32>,
    return
  }
  func.func @transform_0(%arg0: i32, %arg1: i32) -> (i32, i32, i32) {
    %c0_i32 = arith.constant 0 : i32
    %c0_i32_0 = arith.constant 0 : i32
    return %arg0, %arg1, %c0_i32 : i32, i32, i32
  }
  func.func @transform_1(%arg0: i32, %arg1: i32) -> (i32, i32, i32) {
    %c0_i32 = arith.constant 0 : i32
    %c0_i32_0 = arith.constant 0 : i32
    %c0_i32_1 = arith.constant 0 : i32
    return %arg0, %c0_i32, %c0_i32_0 : i32, i32, i32
  }
  func.func @transform_2(%arg0: i32, %arg1: i32) -> (i32, i32, i32) {
    %c0_i32 = arith.constant 0 : i32
    %c0_i32_0 = arith.constant 0 : i32
    %c0_i32_1 = arith.constant 0 : i32
    return %arg0, %c0_i32, %c0_i32_0 : i32, i32, i32
  }
  func.func @transform_3(%arg0: i32, %arg1: i32) -> (i32, i32) {
    %c0_i32 = arith.constant 0 : i32
    %c0_i32_0 = arith.constant 0 : i32
    %c0_i32_1 = arith.constant 0 : i32
    return %c0_i32, %c0_i32_0 : i32, i32
  }
  func.func @transform_4(%arg0: i32, %arg1: i32) -> (i32, i32) {
    %c0_i32 = arith.constant 0 : i32
    %c0_i32_0 = arith.constant 0 : i32
    %c0_i32_1 = arith.constant 0 : i32
    return %c0_i32, %c0_i32_0 : i32, i32
  }
  func.func @transform_5(%arg0: i32, %arg1: i32) -> (i32, i32) {
    %c0_i32 = arith.constant 0 : i32
    %c0_i32_0 = arith.constant 0 : i32
    %c0_i32_1 = arith.constant 0 : i32
    return %c0_i32, %c0_i32_0 : i32, i32
  }
  func.func @transform_6(%arg0: i32, %arg1: i32) -> (i32, i32) {
    %c0_i32 = arith.constant 0 : i32
    %c0_i32_0 = arith.constant 0 : i32
    %c0_i32_1 = arith.constant 0 : i32
    return %c0_i32, %c0_i32_0 : i32, i32
  }
  func.func @transform_7(%arg0: i32, %arg1: i32) -> (i32, i32) {
    %c0_i32 = arith.constant 0 : i32
    %c0_i32_0 = arith.constant 0 : i32
    %c0_i32_1 = arith.constant 0 : i32
    return %c0_i32, %c0_i32_0 : i32, i32
  }
  func.func @transform_8(%arg0: i32, %arg1: i32) -> (i32, i32) {
    %c0_i32 = arith.constant 0 : i32
    %c0_i32_0 = arith.constant 0 : i32
    %c0_i32_1 = arith.constant 0 : i32
    return %c0_i32, %c0_i32_0 : i32, i32
  }
  func.func @transform_9(%arg0: i32, %arg1: i32) -> (i32, i32) {
    %c0_i32 = arith.constant 0 : i32
    %c0_i32_0 = arith.constant 0 : i32
    %c0_i32_1 = arith.constant 0 : i32
    return %c0_i32, %c0_i32_0 : i32, i32
  }
  func.func @transform_10(%arg0: i32, %arg1: i32) -> (i32, i32) {
    %c0_i32 = arith.constant 0 : i32
    %c0_i32_0 = arith.constant 0 : i32
    %c0_i32_1 = arith.constant 0 : i32
    return %c0_i32, %c0_i32_0 : i32, i32
  }
  func.func @transform_11(%arg0: i32, %arg1: i32) -> (i32, i32) {
    %c0_i32 = arith.constant 0 : i32
    %c0_i32_0 = arith.constant 0 : i32
    %c0_i32_1 = arith.constant 0 : i32
    return %c0_i32, %c0_i32_0 : i32, i32
  }
  func.func @transform_12(%arg0: i32, %arg1: i32) -> (i32, i32) {
    %c0_i32 = arith.constant 0 : i32
    %c0_i32_0 = arith.constant 0 : i32
    %c0_i32_1 = arith.constant 0 : i32
    return %c0_i32, %c0_i32_0 : i32, i32
  }
  func.func @transform_13(%arg0: i32, %arg1: i32) -> (i32, i32) {
    %c0_i32 = arith.constant 0 : i32
    %c0_i32_0 = arith.constant 0 : i32
    %c0_i32_1 = arith.constant 0 : i32
    return %c0_i32, %c0_i32_0 : i32, i32
  }
  func.func @transform_14(%arg0: i32, %arg1: i32) -> (i32, i32) {
    %c0_i32 = arith.constant 0 : i32
    %c0_i32_0 = arith.constant 0 : i32
    %c0_i32_1 = arith.constant 0 : i32
    return %c0_i32, %c0_i32_0 : i32, i32
  }
  func.func @transform_15(%arg0: i32, %arg1: i32) -> (i32, i32) {
    %c0_i32 = arith.constant 0 : i32
    %c0_i32_0 = arith.constant 0 : i32
    %c0_i32_1 = arith.constant 0 : i32
    return %c0_i32, %c0_i32_0 : i32, i32
  }
  func.func @transform_16(%arg0: i32, %arg1: i32) -> (i32, i32) {
    %c0_i32 = arith.constant 0 : i32
    %c0_i32_0 = arith.constant 0 : i32
    %c0_i32_1 = arith.constant 0 : i32
    return %c0_i32, %c0_i32_0 : i32, i32
  }
  func.func @transform_17(%arg0: i32, %arg1: i32) -> (i32, i32) {
    %c0_i32 = arith.constant 0 : i32
    %c0_i32_0 = arith.constant 0 : i32
    %c0_i32_1 = arith.constant 0 : i32
    return %c0_i32, %c0_i32_0 : i32, i32
  }
  func.func @transform_18(%arg0: i32, %arg1: i32) -> (i32, i32) {
    %c0_i32 = arith.constant 0 : i32
    %c0_i32_0 = arith.constant 0 : i32
    %c0_i32_1 = arith.constant 0 : i32
    return %c0_i32, %c0_i32_0 : i32, i32
  }
  func.func @transform_19(%arg0: i32, %arg1: i32) -> (i32, i32) {
    %c0_i32 = arith.constant 0 : i32
    %c0_i32_0 = arith.constant 0 : i32
    %c0_i32_1 = arith.constant 0 : i32
    return %c0_i32, %c0_i32_0 : i32, i32
  }
  func.func @transform_20(%arg0: i32, %arg1: i32) -> (i32, i32) {
    %c0_i32 = arith.constant 0 : i32
    %c0_i32_0 = arith.constant 0 : i32
    %c0_i32_1 = arith.constant 0 : i32
    return %c0_i32, %c0_i32_0 : i32, i32
  }
  func.func @transform_21(%arg0: i32, %arg1: i32) -> (i32, i32, i32) {
    %c0_i32 = arith.constant 0 : i32
    %c0_i32_0 = arith.constant 0 : i32
    return %arg0, %arg1, %c0_i32 : i32, i32, i32
  }
}

</mosaic_0001>

<llo_original>
// kernel: tpu_custom_call.1
$region0: #{tpu_custom_call.1}
  #allocation0 [shape = 'u32[]', space=smem, size = 0x4, offset = 0x4, fixed_abs, tag = 'smem constant byte address 0x4 - core index']
  #allocation1 [shape = 'u32[144,128]{1,0:T(1,128)}', space=vmem, size = 0x12000, scoped, tag = 'internal scratch']
  %s0 = inlined_call_operand.hbm [shape: f32[2,8,32], index: 0, kind: input, shape index: {}]
  %s1 = inlined_call_operand.hbm [shape: f32[2,8,32], index: 1, kind: input, shape index: {}]
  %s2 = inlined_call_operand.hbm [shape: f32[2,8,32], index: 2, kind: input, shape index: {}]
  %s3 = inlined_call_operand.hbm [shape: bf16[32,32], index: 3, kind: input, shape index: {}]
  %s4 = inlined_call_operand.hbm [shape: f32[1,32], index: 4, kind: input, shape index: {}]
  %s5 = inlined_call_operand.hbm [shape: bf16[32,32], index: 5, kind: input, shape index: {}]
  %s6 = inlined_call_operand.hbm [shape: f32[1,32], index: 6, kind: input, shape index: {}]
  %s7 = inlined_call_operand.hbm [shape: bf16[32,32], index: 7, kind: input, shape index: {}]
  %s8 = inlined_call_operand.hbm [shape: f32[1,32], index: 8, kind: input, shape index: {}]
  %s9 = inlined_call_operand.hbm [shape: bf16[32,32], index: 9, kind: input, shape index: {}]
  %s10 = inlined_call_operand.hbm [shape: f32[1,32], index: 10, kind: input, shape index: {}]
  %s11 = inlined_call_operand.hbm [shape: f32[1,32], index: 11, kind: input, shape index: {}]
  %s12 = inlined_call_operand.hbm [shape: f32[1,32], index: 12, kind: input, shape index: {}]
  %s13 = inlined_call_operand.hbm [shape: f32[1,32], index: 13, kind: input, shape index: {}]
  %s14 = inlined_call_operand.hbm [shape: f32[1,32], index: 14, kind: input, shape index: {}]
  %s15 = inlined_call_operand.hbm [shape: bf16[32,64], index: 15, kind: input, shape index: {}]
  %s16 = inlined_call_operand.hbm [shape: f32[1,64], index: 16, kind: input, shape index: {}]
  %s17 = inlined_call_operand.hbm [shape: bf16[64,32], index: 17, kind: input, shape index: {}]
  %s18 = inlined_call_operand.hbm [shape: f32[1,32], index: 18, kind: input, shape index: {}]
  %s19 = inlined_call_operand.hbm [shape: f32[1,32], index: 19, kind: input, shape index: {}]
  %s20 = inlined_call_operand.hbm [shape: f32[1,32], index: 20, kind: input, shape index: {}]
  %s21 = inlined_call_operand.hbm [shape: f32[2,8,32], index: 21, kind: output, shape index: {}]
  %s22 = sld [smem:[#allocation0]]
  $region201: #{tpu_custom_call.1} parent=0
    _
  %s24 = ssub.s32 1, %s22
  %s25 = scalar_select 0, %s24, %s22
  $region1: #{tpu_custom_call.1} parent=0
    #allocation2 [shape = 'u8[8192]{0}', space=vmem, size = 0x2000, scoped, tag = 'input window, operand 0']
    #allocation3 [shape = 's32[2]{0}', space=sflag, size = 0x8, scoped, tag = 'scoped memory for tpu_custom_call.1']
    #allocation4 [shape = 's32[2]{0}', space=sflag, size = 0x8, scoped, tag = 'scoped memory for tpu_custom_call.1']
    #allocation5 [shape = 'u8[8192]{0}', space=vmem, size = 0x2000, scoped, tag = 'input window, operand 1']
    #allocation6 [shape = 's32[2]{0}', space=sflag, size = 0x8, scoped, tag = 'scoped memory for tpu_custom_call.1']
    #allocation7 [shape = 'u8[8192]{0}', space=vmem, size = 0x2000, scoped, tag = 'input window, operand 2']
    #allocation8 [shape = 'u8[8192]{0}', space=vmem, size = 0x2000, scoped, tag = 'input window, operand 3, single buffered']
    #allocation9 [shape = 's32[1]{0}', space=sflag, size = 0x4, scoped, tag = 'scoped memory for tpu_custom_call.1']
    #allocation10 [shape = 'u8[512]{0}', space=vmem, size = 0x400, scoped, tag = 'input window, operand 4, single buffered']
    #allocation11 [shape = 'u8[8192]{0}', space=vmem, size = 0x2000, scoped, tag = 'input window, operand 5, single buffered']
    #allocation12 [shape = 's32[1]{0}', space=sflag, size = 0x4, scoped, tag = 'scoped memory for tpu_custom_call.1']
    #allocation13 [shape = 'u8[512]{0}', space=vmem, size = 0x400, scoped, tag = 'input window, operand 6, single buffered']
    #allocation14 [shape = 'u8[8192]{0}', space=vmem, size = 0x2000, scoped, tag = 'input window, operand 7, single buffered']
    #allocation15 [shape = 's32[1]{0}', space=sflag, size = 0x4, scoped, tag = 'scoped memory for tpu_custom_call.1']
    #allocation16 [shape = 'u8[512]{0}', space=vmem, size = 0x400, scoped, tag = 'input window, operand 8, single buffered']
    #allocation17 [shape = 'u8[8192]{0}', space=vmem, size = 0x2000, scoped, tag = 'input window, operand 9, single buffered']
    #allocation18 [shape = 's32[1]{0}', space=sflag, size = 0x4, scoped, tag = 'scoped memory for tpu_custom_call.1']
    #allocation19 [shape = 'u8[512]{0}', space=vmem, size = 0x400, scoped, tag = 'input window, operand 10, single buffered']
    #allocation20 [shape = 'u8[512]{0}', space=vmem, size = 0x400, scoped, tag = 'input window, operand 11, single buffered']
    #allocation21 [shape = 's32[1]{0}', space=sflag, size = 0x4, scoped, tag = 'scoped memory for tpu_custom_call.1']
    #allocation22 [shape = 'u8[512]{0}', space=vmem, size = 0x400, scoped, tag = 'input window, operand 12, single buffered']
    #allocation23 [shape = 'u8[512]{0}', space=vmem, size = 0x400, scoped, tag = 'input window, operand 13, single buffered']
    #allocation24 [shape = 's32[1]{0}', space=sflag, size = 0x4, scoped, tag = 'scoped memory for tpu_custom_call.1']
    #allocation25 [shape = 'u8[512]{0}', space=vmem, size = 0x400, scoped, tag = 'input window, operand 14, single buffered']
    #allocation26 [shape = 'u8[8192]{0}', space=vmem, size = 0x2000, scoped, tag = 'input window, operand 15, single buffered']
    #allocation27 [shape = 's32[1]{0}', space=sflag, size = 0x4, scoped, tag = 'scoped memory for tpu_custom_call.1']
    #allocation28 [shape = 'u8[512]{0}', space=vmem, size = 0x400, scoped, tag = 'input window, operand 16, single buffered']
    #allocation29 [shape = 'u8[16384]{0}', space=vmem, size = 0x4000, scoped, tag = 'input window, operand 17, single buffered']
    #allocation30 [shape = 's32[1]{0}', space=sflag, size = 0x4, scoped, tag = 'scoped memory for tpu_custom_call.1']
    #allocation31 [shape = 'u8[512]{0}', space=vmem, size = 0x400, scoped, tag = 'input window, operand 18, single buffered']
    #allocation32 [shape = 'u8[512]{0}', space=vmem, size = 0x400, scoped, tag = 'input window, operand 19, single buffered']
    #allocation33 [shape = 's32[1]{0}', space=sflag, size = 0x4, scoped, tag = 'scoped memory for tpu_custom_call.1']
    #allocation34 [shape = 'u8[512]{0}', space=vmem, size = 0x400, scoped, tag = 'input window, operand 20, single buffered']
    #allocation35 [shape = 'u8[8192]{0}', space=vmem, size = 0x2000, scoped, tag = 'output window, operand 0']
    %26 = vsyncpa [#allocation3], 0
    %s27 = scalar_lea.sflag [#allocation3], 1
    %28 = vsyncpa %s27, 0
    %29 = vsyncpa [#allocation6], 0
    %s30 = scalar_lea.sflag [#allocation6], 1
    %31 = vsyncpa %s30, 0
    %32 = vsyncpa [#allocation9], 0
    %33 = vsyncpa [#allocation12], 0
    %34 = vsyncpa [#allocation15], 0
    %35 = vsyncpa [#allocation18], 0
    %36 = vsyncpa [#allocation21], 0
    %37 = vsyncpa [#allocation24], 0
    %38 = vsyncpa [#allocation27], 0
    %39 = vsyncpa [#allocation30], 0
    %40 = vsyncpa [#allocation33], 0
    %41 = vsyncpa [#allocation4], 0
    %s42 = scalar_lea.sflag [#allocation4], 1
    %43 = vsyncpa %s42, 0
    loop: start=0, step=1, limit=4
    $region2: #{tpu_custom_call.1} parent=1 // loop_pre_header
      _
    $region3: #{tpu_custom_call.1} parent=1 // loop_header
      %s45 = sphi 0, %s49
      %p46 = scmp.ge.s32.totalorder %s45, 4
      %s52 = sphi 0, %s64
      %s53 = sphi 0, %s60
      %s54 = sphi 0, %s52
      %s55 = sphi 0, %s53
      %s56 = sphi 0, %s54
      %s57 = sphi 0, %s55
      %s69 = sphi 0, %s71
      %s72 = sphi 0, %s69
      %s73 = sphi 0, %s72
      %s89 = sphi 0, %s73
      %s95 = sphi 0, %s97
      %s98 = sphi 0, %s95
      %s99 = sphi 0, %s98
      %s115 = sphi 0, %s99
      %s121 = sphi 0, %s123
      %s124 = sphi 0, %s121
      %s125 = sphi 0, %s124
      %s141 = sphi 0, %s125
      %s145 = sphi 0, %s145
      %s147 = sphi 0, %s145
      %s148 = sphi 0, %s147
      %s162 = sphi 0, %s148
      %s166 = sphi 0, %s166
      %s168 = sphi 0, %s166
      %s169 = sphi 0, %s168
      %s183 = sphi 0, %s169
      %s187 = sphi 0, %s187
      %s189 = sphi 0, %s187
      %s190 = sphi 0, %s189
      %s204 = sphi 0, %s190
      %s208 = sphi 0, %s208
      %s210 = sphi 0, %s208
      %s211 = sphi 0, %s210
      %s225 = sphi 0, %s211
      %s229 = sphi 0, %s229
      %s231 = sphi 0, %s229
      %s232 = sphi 0, %s231
      %s246 = sphi 0, %s232
      %s250 = sphi 0, %s250
      %s252 = sphi 0, %s250
      %s253 = sphi 0, %s252
      %s267 = sphi 0, %s253
      %s271 = sphi 0, %s271
      %s273 = sphi 0, %s271
      %s274 = sphi 0, %s273
      %s288 = sphi 0, %s274
      %s292 = sphi 0, %s292
      %s294 = sphi 0, %s292
      %s295 = sphi 0, %s294
      %s309 = sphi 0, %s295
      %s313 = sphi 0, %s313
      %s315 = sphi 0, %s313
      %s316 = sphi 0, %s315
      %s330 = sphi 0, %s316
      %s334 = sphi 0, %s334
      %s336 = sphi 0, %s334
      %s337 = sphi 0, %s336
      %s351 = sphi 0, %s337
      %s355 = sphi 0, %s355
      %s357 = sphi 0, %s355
      %s358 = sphi 0, %s357
      %s372 = sphi 0, %s358
      %s376 = sphi 0, %s376
      %s378 = sphi 0, %s376
      %s379 = sphi 0, %s378
      %s393 = sphi 0, %s379
      %s397 = sphi 0, %s397
      %s399 = sphi 0, %s397
      %s400 = sphi 0, %s399
      %s414 = sphi 0, %s400
      %s418 = sphi 0, %s418
      %s420 = sphi 0, %s418
      %s421 = sphi 0, %s420
      %s435 = sphi 0, %s421
      %s439 = sphi 0, %s439
      %s441 = sphi 0, %s439
      %s442 = sphi 0, %s441
      %s456 = sphi 0, %s442
      %s460 = sphi 0, %s460
      %s462 = sphi 0, %s460
      %s463 = sphi 0, %s462
      %s477 = sphi 0, %s463
      %s481 = sphi 0, %s481
      %s483 = sphi 0, %s481
      %s484 = sphi 0, %s483
      %s498 = sphi 0, %s484
      %s502 = sphi 0, %s502
      %s504 = sphi 0, %s502
      %s505 = sphi 0, %s504
      %s519 = sphi 0, %s505
      %s527 = sphi 0, %s529
      %s530 = sphi 0, %s527
      %s531 = sphi 0, %s530
      %s547 = sphi 0, %s531
    $region4: #{tpu_custom_call.1} parent=1 // loop_header_branch
      %48 = sbr.rel (%p46) target = $region8
    $region5: #{tpu_custom_call.1} parent=1 // loop_body
      %s50 = ssub.s32 %s45, 1
      %s51 = ssub.s32 %s45, 2
      %s58 = sadd.s32 1, %s53
      %p59 = scmp.ge.s32.totalorder %s58, 1
      %s60 = scalar_select %p59, 0, %s58
      %s61 = sadd.s32 1, %s52
      %s62 = scalar_select %p59, %s61, %s52
      %p63 = scmp.ge.s32.totalorder %s62, 2
      %s64 = scalar_select %p63, 0, %s62
      %s65 = ssub.s32 %s52, %s64
      %s66 = ssub.s32 %s53, %s60
      %s67 = sor.u32 %s65, %s66
      %p68 = scmp.eq.s32.totalorder %s67, 0
      %s70 = sadd.s32 %s69, 1
      %s71 = scalar_select %p68, %s69, %s70
      %p74 = pneg %p68
      %p75 = scmp.eq.s32.totalorder %s45, 1
      %p76 = por %p74, %p75
      %p77 = scmp.ne.s32.totalorder %s69, %s72
      %p78 = scmp.eq.s32.totalorder %s45, 0
      %p79 = por %p77, %p78
      %p80 = scmp.ne.s32.totalorder %s69, %s72
      %p81 = scmp.eq.s32.totalorder %s50, 1
      %p82 = por %p80, %p81
      %p83 = scmp.ne.s32.totalorder %s72, %s73
      %p84 = scmp.eq.s32.totalorder %s50, 0
      %p85 = por %p83, %p84
      %p86 = scmp.ne.s32.totalorder %s72, %s73
      %p87 = scmp.eq.s32.totalorder %s51, 1
      %p88 = por %p86, %p87
      %p90 = scmp.ne.s32.totalorder %s73, %s89
      %p91 = scmp.eq.s32.totalorder %s51, 0
      %p92 = por %p90, %p91
      %s93 = ssub.s32 %s52, %s64
      %p94 = scmp.eq.s32.totalorder %s93, 0
      %s96 = sadd.s32 %s95, 1
      %s97 = scalar_select %p94, %s95, %s96
      %p100 = pneg %p94
      %p101 = scmp.eq.s32.totalorder %s45, 1
      %p102 = por %p100, %p101
      %p103 = scmp.ne.s32.totalorder %s95, %s98
      %p104 = scmp.eq.s32.totalorder %s45, 0
      %p105 = por %p103, %p104
      %p106 = scmp.ne.s32.totalorder %s95, %s98
      %p107 = scmp.eq.s32.totalorder %s50, 1
      %p108 = por %p106, %p107
      %p109 = scmp.ne.s32.totalorder %s98, %s99
      %p110 = scmp.eq.s32.totalorder %s50, 0
      %p111 = por %p109, %p110
      %p112 = scmp.ne.s32.totalorder %s98, %s99
      %p113 = scmp.eq.s32.totalorder %s51, 1
      %p114 = por %p112, %p113
      %p116 = scmp.ne.s32.totalorder %s99, %s115
      %p117 = scmp.eq.s32.totalorder %s51, 0
      %p118 = por %p116, %p117
      %s119 = ssub.s32 %s52, %s64
      %p120 = scmp.eq.s32.totalorder %s119, 0
      %s122 = sadd.s32 %s121, 1
      %s123 = scalar_select %p120, %s121, %s122
      %p126 = pneg %p120
      %p127 = scmp.eq.s32.totalorder %s45, 1
      %p128 = por %p126, %p127
      %p129 = scmp.ne.s32.totalorder %s121, %s124
      %p130 = scmp.eq.s32.totalorder %s45, 0
      %p131 = por %p129, %p130
      %p132 = scmp.ne.s32.totalorder %s121, %s124
      %p133 = scmp.eq.s32.totalorder %s50, 1
      %p134 = por %p132, %p133
      %p135 = scmp.ne.s32.totalorder %s124, %s125
      %p136 = scmp.eq.s32.totalorder %s50, 0
      %p137 = por %p135, %p136
      %p138 = scmp.ne.s32.totalorder %s124, %s125
      %p139 = scmp.eq.s32.totalorder %s51, 1
      %p140 = por %p138, %p139
      %p142 = scmp.ne.s32.totalorder %s125, %s141
      %p143 = scmp.eq.s32.totalorder %s51, 0
      %p144 = por %p142, %p143
      %s146 = sadd.s32 %s145, 1
      %p149 = scmp.eq.s32.totalorder %s45, 1
      %p150 = scmp.ne.s32.totalorder %s145, %s147
      %p151 = scmp.eq.s32.totalorder %s45, 0
      %p152 = por %p150, %p151
      %p153 = scmp.ne.s32.totalorder %s145, %s147
      %p154 = scmp.eq.s32.totalorder %s50, 1
      %p155 = por %p153, %p154
      %p156 = scmp.ne.s32.totalorder %s147, %s148
      %p157 = scmp.eq.s32.totalorder %s50, 0
      %p158 = por %p156, %p157
      %p159 = scmp.ne.s32.totalorder %s147, %s148
      %p160 = scmp.eq.s32.totalorder %s51, 1
      %p161 = por %p159, %p160
      %p163 = scmp.ne.s32.totalorder %s148, %s162
      %p164 = scmp.eq.s32.totalorder %s51, 0
      %p165 = por %p163, %p164
      %s167 = sadd.s32 %s166, 1
      %p170 = scmp.eq.s32.totalorder %s45, 1
      %p171 = scmp.ne.s32.totalorder %s166, %s168
      %p172 = scmp.eq.s32.totalorder %s45, 0
      %p173 = por %p171, %p172
      %p174 = scmp.ne.s32.totalorder %s166, %s168
      %p175 = scmp.eq.s32.totalorder %s50, 1
      %p176 = por %p174, %p175
      %p177 = scmp.ne.s32.totalorder %s168, %s169
      %p178 = scmp.eq.s32.totalorder %s50, 0
      %p179 = por %p177, %p178
      %p180 = scmp.ne.s32.totalorder %s168, %s169
      %p181 = scmp.eq.s32.totalorder %s51, 1
      %p182 = por %p180, %p181
      %p184 = scmp.ne.s32.totalorder %s169, %s183
      %p185 = scmp.eq.s32.totalorder %s51, 0
      %p186 = por %p184, %p185
      %s188 = sadd.s32 %s187, 1
      %p191 = scmp.eq.s32.totalorder %s45, 1
      %p192 = scmp.ne.s32.totalorder %s187, %s189
      %p193 = scmp.eq.s32.totalorder %s45, 0
      %p194 = por %p192, %p193
      %p195 = scmp.ne.s32.totalorder %s187, %s189
      %p196 = scmp.eq.s32.totalorder %s50, 1
      %p197 = por %p195, %p196
      %p198 = scmp.ne.s32.totalorder %s189, %s190
      %p199 = scmp.eq.s32.totalorder %s50, 0
      %p200 = por %p198, %p199
      %p201 = scmp.ne.s32.totalorder %s189, %s190
      %p202 = scmp.eq.s32.totalorder %s51, 1
      %p203 = por %p201, %p202
      %p205 = scmp.ne.s32.totalorder %s190, %s204
      %p206 = scmp.eq.s32.totalorder %s51, 0
      %p207 = por %p205, %p206
      %s209 = sadd.s32 %s208, 1
      %p212 = scmp.eq.s32.totalorder %s45, 1
      %p213 = scmp.ne.s32.totalorder %s208, %s210
      %p214 = scmp.eq.s32.totalorder %s45, 0
      %p215 = por %p213, %p214
      %p216 = scmp.ne.s32.totalorder %s208, %s210
      %p217 = scmp.eq.s32.totalorder %s50, 1
      %p218 = por %p216, %p217
      %p219 = scmp.ne.s32.totalorder %s210, %s211
      %p220 = scmp.eq.s32.totalorder %s50, 0
      %p221 = por %p219, %p220
      %p222 = scmp.ne.s32.totalorder %s210, %s211
      %p223 = scmp.eq.s32.totalorder %s51, 1
      %p224 = por %p222, %p223
      %p226 = scmp.ne.s32.totalorder %s211, %s225
      %p227 = scmp.eq.s32.totalorder %s51, 0
      %p228 = por %p226, %p227
      %s230 = sadd.s32 %s229, 1
      %p233 = scmp.eq.s32.totalorder %s45, 1
      %p234 = scmp.ne.s32.totalorder %s229, %s231
      %p235 = scmp.eq.s32.totalorder %s45, 0
      %p236 = por %p234, %p235
      %p237 = scmp.ne.s32.totalorder %s229, %s231
      %p238 = scmp.eq.s32.totalorder %s50, 1
      %p239 = por %p237, %p238
      %p240 = scmp.ne.s32.totalorder %s231, %s232
      %p241 = scmp.eq.s32.totalorder %s50, 0
      %p242 = por %p240, %p241
      %p243 = scmp.ne.s32.totalorder %s231, %s232
      %p244 = scmp.eq.s32.totalorder %s51, 1
      %p245 = por %p243, %p244
      %p247 = scmp.ne.s32.totalorder %s232, %s246
      %p248 = scmp.eq.s32.totalorder %s51, 0
      %p249 = por %p247, %p248
      %s251 = sadd.s32 %s250, 1
      %p254 = scmp.eq.s32.totalorder %s45, 1
      %p255 = scmp.ne.s32.totalorder %s250, %s252
      %p256 = scmp.eq.s32.totalorder %s45, 0
      %p257 = por %p255, %p256
      %p258 = scmp.ne.s32.totalorder %s250, %s252
      %p259 = scmp.eq.s32.totalorder %s50, 1
      %p260 = por %p258, %p259
      %p261 = scmp.ne.s32.totalorder %s252, %s253
      %p262 = scmp.eq.s32.totalorder %s50, 0
      %p263 = por %p261, %p262
      %p264 = scmp.ne.s32.totalorder %s252, %s253
      %p265 = scmp.eq.s32.totalorder %s51, 1
      %p266 = por %p264, %p265
      %p268 = scmp.ne.s32.totalorder %s253, %s267
      %p269 = scmp.eq.s32.totalorder %s51, 0
      %p270 = por %p268, %p269
      %s272 = sadd.s32 %s271, 1
      %p275 = scmp.eq.s32.totalorder %s45, 1
      %p276 = scmp.ne.s32.totalorder %s271, %s273
      %p277 = scmp.eq.s32.totalorder %s45, 0
      %p278 = por %p276, %p277
      %p279 = scmp.ne.s32.totalorder %s271, %s273
      %p280 = scmp.eq.s32.totalorder %s50, 1
      %p281 = por %p279, %p280
      %p282 = scmp.ne.s32.totalorder %s273, %s274
      %p283 = scmp.eq.s32.totalorder %s50, 0
      %p284 = por %p282, %p283
      %p285 = scmp.ne.s32.totalorder %s273, %s274
      %p286 = scmp.eq.s32.totalorder %s51, 1
      %p287 = por %p285, %p286
      %p289 = scmp.ne.s32.totalorder %s274, %s288
      %p290 = scmp.eq.s32.totalorder %s51, 0
      %p291 = por %p289, %p290
      %s293 = sadd.s32 %s292, 1
      %p296 = scmp.eq.s32.totalorder %s45, 1
      %p297 = scmp.ne.s32.totalorder %s292, %s294
      %p298 = scmp.eq.s32.totalorder %s45, 0
      %p299 = por %p297, %p298
      %p300 = scmp.ne.s32.totalorder %s292, %s294
      %p301 = scmp.eq.s32.totalorder %s50, 1
      %p302 = por %p300, %p301
      %p303 = scmp.ne.s32.totalorder %s294, %s295
      %p304 = scmp.eq.s32.totalorder %s50, 0
      %p305 = por %p303, %p304
      %p306 = scmp.ne.s32.totalorder %s294, %s295
      %p307 = scmp.eq.s32.totalorder %s51, 1
      %p308 = por %p306, %p307
      %p310 = scmp.ne.s32.totalorder %s295, %s309
      %p311 = scmp.eq.s32.totalorder %s51, 0
      %p312 = por %p310, %p311
      %s314 = sadd.s32 %s313, 1
      %p317 = scmp.eq.s32.totalorder %s45, 1
      %p318 = scmp.ne.s32.totalorder %s313, %s315
      %p319 = scmp.eq.s32.totalorder %s45, 0
      %p320 = por %p318, %p319
      %p321 = scmp.ne.s32.totalorder %s313, %s315
      %p322 = scmp.eq.s32.totalorder %s50, 1
      %p323 = por %p321, %p322
      %p324 = scmp.ne.s32.totalorder %s315, %s316
      %p325 = scmp.eq.s32.totalorder %s50, 0
      %p326 = por %p324, %p325
      %p327 = scmp.ne.s32.totalorder %s315, %s316
      %p328 = scmp.eq.s32.totalorder %s51, 1
      %p329 = por %p327, %p328
      %p331 = scmp.ne.s32.totalorder %s316, %s330
      %p332 = scmp.eq.s32.totalorder %s51, 0
      %p333 = por %p331, %p332
      %s335 = sadd.s32 %s334, 1
      %p338 = scmp.eq.s32.totalorder %s45, 1
      %p339 = scmp.ne.s32.totalorder %s334, %s336
      %p340 = scmp.eq.s32.totalorder %s45, 0
      %p341 = por %p339, %p340
      %p342 = scmp.ne.s32.totalorder %s334, %s336
      %p343 = scmp.eq.s32.totalorder %s50, 1
      %p344 = por %p342, %p343
      %p345 = scmp.ne.s32.totalorder %s336, %s337
      %p346 = scmp.eq.s32.totalorder %s50, 0
      %p347 = por %p345, %p346
      %p348 = scmp.ne.s32.totalorder %s336, %s337
      %p349 = scmp.eq.s32.totalorder %s51, 1
      %p350 = por %p348, %p349
      %p352 = scmp.ne.s32.totalorder %s337, %s351
      %p353 = scmp.eq.s32.totalorder %s51, 0
      %p354 = por %p352, %p353
      %s356 = sadd.s32 %s355, 1
      %p359 = scmp.eq.s32.totalorder %s45, 1
      %p360 = scmp.ne.s32.totalorder %s355, %s357
      %p361 = scmp.eq.s32.totalorder %s45, 0
      %p362 = por %p360, %p361
      %p363 = scmp.ne.s32.totalorder %s355, %s357
      %p364 = scmp.eq.s32.totalorder %s50, 1
      %p365 = por %p363, %p364
      %p366 = scmp.ne.s32.totalorder %s357, %s358
      %p367 = scmp.eq.s32.totalorder %s50, 0
      %p368 = por %p366, %p367
      %p369 = scmp.ne.s32.totalorder %s357, %s358
      %p370 = scmp.eq.s32.totalorder %s51, 1
      %p371 = por %p369, %p370
      %p373 = scmp.ne.s32.totalorder %s358, %s372
      %p374 = scmp.eq.s32.totalorder %s51, 0
      %p375 = por %p373, %p374
      %s377 = sadd.s32 %s376, 1
      %p380 = scmp.eq.s32.totalorder %s45, 1
      %p381 = scmp.ne.s32.totalorder %s376, %s378
      %p382 = scmp.eq.s32.totalorder %s45, 0
      %p383 = por %p381, %p382
      %p384 = scmp.ne.s32.totalorder %s376, %s378
      %p385 = scmp.eq.s32.totalorder %s50, 1
      %p386 = por %p384, %p385
      %p387 = scmp.ne.s32.totalorder %s378, %s379
      %p388 = scmp.eq.s32.totalorder %s50, 0
      %p389 = por %p387, %p388
      %p390 = scmp.ne.s32.totalorder %s378, %s379
      %p391 = scmp.eq.s32.totalorder %s51, 1
      %p392 = por %p390, %p391
      %p394 = scmp.ne.s32.totalorder %s379, %s393
      %p395 = scmp.eq.s32.totalorder %s51, 0
      %p396 = por %p394, %p395
      %s398 = sadd.s32 %s397, 1
      %p401 = scmp.eq.s32.totalorder %s45, 1
      %p402 = scmp.ne.s32.totalorder %s397, %s399
      %p403 = scmp.eq.s32.totalorder %s45, 0
      %p404 = por %p402, %p403
      %p405 = scmp.ne.s32.totalorder %s397, %s399
      %p406 = scmp.eq.s32.totalorder %s50, 1
      %p407 = por %p405, %p406
      %p408 = scmp.ne.s32.totalorder %s399, %s400
      %p409 = scmp.eq.s32.totalorder %s50, 0
      %p410 = por %p408, %p409
      %p411 = scmp.ne.s32.totalorder %s399, %s400
      %p412 = scmp.eq.s32.totalorder %s51, 1
      %p413 = por %p411, %p412
      %p415 = scmp.ne.s32.totalorder %s400, %s414
      %p416 = scmp.eq.s32.totalorder %s51, 0
      %p417 = por %p415, %p416
      %s419 = sadd.s32 %s418, 1
      %p422 = scmp.eq.s32.totalorder %s45, 1
      %p423 = scmp.ne.s32.totalorder %s418, %s420
      %p424 = scmp.eq.s32.totalorder %s45, 0
      %p425 = por %p423, %p424
      %p426 = scmp.ne.s32.totalorder %s418, %s420
      %p427 = scmp.eq.s32.totalorder %s50, 1
      %p428 = por %p426, %p427
      %p429 = scmp.ne.s32.totalorder %s420, %s421
      %p430 = scmp.eq.s32.totalorder %s50, 0
      %p431 = por %p429, %p430
      %p432 = scmp.ne.s32.totalorder %s420, %s421
      %p433 = scmp.eq.s32.totalorder %s51, 1
      %p434 = por %p432, %p433
      %p436 = scmp.ne.s32.totalorder %s421, %s435
      %p437 = scmp.eq.s32.totalorder %s51, 0
      %p438 = por %p436, %p437
      %s440 = sadd.s32 %s439, 1
      %p443 = scmp.eq.s32.totalorder %s45, 1
      %p444 = scmp.ne.s32.totalorder %s439, %s441
      %p445 = scmp.eq.s32.totalorder %s45, 0
      %p446 = por %p444, %p445
      %p447 = scmp.ne.s32.totalorder %s439, %s441
      %p448 = scmp.eq.s32.totalorder %s50, 1
      %p449 = por %p447, %p448
      %p450 = scmp.ne.s32.totalorder %s441, %s442
      %p451 = scmp.eq.s32.totalorder %s50, 0
      %p452 = por %p450, %p451
      %p453 = scmp.ne.s32.totalorder %s441, %s442
      %p454 = scmp.eq.s32.totalorder %s51, 1
      %p455 = por %p453, %p454
      %p457 = scmp.ne.s32.totalorder %s442, %s456
      %p458 = scmp.eq.s32.totalorder %s51, 0
      %p459 = por %p457, %p458
      %s461 = sadd.s32 %s460, 1
      %p464 = scmp.eq.s32.totalorder %s45, 1
      %p465 = scmp.ne.s32.totalorder %s460, %s462
      %p466 = scmp.eq.s32.totalorder %s45, 0
      %p467 = por %p465, %p466
      %p468 = scmp.ne.s32.totalorder %s460, %s462
      %p469 = scmp.eq.s32.totalorder %s50, 1
      %p470 = por %p468, %p469
      %p471 = scmp.ne.s32.totalorder %s462, %s463
      %p472 = scmp.eq.s32.totalorder %s50, 0
      %p473 = por %p471, %p472
      %p474 = scmp.ne.s32.totalorder %s462, %s463
      %p475 = scmp.eq.s32.totalorder %s51, 1
      %p476 = por %p474, %p475
      %p478 = scmp.ne.s32.totalorder %s463, %s477
      %p479 = scmp.eq.s32.totalorder %s51, 0
      %p480 = por %p478, %p479
      %s482 = sadd.s32 %s481, 1
      %p485 = scmp.eq.s32.totalorder %s45, 1
      %p486 = scmp.ne.s32.totalorder %s481, %s483
      %p487 = scmp.eq.s32.totalorder %s45, 0
      %p488 = por %p486, %p487
      %p489 = scmp.ne.s32.totalorder %s481, %s483
      %p490 = scmp.eq.s32.totalorder %s50, 1
      %p491 = por %p489, %p490
      %p492 = scmp.ne.s32.totalorder %s483, %s484
      %p493 = scmp.eq.s32.totalorder %s50, 0
      %p494 = por %p492, %p493
      %p495 = scmp.ne.s32.totalorder %s483, %s484
      %p496 = scmp.eq.s32.totalorder %s51, 1
      %p497 = por %p495, %p496
      %p499 = scmp.ne.s32.totalorder %s484, %s498
      %p500 = scmp.eq.s32.totalorder %s51, 0
      %p501 = por %p499, %p500
      %s503 = sadd.s32 %s502, 1
      %p506 = scmp.eq.s32.totalorder %s45, 1
      %p507 = scmp.ne.s32.totalorder %s502, %s504
      %p508 = scmp.eq.s32.totalorder %s45, 0
      %p509 = por %p507, %p508
      %p510 = scmp.ne.s32.totalorder %s502, %s504
      %p511 = scmp.eq.s32.totalorder %s50, 1
      %p512 = por %p510, %p511
      %p513 = scmp.ne.s32.totalorder %s504, %s505
      %p514 = scmp.eq.s32.totalorder %s50, 0
      %p515 = por %p513, %p514
      %p516 = scmp.ne.s32.totalorder %s504, %s505
      %p517 = scmp.eq.s32.totalorder %s51, 1
      %p518 = por %p516, %p517
      %p520 = scmp.ne.s32.totalorder %s505, %s519
      %p521 = scmp.eq.s32.totalorder %s51, 0
      %p522 = por %p520, %p521
      %s523 = ssub.s32 %s52, %s64
      %s524 = ssub.s32 %s53, %s60
      %s525 = sor.u32 %s523, %s524
      %p526 = scmp.eq.s32.totalorder %s525, 0
      %s528 = sadd.s32 %s527, 1
      %s529 = scalar_select %p526, %s527, %s528
      %p532 = pneg %p526
      %p533 = scmp.eq.s32.totalorder %s45, 1
      %p534 = por %p532, %p533
      %p535 = scmp.ne.s32.totalorder %s527, %s530
      %p536 = scmp.eq.s32.totalorder %s45, 0
      %p537 = por %p535, %p536
      %p538 = scmp.ne.s32.totalorder %s527, %s530
      %p539 = scmp.eq.s32.totalorder %s50, 1
      %p540 = por %p538, %p539
      %p541 = scmp.ne.s32.totalorder %s530, %s531
      %p542 = scmp.eq.s32.totalorder %s50, 0
      %p543 = por %p541, %p542
      %p544 = scmp.ne.s32.totalorder %s530, %s531
      %p545 = scmp.eq.s32.totalorder %s51, 1
      %p546 = por %p544, %p545
      %p548 = scmp.ne.s32.totalorder %s531, %s547
      %p549 = scmp.eq.s32.totalorder %s51, 0
      %p550 = por %p548, %p549
      %p551 = scmp.le.s32.totalorder 1, %s45
      %p552 = scmp.lt.s32.totalorder %s45, 3
      %p553 = pnand %p551, %p552
      %p554 = pneg %p553
      // Predicated region
      $region9: #{tpu_custom_call.1} parent=5 // pred_check
        _
      $region10: #{tpu_custom_call.1} parent=5 // pred_check_branch
        %556 = sbr.rel (%p553) target = $region12
      $region11: #{tpu_custom_call.1} parent=5 // pred_region
        %s557 = ssub.s32 %s45, 1
        // Predicated region
        $region13: #{tpu_custom_call.1} parent=11 // pred_check
          %p558 = pneg %p158
        $region14: #{tpu_custom_call.1} parent=11 // pred_check_branch
          %560 = sbr.rel (%p558) target = $region16
        $region15: #{tpu_custom_call.1} parent=11 // pred_region
          %s562 = ssub.s32 256, 256
          %563 = vsyncadd [#allocation9], %s562
          %s564 = sshll.u32 [#allocation8], 4
          %s565 = int_to_ptr.vmem [resolvable:$true] %s564
          %570 = dma.hbm_to_vmem [thread:$0]  %s3, 256, %s565, [#allocation9], 64, 64, 4
        $region16: #{tpu_custom_call.1} parent=11 // pred_fallthru
          _
        // Predicated region
        $region17: #{tpu_custom_call.1} parent=11 // pred_check
          %p571 = pneg %p179
        $region18: #{tpu_custom_call.1} parent=11 // pred_check_branch
          %573 = sbr.rel (%p571) target = $region20
        $region19: #{tpu_custom_call.1} parent=11 // pred_region
          %s575 = ssub.s32 16, 16
          %576 = vsyncadd [#allocation9], %s575
          %s578 = sshll.u32 [#allocation10], 4
          %s579 = int_to_ptr.vmem [resolvable:$true] %s578
          %581 = dma.hbm_to_vmem [thread:$0]  %s4, 16, %s579, [#allocation9]
        $region20: #{tpu_custom_call.1} parent=11 // pred_fallthru
          _
        // Predicated region
        $region21: #{tpu_custom_call.1} parent=11 // pred_check
          %p582 = pneg %p200
        $region22: #{tpu_custom_call.1} parent=11 // pred_check_branch
          %584 = sbr.rel (%p582) target = $region24
        $region23: #{tpu_custom_call.1} parent=11 // pred_region
          %s586 = ssub.s32 256, 256
          %587 = vsyncadd [#allocation12], %s586
          %s588 = sshll.u32 [#allocation11], 4
          %s589 = int_to_ptr.vmem [resolvable:$true] %s588
          %594 = dma.hbm_to_vmem [thread:$0]  %s5, 256, %s589, [#allocation12], 64, 64, 4
        $region24: #{tpu_custom_call.1} parent=11 // pred_fallthru
          _
        // Predicated region
        $region25: #{tpu_custom_call.1} parent=11 // pred_check
          %p595 = pneg %p221
        $region26: #{tpu_custom_call.1} parent=11 // pred_check_branch
          %597 = sbr.rel (%p595) target = $region28
        $region27: #{tpu_custom_call.1} parent=11 // pred_region
          %s599 = ssub.s32 16, 16
          %600 = vsyncadd [#allocation12], %s599
          %s602 = sshll.u32 [#allocation13], 4
          %s603 = int_to_ptr.vmem [resolvable:$true] %s602
          %605 = dma.hbm_to_vmem [thread:$0]  %s6, 16, %s603, [#allocation12]
        $region28: #{tpu_custom_call.1} parent=11 // pred_fallthru
          _
        // Predicated region
        $region29: #{tpu_custom_call.1} parent=11 // pred_check
          %p606 = pneg %p242
        $region30: #{tpu_custom_call.1} parent=11 // pred_check_branch
          %608 = sbr.rel (%p606) target = $region32
        $region31: #{tpu_custom_call.1} parent=11 // pred_region
          %s610 = ssub.s32 256, 256
          %611 = vsyncadd [#allocation15], %s610
          %s612 = sshll.u32 [#allocation14], 4
          %s613 = int_to_ptr.vmem [resolvable:$true] %s612
          %618 = dma.hbm_to_vmem [thread:$0]  %s7, 256, %s613, [#allocation15], 64, 64, 4
        $region32: #{tpu_custom_call.1} parent=11 // pred_fallthru
          _
        // Predicated region
        $region33: #{tpu_custom_call.1} parent=11 // pred_check
          %p619 = pneg %p263
        $region34: #{tpu_custom_call.1} parent=11 // pred_check_branch
          %621 = sbr.rel (%p619) target = $region36
        $region35: #{tpu_custom_call.1} parent=11 // pred_region
          %s623 = ssub.s32 16, 16
          %624 = vsyncadd [#allocation15], %s623
          %s626 = sshll.u32 [#allocation16], 4
          %s627 = int_to_ptr.vmem [resolvable:$true] %s626
          %629 = dma.hbm_to_vmem [thread:$0]  %s8, 16, %s627, [#allocation15]
        $region36: #{tpu_custom_call.1} parent=11 // pred_fallthru
          _
        // Predicated region
        $region37: #{tpu_custom_call.1} parent=11 // pred_check
          %p630 = pneg %p284
        $region38: #{tpu_custom_call.1} parent=11 // pred_check_branch
          %632 = sbr.rel (%p630) target = $region40
        $region39: #{tpu_custom_call.1} parent=11 // pred_region
          %s634 = ssub.s32 256, 256
          %635 = vsyncadd [#allocation18], %s634
          %s636 = sshll.u32 [#allocation17], 4
          %s637 = int_to_ptr.vmem [resolvable:$true] %s636
          %642 = dma.hbm_to_vmem [thread:$0]  %s9, 256, %s637, [#allocation18], 64, 64, 4
        $region40: #{tpu_custom_call.1} parent=11 // pred_fallthru
          _
        // Predicated region
        $region41: #{tpu_custom_call.1} parent=11 // pred_check
          %p643 = pneg %p305
        $region42: #{tpu_custom_call.1} parent=11 // pred_check_branch
          %645 = sbr.rel (%p643) target = $region44
        $region43: #{tpu_custom_call.1} parent=11 // pred_region
          %s647 = ssub.s32 16, 16
          %648 = vsyncadd [#allocation18], %s647
          %s650 = sshll.u32 [#allocation19], 4
          %s651 = int_to_ptr.vmem [resolvable:$true] %s650
          %653 = dma.hbm_to_vmem [thread:$0]  %s10, 16, %s651, [#allocation18]
        $region44: #{tpu_custom_call.1} parent=11 // pred_fallthru
          _
        // Predicated region
        $region45: #{tpu_custom_call.1} parent=11 // pred_check
          %p654 = pneg %p326
        $region46: #{tpu_custom_call.1} parent=11 // pred_check_branch
          %656 = sbr.rel (%p654) target = $region48
        $region47: #{tpu_custom_call.1} parent=11 // pred_region
          %s658 = ssub.s32 16, 16
          %659 = vsyncadd [#allocation21], %s658
          %s661 = sshll.u32 [#allocation20], 4
          %s662 = int_to_ptr.vmem [resolvable:$true] %s661
          %664 = dma.hbm_to_vmem [thread:$0]  %s11, 16, %s662, [#allocation21]
        $region48: #{tpu_custom_call.1} parent=11 // pred_fallthru
          _
        // Predicated region
        $region49: #{tpu_custom_call.1} parent=11 // pred_check
          %p665 = pneg %p347
        $region50: #{tpu_custom_call.1} parent=11 // pred_check_branch
          %667 = sbr.rel (%p665) target = $region52
        $region51: #{tpu_custom_call.1} parent=11 // pred_region
          %s669 = ssub.s32 16, 16
          %670 = vsyncadd [#allocation21], %s669
          %s672 = sshll.u32 [#allocation22], 4
          %s673 = int_to_ptr.vmem [resolvable:$true] %s672
          %675 = dma.hbm_to_vmem [thread:$0]  %s12, 16, %s673, [#allocation21]
        $region52: #{tpu_custom_call.1} parent=11 // pred_fallthru
          _
        // Predicated region
        $region53: #{tpu_custom_call.1} parent=11 // pred_check
          %p676 = pneg %p368
        $region54: #{tpu_custom_call.1} parent=11 // pred_check_branch
          %678 = sbr.rel (%p676) target = $region56
        $region55: #{tpu_custom_call.1} parent=11 // pred_region
          %s680 = ssub.s32 16, 16
          %681 = vsyncadd [#allocation24], %s680
          %s683 = sshll.u32 [#allocation23], 4
          %s684 = int_to_ptr.vmem [resolvable:$true] %s683
          %686 = dma.hbm_to_vmem [thread:$0]  %s13, 16, %s684, [#allocation24]
        $region56: #{tpu_custom_call.1} parent=11 // pred_fallthru
          _
        // Predicated region
        $region57: #{tpu_custom_call.1} parent=11 // pred_check
          %p687 = pneg %p389
        $region58: #{tpu_custom_call.1} parent=11 // pred_check_branch
          %689 = sbr.rel (%p687) target = $region60
        $region59: #{tpu_custom_call.1} parent=11 // pred_region
          %s691 = ssub.s32 16, 16
          %692 = vsyncadd [#allocation24], %s691
          %s694 = sshll.u32 [#allocation25], 4
          %s695 = int_to_ptr.vmem [resolvable:$true] %s694
          %697 = dma.hbm_to_vmem [thread:$0]  %s14, 16, %s695, [#allocation24]
        $region60: #{tpu_custom_call.1} parent=11 // pred_fallthru
          _
        // Predicated region
        $region61: #{tpu_custom_call.1} parent=11 // pred_check
          %p698 = pneg %p410
        $region62: #{tpu_custom_call.1} parent=11 // pred_check_branch
          %700 = sbr.rel (%p698) target = $region64
        $region63: #{tpu_custom_call.1} parent=11 // pred_region
          %s702 = ssub.s32 256, 256
          %703 = vsyncadd [#allocation27], %s702
          %s704 = sshll.u32 [#allocation26], 4
          %s705 = int_to_ptr.vmem [resolvable:$true] %s704
          %710 = dma.hbm_to_vmem [thread:$0]  %s15, 256, %s705, [#allocation27], 64, 64, 4
        $region64: #{tpu_custom_call.1} parent=11 // pred_fallthru
          _
        // Predicated region
        $region65: #{tpu_custom_call.1} parent=11 // pred_check
          %p711 = pneg %p431
        $region66: #{tpu_custom_call.1} parent=11 // pred_check_branch
          %713 = sbr.rel (%p711) target = $region68
        $region67: #{tpu_custom_call.1} parent=11 // pred_region
          %s715 = ssub.s32 16, 16
          %716 = vsyncadd [#allocation27], %s715
          %s718 = sshll.u32 [#allocation28], 4
          %s719 = int_to_ptr.vmem [resolvable:$true] %s718
          %721 = dma.hbm_to_vmem [thread:$0]  %s16, 16, %s719, [#allocation27]
        $region68: #{tpu_custom_call.1} parent=11 // pred_fallthru
          _
        // Predicated region
        $region69: #{tpu_custom_call.1} parent=11 // pred_check
          %p722 = pneg %p452
        $region70: #{tpu_custom_call.1} parent=11 // pred_check_branch
          %724 = sbr.rel (%p722) target = $region72
        $region71: #{tpu_custom_call.1} parent=11 // pred_region
          %s726 = ssub.s32 512, 512
          %727 = vsyncadd [#allocation30], %s726
          %s728 = sshll.u32 [#allocation29], 4
          %s729 = int_to_ptr.vmem [resolvable:$true] %s728
          %734 = dma.hbm_to_vmem [thread:$0]  %s17, 512, %s729, [#allocation30], 64, 64, 4
        $region72: #{tpu_custom_call.1} parent=11 // pred_fallthru
          _
        // Predicated region
        $region73: #{tpu_custom_call.1} parent=11 // pred_check
          %p735 = pneg %p473
        $region74: #{tpu_custom_call.1} parent=11 // pred_check_branch
          %737 = sbr.rel (%p735) target = $region76
        $region75: #{tpu_custom_call.1} parent=11 // pred_region
          %s739 = ssub.s32 16, 16
          %740 = vsyncadd [#allocation30], %s739
          %s742 = sshll.u32 [#allocation31], 4
          %s743 = int_to_ptr.vmem [resolvable:$true] %s742
          %745 = dma.hbm_to_vmem [thread:$0]  %s18, 16, %s743, [#allocation30]
        $region76: #{tpu_custom_call.1} parent=11 // pred_fallthru
          _
        // Predicated region
        $region77: #{tpu_custom_call.1} parent=11 // pred_check
          %p746 = pneg %p494
        $region78: #{tpu_custom_call.1} parent=11 // pred_check_branch
          %748 = sbr.rel (%p746) target = $region80
        $region79: #{tpu_custom_call.1} parent=11 // pred_region
          %s750 = ssub.s32 16, 16
          %751 = vsyncadd [#allocation33], %s750
          %s753 = sshll.u32 [#allocation32], 4
          %s754 = int_to_ptr.vmem [resolvable:$true] %s753
          %756 = dma.hbm_to_vmem [thread:$0]  %s19, 16, %s754, [#allocation33]
        $region80: #{tpu_custom_call.1} parent=11 // pred_fallthru
          _
        // Predicated region
        $region81: #{tpu_custom_call.1} parent=11 // pred_check
          %p757 = pneg %p515
        $region82: #{tpu_custom_call.1} parent=11 // pred_check_branch
          %759 = sbr.rel (%p757) target = $region84
        $region83: #{tpu_custom_call.1} parent=11 // pred_region
          %s761 = ssub.s32 16, 16
          %762 = vsyncadd [#allocation33], %s761
          %s764 = sshll.u32 [#allocation34], 4
          %s765 = int_to_ptr.vmem [resolvable:$true] %s764
          %767 = dma.hbm_to_vmem [thread:$0]  %s20, 16, %s765, [#allocation33]
        $region84: #{tpu_custom_call.1} parent=11 // pred_fallthru
          _
      $region12: #{tpu_custom_call.1} parent=5 // pred_fallthru
        _
      %p768 = scmp.lt.s32.totalorder %s45, 2
      // Predicated region
      $region85: #{tpu_custom_call.1} parent=5 // pred_check
        %p769 = pneg %p768
      $region86: #{tpu_custom_call.1} parent=5 // pred_check_branch
        %771 = sbr.rel (%p769) target = $region88
      $region87: #{tpu_custom_call.1} parent=5 // pred_region
        // Predicated region
        $region89: #{tpu_custom_call.1} parent=87 // pred_check
          %p772 = pneg %p79
        $region90: #{tpu_custom_call.1} parent=87 // pred_check_branch
          %774 = sbr.rel (%p772) target = $region92
        $region91: #{tpu_custom_call.1} parent=87 // pred_region
          %s775 = sand.u32 %s69, 1
          %s776 = scalar_lea.sflag [#allocation3], %s775
          %s777 = sand.u32 %s69, 1
          %s778 = smul.addr %s777, 8
          %s779 = scalar_lea.vmem [#allocation2], %s778
          %s781 = ssub.s32 128, 128
          %782 = vsyncadd %s776, %s781
          %s783 = sadd.s32 %s53, %s52
          %s784 = smul.addr %s783, 128
          %s785 = scalar_lea.hbm %s0, %s784
          %s787 = sshll.u32 %s779, 4
          %s788 = int_to_ptr.vmem [resolvable:$true] %s787
          %790 = dma.hbm_to_vmem [thread:$0]  %s785, 128, %s788, %s776
        $region92: #{tpu_custom_call.1} parent=87 // pred_fallthru
          _
        // Predicated region
        $region93: #{tpu_custom_call.1} parent=87 // pred_check
          %p791 = pneg %p105
        $region94: #{tpu_custom_call.1} parent=87 // pred_check_branch
          %793 = sbr.rel (%p791) target = $region96
        $region95: #{tpu_custom_call.1} parent=87 // pred_region
          %s794 = sand.u32 %s45, 1
          %s795 = scalar_lea.sflag [#allocation6], %s794
          %s796 = sand.u32 %s95, 1
          %s797 = smul.addr %s796, 8
          %s798 = scalar_lea.vmem [#allocation5], %s797
          %s800 = ssub.s32 128, 128
          %801 = vsyncadd %s795, %s800
          %s802 = smul.addr %s52, 128
          %s803 = scalar_lea.hbm %s1, %s802
          %s805 = sshll.u32 %s798, 4
          %s806 = int_to_ptr.vmem [resolvable:$true] %s805
          %808 = dma.hbm_to_vmem [thread:$0]  %s803, 128, %s806, %s795
        $region96: #{tpu_custom_call.1} parent=87 // pred_fallthru
          _
        // Predicated region
        $region97: #{tpu_custom_call.1} parent=87 // pred_check
          %p809 = pneg %p131
        $region98: #{tpu_custom_call.1} parent=87 // pred_check_branch
          %811 = sbr.rel (%p809) target = $region100
        $region99: #{tpu_custom_call.1} parent=87 // pred_region
          %s812 = sand.u32 %s45, 1
          %s813 = scalar_lea.sflag [#allocation6], %s812
          %s814 = sand.u32 %s121, 1
          %s815 = smul.addr %s814, 8
          %s816 = scalar_lea.vmem [#allocation7], %s815
          %s818 = ssub.s32 128, 128
          %819 = vsyncadd %s813, %s818
          %s820 = smul.addr %s52, 128
          %s821 = scalar_lea.hbm %s2, %s820
          %s823 = sshll.u32 %s816, 4
          %s824 = int_to_ptr.vmem [resolvable:$true] %s823
          %826 = dma.hbm_to_vmem [thread:$0]  %s821, 128, %s824, %s813
        $region100: #{tpu_custom_call.1} parent=87 // pred_fallthru
          _
      $region88: #{tpu_custom_call.1} parent=5 // pred_fallthru
        _
      %p827 = scmp.le.s32.totalorder 1, %s45
      %p828 = scmp.lt.s32.totalorder %s45, 3
      %p829 = pnand %p827, %p828
      %p830 = pneg %p829
      // Predicated region
      $region101: #{tpu_custom_call.1} parent=5 // pred_check
        _
      $region102: #{tpu_custom_call.1} parent=5 // pred_check_branch
        %832 = sbr.rel (%p829) target = $region104
      $region103: #{tpu_custom_call.1} parent=5 // pred_region
        %s833 = ssub.s32 %s45, 1
        %s834 = sand.u32 %s72, 1
        %s835 = scalar_lea.sflag [#allocation3], %s834
        %s836 = sand.u32 %s72, 1
        %s837 = smul.addr %s836, 8
        %s838 = scalar_lea.vmem [#allocation2], %s837
        // Predicated region
        $region105: #{tpu_custom_call.1} parent=103 // pred_check
          %p839 = pneg %p85
        $region106: #{tpu_custom_call.1} parent=103 // pred_check_branch
          %841 = sbr.rel (%p839) target = $region108
        $region107: #{tpu_custom_call.1} parent=103 // pred_region
          %842 = dma.done %s835, 128
        $region108: #{tpu_custom_call.1} parent=103 // pred_fallthru
          _
        %s843 = sand.u32 %s50, 1
        %s844 = scalar_lea.sflag [#allocation6], %s843
        %s845 = sand.u32 %s98, 1
        %s846 = smul.addr %s845, 8
        %s847 = scalar_lea.vmem [#allocation5], %s846
        // Predicated region
        $region109: #{tpu_custom_call.1} parent=103 // pred_check
          %p848 = pneg %p111
        $region110: #{tpu_custom_call.1} parent=103 // pred_check_branch
          %850 = sbr.rel (%p848) target = $region112
        $region111: #{tpu_custom_call.1} parent=103 // pred_region
          %851 = dma.done %s844, 128
        $region112: #{tpu_custom_call.1} parent=103 // pred_fallthru
          _
        %s852 = sand.u32 %s50, 1
        %s853 = scalar_lea.sflag [#allocation6], %s852
        %s854 = sand.u32 %s124, 1
        %s855 = smul.addr %s854, 8
        %s856 = scalar_lea.vmem [#allocation7], %s855
        // Predicated region
        $region113: #{tpu_custom_call.1} parent=103 // pred_check
          %p857 = pneg %p137
        $region114: #{tpu_custom_call.1} parent=103 // pred_check_branch
          %859 = sbr.rel (%p857) target = $region116
        $region115: #{tpu_custom_call.1} parent=103 // pred_region
          %860 = dma.done %s853, 128
        $region116: #{tpu_custom_call.1} parent=103 // pred_fallthru
          _
        // Predicated region
        $region117: #{tpu_custom_call.1} parent=103 // pred_check
          %p861 = pneg %p158
        $region118: #{tpu_custom_call.1} parent=103 // pred_check_branch
          %863 = sbr.rel (%p861) target = $region120
        $region119: #{tpu_custom_call.1} parent=103 // pred_region
          %864 = dma.done [#allocation9], 256
        $region120: #{tpu_custom_call.1} parent=103 // pred_fallthru
          _
        // Predicated region
        $region121: #{tpu_custom_call.1} parent=103 // pred_check
          %p865 = pneg %p179
        $region122: #{tpu_custom_call.1} parent=103 // pred_check_branch
          %867 = sbr.rel (%p865) target = $region124
        $region123: #{tpu_custom_call.1} parent=103 // pred_region
          %868 = dma.done [#allocation9], 16
        $region124: #{tpu_custom_call.1} parent=103 // pred_fallthru
          _
        // Predicated region
        $region125: #{tpu_custom_call.1} parent=103 // pred_check
          %p869 = pneg %p200
        $region126: #{tpu_custom_call.1} parent=103 // pred_check_branch
          %871 = sbr.rel (%p869) target = $region128
        $region127: #{tpu_custom_call.1} parent=103 // pred_region
          %872 = dma.done [#allocation12], 256
        $region128: #{tpu_custom_call.1} parent=103 // pred_fallthru
          _
        // Predicated region
        $region129: #{tpu_custom_call.1} parent=103 // pred_check
          %p873 = pneg %p221
        $region130: #{tpu_custom_call.1} parent=103 // pred_check_branch
          %875 = sbr.rel (%p873) target = $region132
        $region131: #{tpu_custom_call.1} parent=103 // pred_region
          %876 = dma.done [#allocation12], 16
        $region132: #{tpu_custom_call.1} parent=103 // pred_fallthru
          _
        // Predicated region
        $region133: #{tpu_custom_call.1} parent=103 // pred_check
          %p877 = pneg %p242
        $region134: #{tpu_custom_call.1} parent=103 // pred_check_branch
          %879 = sbr.rel (%p877) target = $region136
        $region135: #{tpu_custom_call.1} parent=103 // pred_region
          %880 = dma.done [#allocation15], 256
        $region136: #{tpu_custom_call.1} parent=103 // pred_fallthru
          _
        // Predicated region
        $region137: #{tpu_custom_call.1} parent=103 // pred_check
          %p881 = pneg %p263
        $region138: #{tpu_custom_call.1} parent=103 // pred_check_branch
          %883 = sbr.rel (%p881) target = $region140
        $region139: #{tpu_custom_call.1} parent=103 // pred_region
          %884 = dma.done [#allocation15], 16
        $region140: #{tpu_custom_call.1} parent=103 // pred_fallthru
          _
        // Predicated region
        $region141: #{tpu_custom_call.1} parent=103 // pred_check
          %p885 = pneg %p284
        $region142: #{tpu_custom_call.1} parent=103 // pred_check_branch
          %887 = sbr.rel (%p885) target = $region144
        $region143: #{tpu_custom_call.1} parent=103 // pred_region
          %888 = dma.done [#allocation18], 256
        $region144: #{tpu_custom_call.1} parent=103 // pred_fallthru
          _
        // Predicated region
        $region145: #{tpu_custom_call.1} parent=103 // pred_check
          %p889 = pneg %p305
        $region146: #{tpu_custom_call.1} parent=103 // pred_check_branch
          %891 = sbr.rel (%p889) target = $region148
        $region147: #{tpu_custom_call.1} parent=103 // pred_region
          %892 = dma.done [#allocation18], 16
        $region148: #{tpu_custom_call.1} parent=103 // pred_fallthru
          _
        // Predicated region
        $region149: #{tpu_custom_call.1} parent=103 // pred_check
          %p893 = pneg %p326
        $region150: #{tpu_custom_call.1} parent=103 // pred_check_branch
          %895 = sbr.rel (%p893) target = $region152
        $region151: #{tpu_custom_call.1} parent=103 // pred_region
          %896 = dma.done [#allocation21], 16
        $region152: #{tpu_custom_call.1} parent=103 // pred_fallthru
          _
        // Predicated region
        $region153: #{tpu_custom_call.1} parent=103 // pred_check
          %p897 = pneg %p347
        $region154: #{tpu_custom_call.1} parent=103 // pred_check_branch
          %899 = sbr.rel (%p897) target = $region156
        $region155: #{tpu_custom_call.1} parent=103 // pred_region
          %900 = dma.done [#allocation21], 16
        $region156: #{tpu_custom_call.1} parent=103 // pred_fallthru
          _
        // Predicated region
        $region157: #{tpu_custom_call.1} parent=103 // pred_check
          %p901 = pneg %p368
        $region158: #{tpu_custom_call.1} parent=103 // pred_check_branch
          %903 = sbr.rel (%p901) target = $region160
        $region159: #{tpu_custom_call.1} parent=103 // pred_region
          %904 = dma.done [#allocation24], 16
        $region160: #{tpu_custom_call.1} parent=103 // pred_fallthru
          _
        // Predicated region
        $region161: #{tpu_custom_call.1} parent=103 // pred_check
          %p905 = pneg %p389
        $region162: #{tpu_custom_call.1} parent=103 // pred_check_branch
          %907 = sbr.rel (%p905) target = $region164
        $region163: #{tpu_custom_call.1} parent=103 // pred_region
          %908 = dma.done [#allocation24], 16
        $region164: #{tpu_custom_call.1} parent=103 // pred_fallthru
          _
        // Predicated region
        $region165: #{tpu_custom_call.1} parent=103 // pred_check
          %p909 = pneg %p410
        $region166: #{tpu_custom_call.1} parent=103 // pred_check_branch
          %911 = sbr.rel (%p909) target = $region168
        $region167: #{tpu_custom_call.1} parent=103 // pred_region
          %912 = dma.done [#allocation27], 256
        $region168: #{tpu_custom_call.1} parent=103 // pred_fallthru
          _
        // Predicated region
        $region169: #{tpu_custom_call.1} parent=103 // pred_check
          %p913 = pneg %p431
        $region170: #{tpu_custom_call.1} parent=103 // pred_check_branch
          %915 = sbr.rel (%p913) target = $region172
        $region171: #{tpu_custom_call.1} parent=103 // pred_region
          %916 = dma.done [#allocation27], 16
        $region172: #{tpu_custom_call.1} parent=103 // pred_fallthru
          _
        // Predicated region
        $region173: #{tpu_custom_call.1} parent=103 // pred_check
          %p917 = pneg %p452
        $region174: #{tpu_custom_call.1} parent=103 // pred_check_branch
          %919 = sbr.rel (%p917) target = $region176
        $region175: #{tpu_custom_call.1} parent=103 // pred_region
          %920 = dma.done [#allocation30], 512
        $region176: #{tpu_custom_call.1} parent=103 // pred_fallthru
          _
        // Predicated region
        $region177: #{tpu_custom_call.1} parent=103 // pred_check
          %p921 = pneg %p473
        $region178: #{tpu_custom_call.1} parent=103 // pred_check_branch
          %923 = sbr.rel (%p921) target = $region180
        $region179: #{tpu_custom_call.1} parent=103 // pred_region
          %924 = dma.done [#allocation30], 16
        $region180: #{tpu_custom_call.1} parent=103 // pred_fallthru
          _
        // Predicated region
        $region181: #{tpu_custom_call.1} parent=103 // pred_check
          %p925 = pneg %p494
        $region182: #{tpu_custom_call.1} parent=103 // pred_check_branch
          %927 = sbr.rel (%p925) target = $region184
        $region183: #{tpu_custom_call.1} parent=103 // pred_region
          %928 = dma.done [#allocation33], 16
        $region184: #{tpu_custom_call.1} parent=103 // pred_fallthru
          _
        // Predicated region
        $region185: #{tpu_custom_call.1} parent=103 // pred_check
          %p929 = pneg %p515
        $region186: #{tpu_custom_call.1} parent=103 // pred_check_branch
          %931 = sbr.rel (%p929) target = $region188
        $region187: #{tpu_custom_call.1} parent=103 // pred_region
          %932 = dma.done [#allocation33], 16
        $region188: #{tpu_custom_call.1} parent=103 // pred_fallthru
          _
        %s933 = sand.u32 %s72, 1
        %s934 = scalar_lea.sflag [#allocation3], %s933
        %s935 = sand.u32 %s72, 1
        %s936 = smul.addr %s935, 8
        %s937 = scalar_lea.vmem [#allocation2], %s936
        %p938 = pneg %p85
        %p939 = pneg %p82
        %s940 = sand.u32 %s50, 1
        %s941 = scalar_lea.sflag [#allocation6], %s940
        %s942 = sand.u32 %s98, 1
        %s943 = smul.addr %s942, 8
        %s944 = scalar_lea.vmem [#allocation5], %s943
        %p945 = pneg %p111
        %p946 = pneg %p108
        %s947 = sand.u32 %s50, 1
        %s948 = scalar_lea.sflag [#allocation6], %s947
        %s949 = sand.u32 %s124, 1
        %s950 = smul.addr %s949, 8
        %s951 = scalar_lea.vmem [#allocation7], %s950
        %p952 = pneg %p137
        %p953 = pneg %p134
        %p954 = pneg %p158
        %p955 = pneg %p155
        %p956 = pneg %p179
        %p957 = pneg %p176
        %p958 = pneg %p200
        %p959 = pneg %p197
        %p960 = pneg %p221
        %p961 = pneg %p218
        %p962 = pneg %p242
        %p963 = pneg %p239
        %p964 = pneg %p263
        %p965 = pneg %p260
        %p966 = pneg %p284
        %p967 = pneg %p281
        %p968 = pneg %p305
        %p969 = pneg %p302
        %p970 = pneg %p326
        %p971 = pneg %p323
        %p972 = pneg %p347
        %p973 = pneg %p344
        %p974 = pneg %p368
        %p975 = pneg %p365
        %p976 = pneg %p389
        %p977 = pneg %p386
        %p978 = pneg %p410
        %p979 = pneg %p407
        %p980 = pneg %p431
        %p981 = pneg %p428
        %p982 = pneg %p452
        %p983 = pneg %p449
        %p984 = pneg %p473
        %p985 = pneg %p470
        %p986 = pneg %p494
        %p987 = pneg %p491
        %p988 = pneg %p515
        %p989 = pneg %p512
        %p990 = pneg %p543
        %p991 = pneg %p540
        %s992 = sand.u32 %s530, 1
        %s993 = scalar_lea.sflag [#allocation4], %s992
        %s994 = sand.u32 %s530, 1
        %s995 = smul.addr %s994, 8
        %s996 = scalar_lea.vmem [#allocation35], %s995
        %v998 = vld [vmem:[%s838] sm:$0xff]
        %v999 = vpack.c.bf16 %v998, %v998
        %v1000 = vld [vmem:[%s847] sm:$0xff]
        %v1001 = vpack.c.bf16 %v1000, %v1000
        %v1002 = vld [vmem:[%s856] sm:$0xff]
        %v1003 = vpack.c.bf16 %v1002, %v1002
        %v1004 = vld [vmem:[#allocation8] sm:$0xf]
        %v1005 = vld [vmem:[#allocation8 + $0x4] sm:$0xf]
        %v1006 = vld [vmem:[#allocation8 + $0x8] sm:$0xf]
        %v1007 = vld [vmem:[#allocation8 + $0xc] sm:$0xf]
        %v1008 = vld [vmem:[#allocation10] sm:$0x1]
        %v1010 = vlaneseq
        %v1011 = vshrl.u32 %v1010, 7
        %v1012 = vsub.s32 0, %v1011
        %v1013 = vrot.slane %v1008, %v1012
        %v1019 = vunpack.c.l.b16 %v1004
        %v1020 = vunpack.c.l.b16 %v1005
        %v1021 = vunpack.c.l.b16 %v1006
        %v1022 = vunpack.c.l.b16 %v1007
        %v1023 = vpack.c.b16 %v1020, %v1019
        %v1024 = vpack.c.b16 %v1022, %v1021
        %vm1027 = vcmask 261120
        %v1029 = vsel %vm1027, %v999, 0
        %1031 = vmatprep.subr.bf16.mxu0 0
        %1032 = vmatpush1.bf16.msra.mxu0 %v1023
        %1033 = vmatprep.subr.bf16.mxu0 0
        %1034 = vmatpush1.bf16.msra.mxu0 %v1024
        %1035 = vmatprep.subr.bf16.mxu0 0
        %1036 = vmatpush1.bf16.msra.mxu0 0
        %1037 = vmatprep.subr.bf16.mxu0 0
        %1038 = vmatpush1.bf16.msra.mxu0 0
        %1039 = vmatprep.subr.bf16.mxu0 0
        %1040 = vmatpush1.bf16.msra.mxu0 0
        %1041 = vmatprep.subr.bf16.mxu0 0
        %1042 = vmatpush1.bf16.msra.mxu0 0
        %1043 = vmatprep.subr.bf16.mxu0 0
        %1044 = vmatpush1.bf16.msra.mxu0 0
        %1045 = vmatprep.subr.bf16.mxu0 0
        %1046 = vmatpush1.bf16.msra.mxu0 0
        %1047 = vmatprep.subr.bf16.mxu0 0
        %1048 = vmatpush1.bf16.msra.mxu0 0
        %1049 = vmatprep.subr.bf16.mxu0 0
        %1050 = vmatpush1.bf16.msra.mxu0 0
        %1051 = vmatprep.subr.bf16.mxu0 0
        %1052 = vmatpush1.bf16.msra.mxu0 0
        %1053 = vmatprep.subr.bf16.mxu0 0
        %1054 = vmatpush1.bf16.msra.mxu0 0
        %1055 = vmatprep.subr.bf16.mxu0 0
        %1056 = vmatpush1.bf16.msra.mxu0 0
        %1057 = vmatprep.subr.bf16.mxu0 0
        %1058 = vmatpush1.bf16.msra.mxu0 0
        %1059 = vmatprep.subr.bf16.mxu0 0
        %1060 = vmatpush1.bf16.msra.mxu0 0
        %1061 = vmatprep.subr.bf16.mxu0 0
        %1062 = vmatpush1.bf16.msra.mxu0 0
        %1063 = vmatprep.mubr.bf16.mxu0 0
        %1064 = vmatmul.mubr.bf16.gmra.mrb[0].mxu0 %v1029
        %v1065 = vpop.f32.mrb[0].mxu0
        %v1066 = vadd.f32 %v1013, %v1065
        %v1067 = vpop.f32.mrb[0].mxu0
        %v1068 = vpop.f32.mrb[0].mxu0
        %v1069 = vpop.f32.mrb[0].mxu0
        %1070 = vdwg.mxu0
        %v1071 = vpack.c.bf16 %v1066, %v1066
        %v1072 = vld [vmem:[#allocation11] sm:$0xf]
        %v1073 = vld [vmem:[#allocation11 + $0x4] sm:$0xf]
        %v1074 = vld [vmem:[#allocation11 + $0x8] sm:$0xf]
        %v1075 = vld [vmem:[#allocation11 + $0xc] sm:$0xf]
        %v1076 = vld [vmem:[#allocation13] sm:$0x1]
        %v1078 = vlaneseq
        %v1079 = vshrl.u32 %v1078, 7
        %v1080 = vsub.s32 0, %v1079
        %v1081 = vrot.slane %v1076, %v1080
        %v1087 = vunpack.c.l.b16 %v1072
        %v1088 = vunpack.c.l.b16 %v1073
        %v1089 = vunpack.c.l.b16 %v1074
        %v1090 = vunpack.c.l.b16 %v1075
        %v1091 = vpack.c.b16 %v1088, %v1087
        %v1092 = vpack.c.b16 %v1090, %v1089
        %v1096 = vsel %vm1027, %v1001, 0
        %1098 = vmatprep.subr.bf16.mxu0 0
        %1099 = vmatpush1.bf16.msra.mxu0 %v1091
        %1100 = vmatprep.subr.bf16.mxu0 0
        %1101 = vmatpush1.bf16.msra.mxu0 %v1092
        %1102 = vmatprep.subr.bf16.mxu0 0
        %1103 = vmatpush1.bf16.msra.mxu0 0
        %1104 = vmatprep.subr.bf16.mxu0 0
        %1105 = vmatpush1.bf16.msra.mxu0 0
        %1106 = vmatprep.subr.bf16.mxu0 0
        %1107 = vmatpush1.bf16.msra.mxu0 0
        %1108 = vmatprep.subr.bf16.mxu0 0
        %1109 = vmatpush1.bf16.msra.mxu0 0
        %1110 = vmatprep.subr.bf16.mxu0 0
        %1111 = vmatpush1.bf16.msra.mxu0 0
        %1112 = vmatprep.subr.bf16.mxu0 0
        %1113 = vmatpush1.bf16.msra.mxu0 0
        %1114 = vmatprep.subr.bf16.mxu0 0
        %1115 = vmatpush1.bf16.msra.mxu0 0
        %1116 = vmatprep.subr.bf16.mxu0 0
        %1117 = vmatpush1.bf16.msra.mxu0 0
        %1118 = vmatprep.subr.bf16.mxu0 0
        %1119 = vmatpush1.bf16.msra.mxu0 0
        %1120 = vmatprep.subr.bf16.mxu0 0
        %1121 = vmatpush1.bf16.msra.mxu0 0
        %1122 = vmatprep.subr.bf16.mxu0 0
        %1123 = vmatpush1.bf16.msra.mxu0 0
        %1124 = vmatprep.subr.bf16.mxu0 0
        %1125 = vmatpush1.bf16.msra.mxu0 0
        %1126 = vmatprep.subr.bf16.mxu0 0
        %1127 = vmatpush1.bf16.msra.mxu0 0
        %1128 = vmatprep.subr.bf16.mxu0 0
        %1129 = vmatpush1.bf16.msra.mxu0 0
        %1130 = vmatprep.mubr.bf16.mxu0 0
        %1131 = vmatmul.mubr.bf16.gmra.mrb[0].mxu0 %v1096
        %v1132 = vpop.f32.mrb[0].mxu0
        %v1133 = vadd.f32 %v1081, %v1132
        %v1134 = vpop.f32.mrb[0].mxu0
        %v1135 = vpop.f32.mrb[0].mxu0
        %v1136 = vpop.f32.mrb[0].mxu0
        %1137 = vdwg.mxu0
        %v1138 = vpack.c.bf16 %v1133, %v1133
        %v1139 = vld [vmem:[#allocation14] sm:$0xf]
        %v1140 = vld [vmem:[#allocation14 + $0x4] sm:$0xf]
        %v1141 = vld [vmem:[#allocation14 + $0x8] sm:$0xf]
        %v1142 = vld [vmem:[#allocation14 + $0xc] sm:$0xf]
        %v1143 = vld [vmem:[#allocation16] sm:$0x1]
        %v1145 = vlaneseq
        %v1146 = vshrl.u32 %v1145, 7
        %v1147 = vsub.s32 0, %v1146
        %v1148 = vrot.slane %v1143, %v1147
        %v1154 = vunpack.c.l.b16 %v1139
        %v1155 = vunpack.c.l.b16 %v1140
        %v1156 = vunpack.c.l.b16 %v1141
        %v1157 = vunpack.c.l.b16 %v1142
        %v1158 = vpack.c.b16 %v1155, %v1154
        %v1159 = vpack.c.b16 %v1157, %v1156
        %v1163 = vsel %vm1027, %v1003, 0
        %1165 = vmatprep.subr.bf16.mxu0 0
        %1166 = vmatpush1.bf16.msra.mxu0 %v1158
        %1167 = vmatprep.subr.bf16.mxu0 0
        %1168 = vmatpush1.bf16.msra.mxu0 %v1159
        %1169 = vmatprep.subr.bf16.mxu0 0
        %1170 = vmatpush1.bf16.msra.mxu0 0
        %1171 = vmatprep.subr.bf16.mxu0 0
        %1172 = vmatpush1.bf16.msra.mxu0 0
        %1173 = vmatprep.subr.bf16.mxu0 0
        %1174 = vmatpush1.bf16.msra.mxu0 0
        %1175 = vmatprep.subr.bf16.mxu0 0
        %1176 = vmatpush1.bf16.msra.mxu0 0
        %1177 = vmatprep.subr.bf16.mxu0 0
        %1178 = vmatpush1.bf16.msra.mxu0 0
        %1179 = vmatprep.subr.bf16.mxu0 0
        %1180 = vmatpush1.bf16.msra.mxu0 0
        %1181 = vmatprep.subr.bf16.mxu0 0
        %1182 = vmatpush1.bf16.msra.mxu0 0
        %1183 = vmatprep.subr.bf16.mxu0 0
        %1184 = vmatpush1.bf16.msra.mxu0 0
        %1185 = vmatprep.subr.bf16.mxu0 0
        %1186 = vmatpush1.bf16.msra.mxu0 0
        %1187 = vmatprep.subr.bf16.mxu0 0
        %1188 = vmatpush1.bf16.msra.mxu0 0
        %1189 = vmatprep.subr.bf16.mxu0 0
        %1190 = vmatpush1.bf16.msra.mxu0 0
        %1191 = vmatprep.subr.bf16.mxu0 0
        %1192 = vmatpush1.bf16.msra.mxu0 0
        %1193 = vmatprep.subr.bf16.mxu0 0
        %1194 = vmatpush1.bf16.msra.mxu0 0
        %1195 = vmatprep.subr.bf16.mxu0 0
        %1196 = vmatpush1.bf16.msra.mxu0 0
        %1197 = vmatprep.mubr.bf16.mxu0 0
        %1198 = vmatmul.mubr.bf16.gmra.mrb[0].mxu0 %v1163
        %v1199 = vpop.f32.mrb[0].mxu0
        %v1200 = vadd.f32 %v1148, %v1199
        %v1201 = vpop.f32.mrb[0].mxu0
        %v1202 = vpop.f32.mrb[0].mxu0
        %v1203 = vpop.f32.mrb[0].mxu0
        %1204 = vdwg.mxu0
        %v1205 = vpack.c.bf16 %v1200, %v1200
        %vm1206 = vcmask 64512
        %v1208 = vsel %vm1206, %v1071, 0
        %v1211 = vsel %vm1206, %v1138, 0
        %1213 = vmatprep.subr.bf16.mxu0 0
        %1214 = vmatpush1.bf16.xpose.msra.mxu0 %v1211
        %1215 = vmatprep.subr.bf16.mxu0 0
        %1216 = vmatpush1.bf16.xpose.msra.mxu0 0
        %1217 = vmatprep.subr.bf16.mxu0 0
        %1218 = vmatpush1.bf16.xpose.msra.mxu0 0
        %1219 = vmatprep.subr.bf16.mxu0 0
        %1220 = vmatpush1.bf16.xpose.msra.mxu0 0
        %1221 = vmatprep.subr.bf16.mxu0 0
        %1222 = vmatpush1.bf16.xpose.msra.mxu0 0
        %1223 = vmatprep.subr.bf16.mxu0 0
        %1224 = vmatpush1.bf16.xpose.msra.mxu0 0
        %1225 = vmatprep.subr.bf16.mxu0 0
        %1226 = vmatpush1.bf16.xpose.msra.mxu0 0
        %1227 = vmatprep.subr.bf16.mxu0 0
        %1228 = vmatpush1.bf16.xpose.msra.mxu0 0
        %1229 = vmatprep.subr.bf16.mxu0 0
        %1230 = vmatpush1.bf16.xpose.msra.mxu0 0
        %1231 = vmatprep.subr.bf16.mxu0 0
        %1232 = vmatpush1.bf16.xpose.msra.mxu0 0
        %1233 = vmatprep.subr.bf16.mxu0 0
        %1234 = vmatpush1.bf16.xpose.msra.mxu0 0
        %1235 = vmatprep.subr.bf16.mxu0 0
        %1236 = vmatpush1.bf16.xpose.msra.mxu0 0
        %1237 = vmatprep.subr.bf16.mxu0 0
        %1238 = vmatpush1.bf16.xpose.msra.mxu0 0
        %1239 = vmatprep.subr.bf16.mxu0 0
        %1240 = vmatpush1.bf16.xpose.msra.mxu0 0
        %1241 = vmatprep.subr.bf16.mxu0 0
        %1242 = vmatpush1.bf16.xpose.msra.mxu0 0
        %1243 = vmatprep.subr.bf16.mxu0 0
        %1244 = vmatpush1.bf16.xpose.msra.mxu0 0
        %1245 = vmatprep.mubr.bf16.mxu0 0
        %1246 = vmatmul.mubr.bf16.gmra.mrb[0].mxu0 %v1208
        %v1247 = vpop.f32.mrb[0].mxu0
        %v1248 = vadd.f32 0.0, %v1247
        %v1249 = vpop.f32.mrb[0].mxu0
        %v1250 = vpop.f32.mrb[0].mxu0
        %v1251 = vpop.f32.mrb[0].mxu0
        %1252 = vdwg.mxu0
        %v1253 = vsel %vm1206, %v1248, -inf
        %1254 = vmax.xlane.f32.xlu0 %v1253
        %v1255 = vpop.xlane.xlu0 %1254
        %v1256 = vsub.f32 %v1248, %v1255
        %v1257 = vmul.f32 %v1256, 1.442695
        %v1258 = vpow.pop %v1257
        %v1259 = vsel %vm1206, %v1258, 0.0
        %1260 = vadd.xlane.f32.xlu0 %v1259
        %v1261 = vpop.xlane.xlu0 %1260
        %v1262 = vrcp.pop %v1261
        %v1263 = vmul.f32 %v1258, %v1262
        %v1264 = vpack.c.bf16 %v1263, %v1263
        %v1266 = vsel %vm1206, %v1264, 0
        %vm1268 = vcmask 1043456
        %v1270 = vsel %vm1268, %v1205, 0
        %1272 = vmatprep.subr.bf16.mxu0 0
        %1273 = vmatpush1.bf16.msra.mxu0 %v1270
        %1274 = vmatprep.subr.bf16.mxu0 0
        %1275 = vmatpush1.bf16.msra.mxu0 0
        %1276 = vmatprep.subr.bf16.mxu0 0
        %1277 = vmatpush1.bf16.msra.mxu0 0
        %1278 = vmatprep.subr.bf16.mxu0 0
        %1279 = vmatpush1.bf16.msra.mxu0 0
        %1280 = vmatprep.subr.bf16.mxu0 0
        %1281 = vmatpush1.bf16.msra.mxu0 0
        %1282 = vmatprep.subr.bf16.mxu0 0
        %1283 = vmatpush1.bf16.msra.mxu0 0
        %1284 = vmatprep.subr.bf16.mxu0 0
        %1285 = vmatpush1.bf16.msra.mxu0 0
        %1286 = vmatprep.subr.bf16.mxu0 0
        %1287 = vmatpush1.bf16.msra.mxu0 0
        %1288 = vmatprep.subr.bf16.mxu0 0
        %1289 = vmatpush1.bf16.msra.mxu0 0
        %1290 = vmatprep.subr.bf16.mxu0 0
        %1291 = vmatpush1.bf16.msra.mxu0 0
        %1292 = vmatprep.subr.bf16.mxu0 0
        %1293 = vmatpush1.bf16.msra.mxu0 0
        %1294 = vmatprep.subr.bf16.mxu0 0
        %1295 = vmatpush1.bf16.msra.mxu0 0
        %1296 = vmatprep.subr.bf16.mxu0 0
        %1297 = vmatpush1.bf16.msra.mxu0 0
        %1298 = vmatprep.subr.bf16.mxu0 0
        %1299 = vmatpush1.bf16.msra.mxu0 0
        %1300 = vmatprep.subr.bf16.mxu0 0
        %1301 = vmatpush1.bf16.msra.mxu0 0
        %1302 = vmatprep.subr.bf16.mxu0 0
        %1303 = vmatpush1.bf16.msra.mxu0 0
        %1304 = vmatprep.mubr.bf16.mxu0 0
        %1305 = vmatmul.mubr.bf16.gmra.mrb[0].mxu0 %v1266
        %v1306 = vpop.f32.mrb[0].mxu0
        %v1307 = vadd.f32 0.0, %v1306
        %v1308 = vpop.f32.mrb[0].mxu0
        %v1309 = vpop.f32.mrb[0].mxu0
        %v1310 = vpop.f32.mrb[0].mxu0
        %1311 = vdwg.mxu0
        %1313 = vrot.lane.b32.xlu0 %v1071, 120
        %v1314 = vpop.permute.xlu0 %1313
        %1316 = vrot.lane.b32.xlu0 %v1138, 120
        %v1317 = vpop.permute.xlu0 %1316
        %v1319 = vsel %vm1206, %v1314, 0
        %v1322 = vsel %vm1206, %v1317, 0
        %1324 = vmatprep.subr.bf16.mxu0 0
        %1325 = vmatpush1.bf16.xpose.msra.mxu0 %v1322
        %1326 = vmatprep.subr.bf16.mxu0 0
        %1327 = vmatpush1.bf16.xpose.msra.mxu0 0
        %1328 = vmatprep.subr.bf16.mxu0 0
        %1329 = vmatpush1.bf16.xpose.msra.mxu0 0
        %1330 = vmatprep.subr.bf16.mxu0 0
        %1331 = vmatpush1.bf16.xpose.msra.mxu0 0
        %1332 = vmatprep.subr.bf16.mxu0 0
        %1333 = vmatpush1.bf16.xpose.msra.mxu0 0
        %1334 = vmatprep.subr.bf16.mxu0 0
        %1335 = vmatpush1.bf16.xpose.msra.mxu0 0
        %1336 = vmatprep.subr.bf16.mxu0 0
        %1337 = vmatpush1.bf16.xpose.msra.mxu0 0
        %1338 = vmatprep.subr.bf16.mxu0 0
        %1339 = vmatpush1.bf16.xpose.msra.mxu0 0
        %1340 = vmatprep.subr.bf16.mxu0 0
        %1341 = vmatpush1.bf16.xpose.msra.mxu0 0
        %1342 = vmatprep.subr.bf16.mxu0 0
        %1343 = vmatpush1.bf16.xpose.msra.mxu0 0
        %1344 = vmatprep.subr.bf16.mxu0 0
        %1345 = vmatpush1.bf16.xpose.msra.mxu0 0
        %1346 = vmatprep.subr.bf16.mxu0 0
        %1347 = vmatpush1.bf16.xpose.msra.mxu0 0
        %1348 = vmatprep.subr.bf16.mxu0 0
        %1349 = vmatpush1.bf16.xpose.msra.mxu0 0
        %1350 = vmatprep.subr.bf16.mxu0 0
        %1351 = vmatpush1.bf16.xpose.msra.mxu0 0
        %1352 = vmatprep.subr.bf16.mxu0 0
        %1353 = vmatpush1.bf16.xpose.msra.mxu0 0
        %1354 = vmatprep.subr.bf16.mxu0 0
        %1355 = vmatpush1.bf16.xpose.msra.mxu0 0
        %1356 = vmatprep.mubr.bf16.mxu0 0
        %1357 = vmatmul.mubr.bf16.gmra.mrb[0].mxu0 %v1319
        %v1358 = vpop.f32.mrb[0].mxu0
        %v1359 = vadd.f32 0.0, %v1358
        %v1360 = vpop.f32.mrb[0].mxu0
        %v1361 = vpop.f32.mrb[0].mxu0
        %v1362 = vpop.f32.mrb[0].mxu0
        %1363 = vdwg.mxu0
        %v1364 = vsel %vm1206, %v1359, -inf
        %1365 = vmax.xlane.f32.xlu0 %v1364
        %v1366 = vpop.xlane.xlu0 %1365
        %v1367 = vsub.f32 %v1359, %v1366
        %v1368 = vmul.f32 %v1367, 1.442695
        %v1369 = vpow.pop %v1368
        %v1370 = vsel %vm1206, %v1369, 0.0
        %1371 = vadd.xlane.f32.xlu0 %v1370
        %v1372 = vpop.xlane.xlu0 %1371
        %v1373 = vrcp.pop %v1372
        %v1374 = vmul.f32 %v1369, %v1373
        %v1375 = vpack.c.bf16 %v1374, %v1374
        %1377 = vrot.lane.b32.xlu0 %v1205, 120
        %v1378 = vpop.permute.xlu0 %1377
        %v1380 = vsel %vm1206, %v1375, 0
        %v1383 = vsel %vm1268, %v1378, 0
        %1385 = vmatprep.subr.bf16.mxu0 0
        %1386 = vmatpush1.bf16.msra.mxu0 %v1383
        %1387 = vmatprep.subr.bf16.mxu0 0
        %1388 = vmatpush1.bf16.msra.mxu0 0
        %1389 = vmatprep.subr.bf16.mxu0 0
        %1390 = vmatpush1.bf16.msra.mxu0 0
        %1391 = vmatprep.subr.bf16.mxu0 0
        %1392 = vmatpush1.bf16.msra.mxu0 0
        %1393 = vmatprep.subr.bf16.mxu0 0
        %1394 = vmatpush1.bf16.msra.mxu0 0
        %1395 = vmatprep.subr.bf16.mxu0 0
        %1396 = vmatpush1.bf16.msra.mxu0 0
        %1397 = vmatprep.subr.bf16.mxu0 0
        %1398 = vmatpush1.bf16.msra.mxu0 0
        %1399 = vmatprep.subr.bf16.mxu0 0
        %1400 = vmatpush1.bf16.msra.mxu0 0
        %1401 = vmatprep.subr.bf16.mxu0 0
        %1402 = vmatpush1.bf16.msra.mxu0 0
        %1403 = vmatprep.subr.bf16.mxu0 0
        %1404 = vmatpush1.bf16.msra.mxu0 0
        %1405 = vmatprep.subr.bf16.mxu0 0
        %1406 = vmatpush1.bf16.msra.mxu0 0
        %1407 = vmatprep.subr.bf16.mxu0 0
        %1408 = vmatpush1.bf16.msra.mxu0 0
        %1409 = vmatprep.subr.bf16.mxu0 0
        %1410 = vmatpush1.bf16.msra.mxu0 0
        %1411 = vmatprep.subr.bf16.mxu0 0
        %1412 = vmatpush1.bf16.msra.mxu0 0
        %1413 = vmatprep.subr.bf16.mxu0 0
        %1414 = vmatpush1.bf16.msra.mxu0 0
        %1415 = vmatprep.subr.bf16.mxu0 0
        %1416 = vmatpush1.bf16.msra.mxu0 0
        %1417 = vmatprep.mubr.bf16.mxu0 0
        %1418 = vmatmul.mubr.bf16.gmra.mrb[0].mxu0 %v1380
        %v1419 = vpop.f32.mrb[0].mxu0
        %v1420 = vadd.f32 0.0, %v1419
        %v1421 = vpop.f32.mrb[0].mxu0
        %v1422 = vpop.f32.mrb[0].mxu0
        %v1423 = vpop.f32.mrb[0].mxu0
        %1424 = vdwg.mxu0
        %1425 = vrot.lane.b32.xlu0 %v1071, 112
        %v1426 = vpop.permute.xlu0 %1425
        %1427 = vrot.lane.b32.xlu0 %v1138, 112
        %v1428 = vpop.permute.xlu0 %1427
        %v1430 = vsel %vm1206, %v1426, 0
        %v1433 = vsel %vm1206, %v1428, 0
        %1435 = vmatprep.subr.bf16.mxu0 0
        %1436 = vmatpush1.bf16.xpose.msra.mxu0 %v1433
        %1437 = vmatprep.subr.bf16.mxu0 0
        %1438 = vmatpush1.bf16.xpose.msra.mxu0 0
        %1439 = vmatprep.subr.bf16.mxu0 0
        %1440 = vmatpush1.bf16.xpose.msra.mxu0 0
        %1441 = vmatprep.subr.bf16.mxu0 0
        %1442 = vmatpush1.bf16.xpose.msra.mxu0 0
        %1443 = vmatprep.subr.bf16.mxu0 0
        %1444 = vmatpush1.bf16.xpose.msra.mxu0 0
        %1445 = vmatprep.subr.bf16.mxu0 0
        %1446 = vmatpush1.bf16.xpose.msra.mxu0 0
        %1447 = vmatprep.subr.bf16.mxu0 0
        %1448 = vmatpush1.bf16.xpose.msra.mxu0 0
        %1449 = vmatprep.subr.bf16.mxu0 0
        %1450 = vmatpush1.bf16.xpose.msra.mxu0 0
        %1451 = vmatprep.subr.bf16.mxu0 0
        %1452 = vmatpush1.bf16.xpose.msra.mxu0 0
        %1453 = vmatprep.subr.bf16.mxu0 0
        %1454 = vmatpush1.bf16.xpose.msra.mxu0 0
        %1455 = vmatprep.subr.bf16.mxu0 0
        %1456 = vmatpush1.bf16.xpose.msra.mxu0 0
        %1457 = vmatprep.subr.bf16.mxu0 0
        %1458 = vmatpush1.bf16.xpose.msra.mxu0 0
        %1459 = vmatprep.subr.bf16.mxu0 0
        %1460 = vmatpush1.bf16.xpose.msra.mxu0 0
        %1461 = vmatprep.subr.bf16.mxu0 0
        %1462 = vmatpush1.bf16.xpose.msra.mxu0 0
        %1463 = vmatprep.subr.bf16.mxu0 0
        %1464 = vmatpush1.bf16.xpose.msra.mxu0 0
        %1465 = vmatprep.subr.bf16.mxu0 0
        %1466 = vmatpush1.bf16.xpose.msra.mxu0 0
        %1467 = vmatprep.mubr.bf16.mxu0 0
        %1468 = vmatmul.mubr.bf16.gmra.mrb[0].mxu0 %v1430
        %v1469 = vpop.f32.mrb[0].mxu0
        %v1470 = vadd.f32 0.0, %v1469
        %v1471 = vpop.f32.mrb[0].mxu0
        %v1472 = vpop.f32.mrb[0].mxu0
        %v1473 = vpop.f32.mrb[0].mxu0
        %1474 = vdwg.mxu0
        %v1475 = vsel %vm1206, %v1470, -inf
        %1476 = vmax.xlane.f32.xlu0 %v1475
        %v1477 = vpop.xlane.xlu0 %1476
        %v1478 = vsub.f32 %v1470, %v1477
        %v1479 = vmul.f32 %v1478, 1.442695
        %v1480 = vpow.pop %v1479
        %v1481 = vsel %vm1206, %v1480, 0.0
        %1482 = vadd.xlane.f32.xlu0 %v1481
        %v1483 = vpop.xlane.xlu0 %1482
        %v1484 = vrcp.pop %v1483
        %v1485 = vmul.f32 %v1480, %v1484
        %v1486 = vpack.c.bf16 %v1485, %v1485
        %1487 = vrot.lane.b32.xlu0 %v1205, 112
        %v1488 = vpop.permute.xlu0 %1487
        %v1490 = vsel %vm1206, %v1486, 0
        %v1493 = vsel %vm1268, %v1488, 0
        %1495 = vmatprep.subr.bf16.mxu0 0
        %1496 = vmatpush1.bf16.msra.mxu0 %v1493
        %1497 = vmatprep.subr.bf16.mxu0 0
        %1498 = vmatpush1.bf16.msra.mxu0 0
        %1499 = vmatprep.subr.bf16.mxu0 0
        %1500 = vmatpush1.bf16.msra.mxu0 0
        %1501 = vmatprep.subr.bf16.mxu0 0
        %1502 = vmatpush1.bf16.msra.mxu0 0
        %1503 = vmatprep.subr.bf16.mxu0 0
        %1504 = vmatpush1.bf16.msra.mxu0 0
        %1505 = vmatprep.subr.bf16.mxu0 0
        %1506 = vmatpush1.bf16.msra.mxu0 0
        %1507 = vmatprep.subr.bf16.mxu0 0
        %1508 = vmatpush1.bf16.msra.mxu0 0
        %1509 = vmatprep.subr.bf16.mxu0 0
        %1510 = vmatpush1.bf16.msra.mxu0 0
        %1511 = vmatprep.subr.bf16.mxu0 0
        %1512 = vmatpush1.bf16.msra.mxu0 0
        %1513 = vmatprep.subr.bf16.mxu0 0
        %1514 = vmatpush1.bf16.msra.mxu0 0
        %1515 = vmatprep.subr.bf16.mxu0 0
        %1516 = vmatpush1.bf16.msra.mxu0 0
        %1517 = vmatprep.subr.bf16.mxu0 0
        %1518 = vmatpush1.bf16.msra.mxu0 0
        %1519 = vmatprep.subr.bf16.mxu0 0
        %1520 = vmatpush1.bf16.msra.mxu0 0
        %1521 = vmatprep.subr.bf16.mxu0 0
        %1522 = vmatpush1.bf16.msra.mxu0 0
        %1523 = vmatprep.subr.bf16.mxu0 0
        %1524 = vmatpush1.bf16.msra.mxu0 0
        %1525 = vmatprep.subr.bf16.mxu0 0
        %1526 = vmatpush1.bf16.msra.mxu0 0
        %1527 = vmatprep.mubr.bf16.mxu0 0
        %1528 = vmatmul.mubr.bf16.gmra.mrb[0].mxu0 %v1490
        %v1529 = vpop.f32.mrb[0].mxu0
        %v1530 = vadd.f32 0.0, %v1529
        %v1531 = vpop.f32.mrb[0].mxu0
        %v1532 = vpop.f32.mrb[0].mxu0
        %v1533 = vpop.f32.mrb[0].mxu0
        %1534 = vdwg.mxu0
        %1535 = vrot.lane.b32.xlu0 %v1071, 104
        %v1536 = vpop.permute.xlu0 %1535
        %1537 = vrot.lane.b32.xlu0 %v1138, 104
        %v1538 = vpop.permute.xlu0 %1537
        %v1540 = vsel %vm1206, %v1536, 0
        %v1543 = vsel %vm1206, %v1538, 0
        %1545 = vmatprep.subr.bf16.mxu0 0
        %1546 = vmatpush1.bf16.xpose.msra.mxu0 %v1543
        %1547 = vmatprep.subr.bf16.mxu0 0
        %1548 = vmatpush1.bf16.xpose.msra.mxu0 0
        %1549 = vmatprep.subr.bf16.mxu0 0
        %1550 = vmatpush1.bf16.xpose.msra.mxu0 0
        %1551 = vmatprep.subr.bf16.mxu0 0
        %1552 = vmatpush1.bf16.xpose.msra.mxu0 0
        %1553 = vmatprep.subr.bf16.mxu0 0
        %1554 = vmatpush1.bf16.xpose.msra.mxu0 0
        %1555 = vmatprep.subr.bf16.mxu0 0
        %1556 = vmatpush1.bf16.xpose.msra.mxu0 0
        %1557 = vmatprep.subr.bf16.mxu0 0
        %1558 = vmatpush1.bf16.xpose.msra.mxu0 0
        %1559 = vmatprep.subr.bf16.mxu0 0
        %1560 = vmatpush1.bf16.xpose.msra.mxu0 0
        %1561 = vmatprep.subr.bf16.mxu0 0
        %1562 = vmatpush1.bf16.xpose.msra.mxu0 0
        %1563 = vmatprep.subr.bf16.mxu0 0
        %1564 = vmatpush1.bf16.xpose.msra.mxu0 0
        %1565 = vmatprep.subr.bf16.mxu0 0
        %1566 = vmatpush1.bf16.xpose.msra.mxu0 0
        %1567 = vmatprep.subr.bf16.mxu0 0
        %1568 = vmatpush1.bf16.xpose.msra.mxu0 0
        %1569 = vmatprep.subr.bf16.mxu0 0
        %1570 = vmatpush1.bf16.xpose.msra.mxu0 0
        %1571 = vmatprep.subr.bf16.mxu0 0
        %1572 = vmatpush1.bf16.xpose.msra.mxu0 0
        %1573 = vmatprep.subr.bf16.mxu0 0
        %1574 = vmatpush1.bf16.xpose.msra.mxu0 0
        %1575 = vmatprep.subr.bf16.mxu0 0
        %1576 = vmatpush1.bf16.xpose.msra.mxu0 0
        %1577 = vmatprep.mubr.bf16.mxu0 0
        %1578 = vmatmul.mubr.bf16.gmra.mrb[0].mxu0 %v1540
        %v1579 = vpop.f32.mrb[0].mxu0
        %v1580 = vadd.f32 0.0, %v1579
        %v1581 = vpop.f32.mrb[0].mxu0
        %v1582 = vpop.f32.mrb[0].mxu0
        %v1583 = vpop.f32.mrb[0].mxu0
        %1584 = vdwg.mxu0
        %v1585 = vsel %vm1206, %v1580, -inf
        %1586 = vmax.xlane.f32.xlu0 %v1585
        %v1587 = vpop.xlane.xlu0 %1586
        %v1588 = vsub.f32 %v1580, %v1587
        %v1589 = vmul.f32 %v1588, 1.442695
        %v1590 = vpow.pop %v1589
        %v1591 = vsel %vm1206, %v1590, 0.0
        %1592 = vadd.xlane.f32.xlu0 %v1591
        %v1593 = vpop.xlane.xlu0 %1592
        %v1594 = vrcp.pop %v1593
        %v1595 = vmul.f32 %v1590, %v1594
        %v1596 = vpack.c.bf16 %v1595, %v1595
        %1597 = vrot.lane.b32.xlu0 %v1205, 104
        %v1598 = vpop.permute.xlu0 %1597
        %v1600 = vsel %vm1206, %v1596, 0
        %v1603 = vsel %vm1268, %v1598, 0
        %1605 = vmatprep.subr.bf16.mxu0 0
        %1606 = vmatpush1.bf16.msra.mxu0 %v1603
        %1607 = vmatprep.subr.bf16.mxu0 0
        %1608 = vmatpush1.bf16.msra.mxu0 0
        %1609 = vmatprep.subr.bf16.mxu0 0
        %1610 = vmatpush1.bf16.msra.mxu0 0
        %1611 = vmatprep.subr.bf16.mxu0 0
        %1612 = vmatpush1.bf16.msra.mxu0 0
        %1613 = vmatprep.subr.bf16.mxu0 0
        %1614 = vmatpush1.bf16.msra.mxu0 0
        %1615 = vmatprep.subr.bf16.mxu0 0
        %1616 = vmatpush1.bf16.msra.mxu0 0
        %1617 = vmatprep.subr.bf16.mxu0 0
        %1618 = vmatpush1.bf16.msra.mxu0 0
        %1619 = vmatprep.subr.bf16.mxu0 0
        %1620 = vmatpush1.bf16.msra.mxu0 0
        %1621 = vmatprep.subr.bf16.mxu0 0
        %1622 = vmatpush1.bf16.msra.mxu0 0
        %1623 = vmatprep.subr.bf16.mxu0 0
        %1624 = vmatpush1.bf16.msra.mxu0 0
        %1625 = vmatprep.subr.bf16.mxu0 0
        %1626 = vmatpush1.bf16.msra.mxu0 0
        %1627 = vmatprep.subr.bf16.mxu0 0
        %1628 = vmatpush1.bf16.msra.mxu0 0
        %1629 = vmatprep.subr.bf16.mxu0 0
        %1630 = vmatpush1.bf16.msra.mxu0 0
        %1631 = vmatprep.subr.bf16.mxu0 0
        %1632 = vmatpush1.bf16.msra.mxu0 0
        %1633 = vmatprep.subr.bf16.mxu0 0
        %1634 = vmatpush1.bf16.msra.mxu0 0
        %1635 = vmatprep.subr.bf16.mxu0 0
        %1636 = vmatpush1.bf16.msra.mxu0 0
        %1637 = vmatprep.mubr.bf16.mxu0 0
        %1638 = vmatmul.mubr.bf16.gmra.mrb[0].mxu0 %v1600
        %v1639 = vpop.f32.mrb[0].mxu0
        %v1640 = vadd.f32 0.0, %v1639
        %v1641 = vpop.f32.mrb[0].mxu0
        %v1642 = vpop.f32.mrb[0].mxu0
        %v1643 = vpop.f32.mrb[0].mxu0
        %1644 = vdwg.mxu0
        %1646 = vrot.lane.b32.xlu0 %v1420, 8
        %v1647 = vpop.permute.xlu0 %1646
        %1650 = vrot.lane.b32.xlu0 %v1530, 16
        %v1651 = vpop.permute.xlu0 %1650
        %1654 = vrot.lane.b32.xlu0 %v1640, 24
        %v1655 = vpop.permute.xlu0 %1654
        %v1657 = vsel %vm1206, %v1307, %v1647
        %vm1658 = vcmask 130048
        %v1659 = vsel %vm1658, %v1657, %v1651
        %vm1660 = vcmask 195584
        %v1661 = vsel %vm1660, %v1659, %v1655
        %v1662 = vpack.c.bf16 %v1661, %v1661
        %v1663 = vld [vmem:[#allocation17] sm:$0xf]
        %v1664 = vld [vmem:[#allocation17 + $0x4] sm:$0xf]
        %v1665 = vld [vmem:[#allocation17 + $0x8] sm:$0xf]
        %v1666 = vld [vmem:[#allocation17 + $0xc] sm:$0xf]
        %v1667 = vld [vmem:[#allocation19] sm:$0x1]
        %v1669 = vlaneseq
        %v1670 = vshrl.u32 %v1669, 7
        %v1671 = vsub.s32 0, %v1670
        %v1672 = vrot.slane %v1667, %v1671
        %v1678 = vunpack.c.l.b16 %v1663
        %v1679 = vunpack.c.l.b16 %v1664
        %v1680 = vunpack.c.l.b16 %v1665
        %v1681 = vunpack.c.l.b16 %v1666
        %v1682 = vpack.c.b16 %v1679, %v1678
        %v1683 = vpack.c.b16 %v1681, %v1680
        %v1687 = vsel %vm1027, %v1662, 0
        %1689 = vmatprep.subr.bf16.mxu0 0
        %1690 = vmatpush1.bf16.msra.mxu0 %v1682
        %1691 = vmatprep.subr.bf16.mxu0 0
        %1692 = vmatpush1.bf16.msra.mxu0 %v1683
        %1693 = vmatprep.subr.bf16.mxu0 0
        %1694 = vmatpush1.bf16.msra.mxu0 0
        %1695 = vmatprep.subr.bf16.mxu0 0
        %1696 = vmatpush1.bf16.msra.mxu0 0
        %1697 = vmatprep.subr.bf16.mxu0 0
        %1698 = vmatpush1.bf16.msra.mxu0 0
        %1699 = vmatprep.subr.bf16.mxu0 0
        %1700 = vmatpush1.bf16.msra.mxu0 0
        %1701 = vmatprep.subr.bf16.mxu0 0
        %1702 = vmatpush1.bf16.msra.mxu0 0
        %1703 = vmatprep.subr.bf16.mxu0 0
        %1704 = vmatpush1.bf16.msra.mxu0 0
        %1705 = vmatprep.subr.bf16.mxu0 0
        %1706 = vmatpush1.bf16.msra.mxu0 0
        %1707 = vmatprep.subr.bf16.mxu0 0
        %1708 = vmatpush1.bf16.msra.mxu0 0
        %1709 = vmatprep.subr.bf16.mxu0 0
        %1710 = vmatpush1.bf16.msra.mxu0 0
        %1711 = vmatprep.subr.bf16.mxu0 0
        %1712 = vmatpush1.bf16.msra.mxu0 0
        %1713 = vmatprep.subr.bf16.mxu0 0
        %1714 = vmatpush1.bf16.msra.mxu0 0
        %1715 = vmatprep.subr.bf16.mxu0 0
        %1716 = vmatpush1.bf16.msra.mxu0 0
        %1717 = vmatprep.subr.bf16.mxu0 0
        %1718 = vmatpush1.bf16.msra.mxu0 0
        %1719 = vmatprep.subr.bf16.mxu0 0
        %1720 = vmatpush1.bf16.msra.mxu0 0
        %1721 = vmatprep.mubr.bf16.mxu0 0
        %1722 = vmatmul.mubr.bf16.gmra.mrb[0].mxu0 %v1687
        %v1723 = vpop.f32.mrb[0].mxu0
        %v1724 = vadd.f32 %v1672, %v1723
        %v1725 = vpop.f32.mrb[0].mxu0
        %v1726 = vpop.f32.mrb[0].mxu0
        %v1727 = vpop.f32.mrb[0].mxu0
        %1728 = vdwg.mxu0
        %v1729 = vadd.f32 %v998, %v1724
        %v1730 = vsel %vm1027, %v1729, 0.0
        %1731 = vadd.xlane.f32.xlu0 %v1730
        %v1732 = vpop.xlane.xlu0 %1731
        %v1733 = vrcp.pop 32.0
        %v1734 = vmul.f32 %v1732, %v1733
        %v1735 = vsub.f32 %v1729, %v1734
        %v1736 = vmul.f32 %v1735, %v1735
        %v1737 = vsel %vm1027, %v1736, 0.0
        %1738 = vadd.xlane.f32.xlu0 %v1737
        %v1739 = vpop.xlane.xlu0 %1738
        %v1740 = vmul.f32 %v1739, %v1733
        %v1741 = vadd.f32 %v1740, 1e-05
        %v1742 = vrsqrt.pop %v1741
        %v1743 = vmul.f32 %v1735, %v1742
        %v1744 = vld [vmem:[#allocation20] sm:$0x1]
        %v1746 = vlaneseq
        %v1747 = vshrl.u32 %v1746, 7
        %v1748 = vsub.s32 0, %v1747
        %v1749 = vrot.slane %v1744, %v1748
        %v1751 = vmul.f32 %v1743, %v1749
        %v1752 = vld [vmem:[#allocation22] sm:$0x1]
        %v1754 = vlaneseq
        %v1755 = vshrl.u32 %v1754, 7
        %v1756 = vsub.s32 0, %v1755
        %v1757 = vrot.slane %v1752, %v1756
        %v1759 = vadd.f32 %v1751, %v1757
        %v1760 = vadd.f32 %v998, %v1759
        %v1761 = vsel %vm1027, %v1760, 0.0
        %1762 = vadd.xlane.f32.xlu0 %v1761
        %v1763 = vpop.xlane.xlu0 %1762
        %v1764 = vmul.f32 %v1763, %v1733
        %v1765 = vsub.f32 %v1760, %v1764
        %v1766 = vmul.f32 %v1765, %v1765
        %v1767 = vsel %vm1027, %v1766, 0.0
        %1768 = vadd.xlane.f32.xlu0 %v1767
        %v1769 = vpop.xlane.xlu0 %1768
        %v1770 = vmul.f32 %v1769, %v1733
        %v1771 = vadd.f32 %v1770, 1e-05
        %v1772 = vrsqrt.pop %v1771
        %v1773 = vmul.f32 %v1765, %v1772
        %v1774 = vld [vmem:[#allocation23] sm:$0x1]
        %v1776 = vlaneseq
        %v1777 = vshrl.u32 %v1776, 7
        %v1778 = vsub.s32 0, %v1777
        %v1779 = vrot.slane %v1774, %v1778
        %v1781 = vmul.f32 %v1773, %v1779
        %v1782 = vld [vmem:[#allocation25] sm:$0x1]
        %v1784 = vlaneseq
        %v1785 = vshrl.u32 %v1784, 7
        %v1786 = vsub.s32 0, %v1785
        %v1787 = vrot.slane %v1782, %v1786
        %v1789 = vadd.f32 %v1781, %v1787
        %v1790 = vpack.c.bf16 %v1789, %v1789
        %v1791 = vld [vmem:[#allocation26] sm:$0xf]
        %v1792 = vld [vmem:[#allocation26 + $0x4] sm:$0xf]
        %v1793 = vld [vmem:[#allocation26 + $0x8] sm:$0xf]
        %v1794 = vld [vmem:[#allocation26 + $0xc] sm:$0xf]
        %v1795 = vld [vmem:[#allocation28] sm:$0x1]
        %v1797 = vlaneseq
        %v1798 = vshrl.u32 %v1797, 7
        %v1799 = vsub.s32 0, %v1798
        %v1800 = vrot.slane %v1795, %v1799
        %v1806 = vunpack.c.l.b16 %v1791
        %v1807 = vunpack.c.l.b16 %v1792
        %v1808 = vunpack.c.l.b16 %v1793
        %v1809 = vunpack.c.l.b16 %v1794
        %v1810 = vpack.c.b16 %v1807, %v1806
        %v1811 = vpack.c.b16 %v1809, %v1808
        %v1815 = vsel %vm1027, %v1790, 0
        %1817 = vmatprep.subr.bf16.mxu0 0
        %1818 = vmatpush1.bf16.msra.mxu0 %v1810
        %1819 = vmatprep.subr.bf16.mxu0 0
        %1820 = vmatpush1.bf16.msra.mxu0 %v1811
        %1821 = vmatprep.subr.bf16.mxu0 0
        %1822 = vmatpush1.bf16.msra.mxu0 0
        %1823 = vmatprep.subr.bf16.mxu0 0
        %1824 = vmatpush1.bf16.msra.mxu0 0
        %1825 = vmatprep.subr.bf16.mxu0 0
        %1826 = vmatpush1.bf16.msra.mxu0 0
        %1827 = vmatprep.subr.bf16.mxu0 0
        %1828 = vmatpush1.bf16.msra.mxu0 0
        %1829 = vmatprep.subr.bf16.mxu0 0
        %1830 = vmatpush1.bf16.msra.mxu0 0
        %1831 = vmatprep.subr.bf16.mxu0 0
        %1832 = vmatpush1.bf16.msra.mxu0 0
        %1833 = vmatprep.subr.bf16.mxu0 0
        %1834 = vmatpush1.bf16.msra.mxu0 0
        %1835 = vmatprep.subr.bf16.mxu0 0
        %1836 = vmatpush1.bf16.msra.mxu0 0
        %1837 = vmatprep.subr.bf16.mxu0 0
        %1838 = vmatpush1.bf16.msra.mxu0 0
        %1839 = vmatprep.subr.bf16.mxu0 0
        %1840 = vmatpush1.bf16.msra.mxu0 0
        %1841 = vmatprep.subr.bf16.mxu0 0
        %1842 = vmatpush1.bf16.msra.mxu0 0
        %1843 = vmatprep.subr.bf16.mxu0 0
        %1844 = vmatpush1.bf16.msra.mxu0 0
        %1845 = vmatprep.subr.bf16.mxu0 0
        %1846 = vmatpush1.bf16.msra.mxu0 0
        %1847 = vmatprep.subr.bf16.mxu0 0
        %1848 = vmatpush1.bf16.msra.mxu0 0
        %1849 = vmatprep.mubr.bf16.mxu0 0
        %1850 = vmatmul.mubr.bf16.gmra.mrb[0].mxu0 %v1815
        %v1851 = vpop.f32.mrb[0].mxu0
        %v1852 = vadd.f32 %v1800, %v1851
        %v1853 = vpop.f32.mrb[0].mxu0
        %v1854 = vpop.f32.mrb[0].mxu0
        %v1855 = vpop.f32.mrb[0].mxu0
        %1856 = vdwg.mxu0
        %v1857 = vmax.f32 %v1852, 0.0
        %v1858 = vpack.c.bf16 %v1857, %v1857
        %v1859 = vld [vmem:[#allocation29] sm:$0xf]
        %v1860 = vld [vmem:[#allocation29 + $0x4] sm:$0xf]
        %v1861 = vld [vmem:[#allocation29 + $0x8] sm:$0xf]
        %v1862 = vld [vmem:[#allocation29 + $0xc] sm:$0xf]
        %v1863 = vld [vmem:[#allocation29 + $0x10] sm:$0xf]
        %v1864 = vld [vmem:[#allocation29 + $0x14] sm:$0xf]
        %v1865 = vld [vmem:[#allocation29 + $0x18] sm:$0xf]
        %v1866 = vld [vmem:[#allocation29 + $0x1c] sm:$0xf]
        %v1867 = vld [vmem:[#allocation31] sm:$0x1]
        %v1869 = vlaneseq
        %v1870 = vshrl.u32 %v1869, 7
        %v1871 = vsub.s32 0, %v1870
        %v1872 = vrot.slane %v1867, %v1871
        %v1882 = vunpack.c.l.b16 %v1859
        %v1883 = vunpack.c.l.b16 %v1860
        %v1884 = vunpack.c.l.b16 %v1861
        %v1885 = vunpack.c.l.b16 %v1862
        %v1886 = vunpack.c.l.b16 %v1863
        %v1887 = vunpack.c.l.b16 %v1864
        %v1888 = vunpack.c.l.b16 %v1865
        %v1889 = vunpack.c.l.b16 %v1866
        %v1890 = vpack.c.b16 %v1883, %v1882
        %v1891 = vpack.c.b16 %v1885, %v1884
        %v1892 = vpack.c.b16 %v1887, %v1886
        %v1893 = vpack.c.b16 %v1889, %v1888
        %vm1898 = vcmask 523264
        %v1900 = vsel %vm1898, %v1858, 0
        %1902 = vmatprep.subr.bf16.mxu0 0
        %1903 = vmatpush1.bf16.msra.mxu0 %v1890
        %1904 = vmatprep.subr.bf16.mxu0 0
        %1905 = vmatpush1.bf16.msra.mxu0 %v1891
        %1906 = vmatprep.subr.bf16.mxu0 0
        %1907 = vmatpush1.bf16.msra.mxu0 %v1892
        %1908 = vmatprep.subr.bf16.mxu0 0
        %1909 = vmatpush1.bf16.msra.mxu0 %v1893
        %1910 = vmatprep.subr.bf16.mxu0 0
        %1911 = vmatpush1.bf16.msra.mxu0 0
        %1912 = vmatprep.subr.bf16.mxu0 0
        %1913 = vmatpush1.bf16.msra.mxu0 0
        %1914 = vmatprep.subr.bf16.mxu0 0
        %1915 = vmatpush1.bf16.msra.mxu0 0
        %1916 = vmatprep.subr.bf16.mxu0 0
        %1917 = vmatpush1.bf16.msra.mxu0 0
        %1918 = vmatprep.subr.bf16.mxu0 0
        %1919 = vmatpush1.bf16.msra.mxu0 0
        %1920 = vmatprep.subr.bf16.mxu0 0
        %1921 = vmatpush1.bf16.msra.mxu0 0
        %1922 = vmatprep.subr.bf16.mxu0 0
        %1923 = vmatpush1.bf16.msra.mxu0 0
        %1924 = vmatprep.subr.bf16.mxu0 0
        %1925 = vmatpush1.bf16.msra.mxu0 0
        %1926 = vmatprep.subr.bf16.mxu0 0
        %1927 = vmatpush1.bf16.msra.mxu0 0
        %1928 = vmatprep.subr.bf16.mxu0 0
        %1929 = vmatpush1.bf16.msra.mxu0 0
        %1930 = vmatprep.subr.bf16.mxu0 0
        %1931 = vmatpush1.bf16.msra.mxu0 0
        %1932 = vmatprep.subr.bf16.mxu0 0
        %1933 = vmatpush1.bf16.msra.mxu0 0
        %1934 = vmatprep.mubr.bf16.mxu0 0
        %1935 = vmatmul.mubr.bf16.gmra.mrb[0].mxu0 %v1900
        %v1936 = vpop.f32.mrb[0].mxu0
        %v1937 = vadd.f32 %v1872, %v1936
        %v1938 = vpop.f32.mrb[0].mxu0
        %v1939 = vpop.f32.mrb[0].mxu0
        %v1940 = vpop.f32.mrb[0].mxu0
        %1941 = vdwg.mxu0
        %v1942 = vadd.f32 %v1789, %v1937
        %v1943 = vsel %vm1027, %v1942, 0.0
        %1944 = vadd.xlane.f32.xlu0 %v1943
        %v1945 = vpop.xlane.xlu0 %1944
        %v1946 = vmul.f32 %v1945, %v1733
        %v1947 = vsub.f32 %v1942, %v1946
        %v1948 = vmul.f32 %v1947, %v1947
        %v1949 = vsel %vm1027, %v1948, 0.0
        %1950 = vadd.xlane.f32.xlu0 %v1949
        %v1951 = vpop.xlane.xlu0 %1950
        %v1952 = vmul.f32 %v1951, %v1733
        %v1953 = vadd.f32 %v1952, 1e-05
        %v1954 = vrsqrt.pop %v1953
        %v1955 = vmul.f32 %v1947, %v1954
        %v1956 = vld [vmem:[#allocation32] sm:$0x1]
        %v1958 = vlaneseq
        %v1959 = vshrl.u32 %v1958, 7
        %v1960 = vsub.s32 0, %v1959
        %v1961 = vrot.slane %v1956, %v1960
        %v1963 = vmul.f32 %v1955, %v1961
        %v1964 = vld [vmem:[#allocation34] sm:$0x1]
        %v1966 = vlaneseq
        %v1967 = vshrl.u32 %v1966, 7
        %v1968 = vsub.s32 0, %v1967
        %v1969 = vrot.slane %v1964, %v1968
        %v1971 = vadd.f32 %v1963, %v1969
        %1972 = vst.msk [vmem:[%s996] sm:$0xff] %vm1027, %v1971
        %s1973 = sand.u32 %s530, 1
        %s1974 = scalar_lea.sflag [#allocation4], %s1973
        %s1975 = sand.u32 %s530, 1
        %s1976 = smul.addr %s1975, 8
        %s1977 = scalar_lea.vmem [#allocation35], %s1976
        // Predicated region
        $region189: #{tpu_custom_call.1} parent=103 // pred_check
          %p1978 = pneg %p540
        $region190: #{tpu_custom_call.1} parent=103 // pred_check_branch
          %1980 = sbr.rel (%p1978) target = $region192
        $region191: #{tpu_custom_call.1} parent=103 // pred_region
          %s1982 = ssub.s32 128, 128
          %1983 = vsyncadd %s1974, %s1982
          %s1984 = sadd.s32 %s55, %s54
          %s1985 = smul.addr %s1984, 128
          %s1986 = scalar_lea.hbm %s21, %s1985
          %s1988 = sshll.u32 %s1977, 4
          %s1989 = int_to_ptr.vmem [resolvable:$true] %s1988
          %1991 = dma.vmem_to_hbm [thread:$0]  %s1989, 128, %s1986, %s1974
        $region192: #{tpu_custom_call.1} parent=103 // pred_fallthru
          _
      $region104: #{tpu_custom_call.1} parent=5 // pred_fallthru
        _
      %p1992 = scmp.le.s32.totalorder 2, %s45
      // Predicated region
      $region193: #{tpu_custom_call.1} parent=5 // pred_check
        %p1993 = pneg %p1992
      $region194: #{tpu_custom_call.1} parent=5 // pred_check_branch
        %1995 = sbr.rel (%p1993) target = $region196
      $region195: #{tpu_custom_call.1} parent=5 // pred_region
        %s1996 = ssub.s32 %s45, 2
        // Predicated region
        $region197: #{tpu_custom_call.1} parent=195 // pred_check
          %p1997 = pneg %p546
        $region198: #{tpu_custom_call.1} parent=195 // pred_check_branch
          %1999 = sbr.rel (%p1997) target = $region200
        $region199: #{tpu_custom_call.1} parent=195 // pred_region
          %s2000 = sand.u32 %s531, 1
          %s2001 = scalar_lea.sflag [#allocation4], %s2000
          %s2002 = sand.u32 %s531, 1
          %s2003 = smul.addr %s2002, 8
          %s2004 = scalar_lea.vmem [#allocation35], %s2003
          %2005 = dma.done %s2001, 128
        $region200: #{tpu_custom_call.1} parent=195 // pred_fallthru
          _
      $region196: #{tpu_custom_call.1} parent=5 // pred_fallthru
        _
    $region6: #{tpu_custom_call.1} parent=1 // loop_footer
      %s49 = sadd.s32 1, %s45
    $region7: #{tpu_custom_call.1} parent=1 // loop_footer_branch
      %44 = sbr.rel target = $region3
    $region8: #{tpu_custom_call.1} parent=1 // loop_exit
      _
    %2006 = vsyncpa [#allocation3], 1
    %s2007 = scalar_lea.sflag [#allocation3], 1
    %2008 = vsyncpa %s2007, 1
    %2009 = vsyncpa [#allocation6], 1
    %s2010 = scalar_lea.sflag [#allocation6], 1
    %2011 = vsyncpa %s2010, 1
    %2012 = vsyncpa [#allocation9], 1
    %2013 = vsyncpa [#allocation12], 1
    %2014 = vsyncpa [#allocation15], 1
    %2015 = vsyncpa [#allocation18], 1
    %2016 = vsyncpa [#allocation21], 1
    %2017 = vsyncpa [#allocation24], 1
    %2018 = vsyncpa [#allocation27], 1
    %2019 = vsyncpa [#allocation30], 1
    %2020 = vsyncpa [#allocation33], 1
    %2021 = vsyncpa [#allocation4], 1
    %s2022 = scalar_lea.sflag [#allocation4], 1
    %2023 = vsyncpa %s2022, 1

// kernel: tpu_custom_call.1
$region0: #{tpu_custom_call.1}
  #allocation0 [shape = 'u32[]', space=smem, size = 0x4, offset = 0x4, fixed_abs, tag = 'smem constant byte address 0x4 - core index']
  #allocation1 [shape = 'u32[144,128]{1,0:T(1,128)}', space=vmem, size = 0x12000, scoped, tag = 'internal scratch']
  %s0 = inlined_call_operand.hbm [shape: f32[2,8,32], index: 0, kind: input, shape index: {}]
  %s1 = inlined_call_operand.hbm [shape: f32[2,8,32], index: 1, kind: input, shape index: {}]
  %s2 = inlined_call_operand.hbm [shape: f32[2,8,32], index: 2, kind: input, shape index: {}]
  %s3 = inlined_call_operand.hbm [shape: bf16[32,32], index: 3, kind: input, shape index: {}]
  %s4 = inlined_call_operand.hbm [shape: f32[1,32], index: 4, kind: input, shape index: {}]
  %s5 = inlined_call_operand.hbm [shape: bf16[32,32], index: 5, kind: input, shape index: {}]
  %s6 = inlined_call_operand.hbm [shape: f32[1,32], index: 6, kind: input, shape index: {}]
  %s7 = inlined_call_operand.hbm [shape: bf16[32,32], index: 7, kind: input, shape index: {}]
  %s8 = inlined_call_operand.hbm [shape: f32[1,32], index: 8, kind: input, shape index: {}]
  %s9 = inlined_call_operand.hbm [shape: bf16[32,32], index: 9, kind: input, shape index: {}]
  %s10 = inlined_call_operand.hbm [shape: f32[1,32], index: 10, kind: input, shape index: {}]
  %s11 = inlined_call_operand.hbm [shape: f32[1,32], index: 11, kind: input, shape index: {}]
  %s12 = inlined_call_operand.hbm [shape: f32[1,32], index: 12, kind: input, shape index: {}]
  %s13 = inlined_call_operand.hbm [shape: f32[1,32], index: 13, kind: input, shape index: {}]
  %s14 = inlined_call_operand.hbm [shape: f32[1,32], index: 14, kind: input, shape index: {}]
  %s15 = inlined_call_operand.hbm [shape: bf16[32,64], index: 15, kind: input, shape index: {}]
  %s16 = inlined_call_operand.hbm [shape: f32[1,64], index: 16, kind: input, shape index: {}]
  %s17 = inlined_call_operand.hbm [shape: bf16[64,32], index: 17, kind: input, shape index: {}]
  %s18 = inlined_call_operand.hbm [shape: f32[1,32], index: 18, kind: input, shape index: {}]
  %s19 = inlined_call_operand.hbm [shape: f32[1,32], index: 19, kind: input, shape index: {}]
  %s20 = inlined_call_operand.hbm [shape: f32[1,32], index: 20, kind: input, shape index: {}]
  %s21 = inlined_call_operand.hbm [shape: f32[2,8,32], index: 21, kind: output, shape index: {}]
  %s22 = sld [smem:[#allocation0]]
  $region201: #{tpu_custom_call.1} parent=0
    _
  %s24 = ssub.s32 1, %s22
  %s25 = scalar_select 0, %s24, %s22
  $region1: #{tpu_custom_call.1} parent=0
    #allocation2 [shape = 'u8[8192]{0}', space=vmem, size = 0x2000, scoped, tag = 'input window, operand 0']
    #allocation3 [shape = 's32[2]{0}', space=sflag, size = 0x8, scoped, tag = 'scoped memory for tpu_custom_call.1']
    #allocation4 [shape = 's32[2]{0}', space=sflag, size = 0x8, scoped, tag = 'scoped memory for tpu_custom_call.1']
    #allocation5 [shape = 'u8[8192]{0}', space=vmem, size = 0x2000, scoped, tag = 'input window, operand 1']
    #allocation6 [shape = 's32[2]{0}', space=sflag, size = 0x8, scoped, tag = 'scoped memory for tpu_custom_call.1']
    #allocation7 [shape = 'u8[8192]{0}', space=vmem, size = 0x2000, scoped, tag = 'input window, operand 2']
    #allocation8 [shape = 'u8[8192]{0}', space=vmem, size = 0x2000, scoped, tag = 'input window, operand 3, single buffered']
    #allocation9 [shape = 's32[1]{0}', space=sflag, size = 0x4, scoped, tag = 'scoped memory for tpu_custom_call.1']
    #allocation10 [shape = 'u8[512]{0}', space=vmem, size = 0x400, scoped, tag = 'input window, operand 4, single buffered']
    #allocation11 [shape = 'u8[8192]{0}', space=vmem, size = 0x2000, scoped, tag = 'input window, operand 5, single buffered']
    #allocation12 [shape = 's32[1]{0}', space=sflag, size = 0x4, scoped, tag = 'scoped memory for tpu_custom_call.1']
    #allocation13 [shape = 'u8[512]{0}', space=vmem, size = 0x400, scoped, tag = 'input window, operand 6, single buffered']
    #allocation14 [shape = 'u8[8192]{0}', space=vmem, size = 0x2000, scoped, tag = 'input window, operand 7, single buffered']
    #allocation15 [shape = 's32[1]{0}', space=sflag, size = 0x4, scoped, tag = 'scoped memory for tpu_custom_call.1']
    #allocation16 [shape = 'u8[512]{0}', space=vmem, size = 0x400, scoped, tag = 'input window, operand 8, single buffered']
    #allocation17 [shape = 'u8[8192]{0}', space=vmem, size = 0x2000, scoped, tag = 'input window, operand 9, single buffered']
    #allocation18 [shape = 's32[1]{0}', space=sflag, size = 0x4, scoped, tag = 'scoped memory for tpu_custom_call.1']
    #allocation19 [shape = 'u8[512]{0}', space=vmem, size = 0x400, scoped, tag = 'input window, operand 10, single buffered']
    #allocation20 [shape = 'u8[512]{0}', space=vmem, size = 0x400, scoped, tag = 'input window, operand 11, single buffered']
    #allocation21 [shape = 's32[1]{0}', space=sflag, size = 0x4, scoped, tag = 'scoped memory for tpu_custom_call.1']
    #allocation22 [shape = 'u8[512]{0}', space=vmem, size = 0x400, scoped, tag = 'input window, operand 12, single buffered']
    #allocation23 [shape = 'u8[512]{0}', space=vmem, size = 0x400, scoped, tag = 'input window, operand 13, single buffered']
    #allocation24 [shape = 's32[1]{0}', space=sflag, size = 0x4, scoped, tag = 'scoped memory for tpu_custom_call.1']
    #allocation25 [shape = 'u8[512]{0}', space=vmem, size = 0x400, scoped, tag = 'input window, operand 14, single buffered']
    #allocation26 [shape = 'u8[8192]{0}', space=vmem, size = 0x2000, scoped, tag = 'input window, operand 15, single buffered']
    #allocation27 [shape = 's32[1]{0}', space=sflag, size = 0x4, scoped, tag = 'scoped memory for tpu_custom_call.1']
    #allocation28 [shape = 'u8[512]{0}', space=vmem, size = 0x400, scoped, tag = 'input window, operand 16, single buffered']
    #allocation29 [shape = 'u8[16384]{0}', space=vmem, size = 0x4000, scoped, tag = 'input window, operand 17, single buffered']
    #allocation30 [shape = 's32[1]{0}', space=sflag, size = 0x4, scoped, tag = 'scoped memory for tpu_custom_call.1']
    #allocation31 [shape = 'u8[512]{0}', space=vmem, size = 0x400, scoped, tag = 'input window, operand 18, single buffered']
    #allocation32 [shape = 'u8[512]{0}', space=vmem, size = 0x400, scoped, tag = 'input window, operand 19, single buffered']
    #allocation33 [shape = 's32[1]{0}', space=sflag, size = 0x4, scoped, tag = 'scoped memory for tpu_custom_call.1']
    #allocation34 [shape = 'u8[512]{0}', space=vmem, size = 0x400, scoped, tag = 'input window, operand 20, single buffered']
    #allocation35 [shape = 'u8[8192]{0}', space=vmem, size = 0x2000, scoped, tag = 'output window, operand 0']
    %26 = vsyncpa [#allocation3], 0
    %s27 = scalar_lea.sflag [#allocation3], 1
    %28 = vsyncpa %s27, 0
    %29 = vsyncpa [#allocation6], 0
    %s30 = scalar_lea.sflag [#allocation6], 1
    %31 = vsyncpa %s30, 0
    %32 = vsyncpa [#allocation9], 0
    %33 = vsyncpa [#allocation12], 0
    %34 = vsyncpa [#allocation15], 0
    %35 = vsyncpa [#allocation18], 0
    %36 = vsyncpa [#allocation21], 0
    %37 = vsyncpa [#allocation24], 0
    %38 = vsyncpa [#allocation27], 0
    %39 = vsyncpa [#allocation30], 0
    %40 = vsyncpa [#allocation33], 0
    %41 = vsyncpa [#allocation4], 0
    %s42 = scalar_lea.sflag [#allocation4], 1
    %43 = vsyncpa %s42, 0
    loop: start=0, step=1, limit=4
    $region2: #{tpu_custom_call.1} parent=1 // loop_pre_header
      _
    $region3: #{tpu_custom_call.1} parent=1 // loop_header
      %s45 = sphi 0, %s49
      %p46 = scmp.ge.s32.totalorder %s45, 4
      %s52 = sphi 0, %s64
      %s53 = sphi 0, %s60
      %s54 = sphi 0, %s52
      %s55 = sphi 0, %s53
      %s56 = sphi 0, %s54
      %s57 = sphi 0, %s55
      %s69 = sphi 0, %s71
      %s72 = sphi 0, %s69
      %s73 = sphi 0, %s72
      %s89 = sphi 0, %s73
      %s95 = sphi 0, %s97
      %s98 = sphi 0, %s95
      %s99 = sphi 0, %s98
      %s115 = sphi 0, %s99
      %s121 = sphi 0, %s123
      %s124 = sphi 0, %s121
      %s125 = sphi 0, %s124
      %s141 = sphi 0, %s125
      %s145 = sphi 0, %s145
      %s147 = sphi 0, %s145
      %s148 = sphi 0, %s147
      %s162 = sphi 0, %s148
      %s166 = sphi 0, %s166
      %s168 = sphi 0, %s166
      %s169 = sphi 0, %s168
      %s183 = sphi 0, %s169
      %s187 = sphi 0, %s187
      %s189 = sphi 0, %s187
      %s190 = sphi 0, %s189
      %s204 = sphi 0, %s190
      %s208 = sphi 0, %s208
      %s210 = sphi 0, %s208
      %s211 = sphi 0, %s210
      %s225 = sphi 0, %s211
      %s229 = sphi 0, %s229
      %s231 = sphi 0, %s229
      %s232 = sphi 0, %s231
      %s246 = sphi 0, %s232
      %s250 = sphi 0, %s250
      %s252 = sphi 0, %s250
      %s253 = sphi 0, %s252
      %s267 = sphi 0, %s253
      %s271 = sphi 0, %s271
      %s273 = sphi 0, %s271
      %s274 = sphi 0, %s273
      %s288 = sphi 0, %s274
      %s292 = sphi 0, %s292
      %s294 = sphi 0, %s292
      %s295 = sphi 0, %s294
      %s309 = sphi 0, %s295
      %s313 = sphi 0, %s313
      %s315 = sphi 0, %s313
      %s316 = sphi 0, %s315
      %s330 = sphi 0, %s316
      %s334 = sphi 0, %s334
      %s336 = sphi 0, %s334
      %s337 = sphi 0, %s336
      %s351 = sphi 0, %s337
      %s355 = sphi 0, %s355
      %s357 = sphi 0, %s355
      %s358 = sphi 0, %s357
      %s372 = sphi 0, %s358
      %s376 = sphi 0, %s376
      %s378 = sphi 0, %s376
      %s379 = sphi 0, %s378
      %s393 = sphi 0, %s379
      %s397 = sphi 0, %s397
      %s399 = sphi 0, %s397
      %s400 = sphi 0, %s399
      %s414 = sphi 0, %s400
      %s418 = sphi 0, %s418
      %s420 = sphi 0, %s418
      %s421 = sphi 0, %s420
      %s435 = sphi 0, %s421
      %s439 = sphi 0, %s439
      %s441 = sphi 0, %s439
      %s442 = sphi 0, %s441
      %s456 = sphi 0, %s442
      %s460 = sphi 0, %s460
      %s462 = sphi 0, %s460
      %s463 = sphi 0, %s462
      %s477 = sphi 0, %s463
      %s481 = sphi 0, %s481
      %s483 = sphi 0, %s481
      %s484 = sphi 0, %s483
      %s498 = sphi 0, %s484
      %s502 = sphi 0, %s502
      %s504 = sphi 0, %s502
      %s505 = sphi 0, %s504
      %s519 = sphi 0, %s505
      %s527 = sphi 0, %s529
      %s530 = sphi 0, %s527
      %s531 = sphi 0, %s530
      %s547 = sphi 0, %s531
    $region4: #{tpu_custom_call.1} parent=1 // loop_header_branch
      %48 = sbr.rel (%p46) target = $region8
    $region5: #{tpu_custom_call.1} parent=1 // loop_body
      %s50 = ssub.s32 %s45, 1
      %s51 = ssub.s32 %s45, 2
      %s58 = sadd.s32 1, %s53
      %p59 = scmp.ge.s32.totalorder %s58, 1
      %s60 = scalar_select %p59, 0, %s58
      %s61 = sadd.s32 1, %s52
      %s62 = scalar_select %p59, %s61, %s52
      %p63 = scmp.ge.s32.totalorder %s62, 2
      %s64 = scalar_select %p63, 0, %s62
      %s65 = ssub.s32 %s52, %s64
      %s66 = ssub.s32 %s53, %s60
      %s67 = sor.u32 %s65, %s66
      %p68 = scmp.eq.s32.totalorder %s67, 0
      %s70 = sadd.s32 %s69, 1
      %s71 = scalar_select %p68, %s69, %s70
      %p74 = pneg %p68
      %p75 = scmp.eq.s32.totalorder %s45, 1
      %p76 = por %p74, %p75
      %p77 = scmp.ne.s32.totalorder %s69, %s72
      %p78 = scmp.eq.s32.totalorder %s45, 0
      %p79 = por %p77, %p78
      %p80 = scmp.ne.s32.totalorder %s69, %s72
      %p81 = scmp.eq.s32.totalorder %s50, 1
      %p82 = por %p80, %p81
      %p83 = scmp.ne.s32.totalorder %s72, %s73
      %p84 = scmp.eq.s32.totalorder %s50, 0
      %p85 = por %p83, %p84
      %p86 = scmp.ne.s32.totalorder %s72, %s73
      %p87 = scmp.eq.s32.totalorder %s51, 1
      %p88 = por %p86, %p87
      %p90 = scmp.ne.s32.totalorder %s73, %s89
      %p91 = scmp.eq.s32.totalorder %s51, 0
      %p92 = por %p90, %p91
      %s93 = ssub.s32 %s52, %s64
      %p94 = scmp.eq.s32.totalorder %s93, 0
      %s96 = sadd.s32 %s95, 1
      %s97 = scalar_select %p94, %s95, %s96
      %p100 = pneg %p94
      %p101 = scmp.eq.s32.totalorder %s45, 1
      %p102 = por %p100, %p101
      %p103 = scmp.ne.s32.totalorder %s95, %s98
      %p104 = scmp.eq.s32.totalorder %s45, 0
      %p105 = por %p103, %p104
      %p106 = scmp.ne.s32.totalorder %s95, %s98
      %p107 = scmp.eq.s32.totalorder %s50, 1
      %p108 = por %p106, %p107
      %p109 = scmp.ne.s32.totalorder %s98, %s99
      %p110 = scmp.eq.s32.totalorder %s50, 0
      %p111 = por %p109, %p110
      %p112 = scmp.ne.s32.totalorder %s98, %s99
      %p113 = scmp.eq.s32.totalorder %s51, 1
      %p114 = por %p112, %p113
      %p116 = scmp.ne.s32.totalorder %s99, %s115
      %p117 = scmp.eq.s32.totalorder %s51, 0
      %p118 = por %p116, %p117
      %s119 = ssub.s32 %s52, %s64
      %p120 = scmp.eq.s32.totalorder %s119, 0
      %s122 = sadd.s32 %s121, 1
      %s123 = scalar_select %p120, %s121, %s122
      %p126 = pneg %p120
      %p127 = scmp.eq.s32.totalorder %s45, 1
      %p128 = por %p126, %p127
      %p129 = scmp.ne.s32.totalorder %s121, %s124
      %p130 = scmp.eq.s32.totalorder %s45, 0
      %p131 = por %p129, %p130
      %p132 = scmp.ne.s32.totalorder %s121, %s124
      %p133 = scmp.eq.s32.totalorder %s50, 1
      %p134 = por %p132, %p133
      %p135 = scmp.ne.s32.totalorder %s124, %s125
      %p136 = scmp.eq.s32.totalorder %s50, 0
      %p137 = por %p135, %p136
      %p138 = scmp.ne.s32.totalorder %s124, %s125
      %p139 = scmp.eq.s32.totalorder %s51, 1
      %p140 = por %p138, %p139
      %p142 = scmp.ne.s32.totalorder %s125, %s141
      %p143 = scmp.eq.s32.totalorder %s51, 0
      %p144 = por %p142, %p143
      %s146 = sadd.s32 %s145, 1
      %p149 = scmp.eq.s32.totalorder %s45, 1
      %p150 = scmp.ne.s32.totalorder %s145, %s147
      %p151 = scmp.eq.s32.totalorder %s45, 0
      %p152 = por %p150, %p151
      %p153 = scmp.ne.s32.totalorder %s145, %s147
      %p154 = scmp.eq.s32.totalorder %s50, 1
      %p155 = por %p153, %p154
      %p156 = scmp.ne.s32.totalorder %s147, %s148
      %p157 = scmp.eq.s32.totalorder %s50, 0
      %p158 = por %p156, %p157
      %p159 = scmp.ne.s32.totalorder %s147, %s148
      %p160 = scmp.eq.s32.totalorder %s51, 1
      %p161 = por %p159, %p160
      %p163 = scmp.ne.s32.totalorder %s148, %s162
      %p164 = scmp.eq.s32.totalorder %s51, 0
      %p165 = por %p163, %p164
      %s167 = sadd.s32 %s166, 1
      %p170 = scmp.eq.s32.totalorder %s45, 1
      %p171 = scmp.ne.s32.totalorder %s166, %s168
      %p172 = scmp.eq.s32.totalorder %s45, 0
      %p173 = por %p171, %p172
      %p174 = scmp.ne.s32.totalorder %s166, %s168
      %p175 = scmp.eq.s32.totalorder %s50, 1
      %p176 = por %p174, %p175
      %p177 = scmp.ne.s32.totalorder %s168, %s169
      %p178 = scmp.eq.s32.totalorder %s50, 0
      %p179 = por %p177, %p178
      %p180 = scmp.ne.s32.totalorder %s168, %s169
      %p181 = scmp.eq.s32.totalorder %s51, 1
      %p182 = por %p180, %p181
      %p184 = scmp.ne.s32.totalorder %s169, %s183
      %p185 = scmp.eq.s32.totalorder %s51, 0
      %p186 = por %p184, %p185
      %s188 = sadd.s32 %s187, 1
      %p191 = scmp.eq.s32.totalorder %s45, 1
      %p192 = scmp.ne.s32.totalorder %s187, %s189
      %p193 = scmp.eq.s32.totalorder %s45, 0
      %p194 = por %p192, %p193
      %p195 = scmp.ne.s32.totalorder %s187, %s189
      %p196 = scmp.eq.s32.totalorder %s50, 1
      %p197 = por %p195, %p196
      %p198 = scmp.ne.s32.totalorder %s189, %s190
      %p199 = scmp.eq.s32.totalorder %s50, 0
      %p200 = por %p198, %p199
      %p201 = scmp.ne.s32.totalorder %s189, %s190
      %p202 = scmp.eq.s32.totalorder %s51, 1
      %p203 = por %p201, %p202
      %p205 = scmp.ne.s32.totalorder %s190, %s204
      %p206 = scmp.eq.s32.totalorder %s51, 0
      %p207 = por %p205, %p206
      %s209 = sadd.s32 %s208, 1
      %p212 = scmp.eq.s32.totalorder %s45, 1
      %p213 = scmp.ne.s32.totalorder %s208, %s210
      %p214 = scmp.eq.s32.totalorder %s45, 0
      %p215 = por %p213, %p214
      %p216 = scmp.ne.s32.totalorder %s208, %s210
      %p217 = scmp.eq.s32.totalorder %s50, 1
      %p218 = por %p216, %p217
      %p219 = scmp.ne.s32.totalorder %s210, %s211
      %p220 = scmp.eq.s32.totalorder %s50, 0
      %p221 = por %p219, %p220
      %p222 = scmp.ne.s32.totalorder %s210, %s211
      %p223 = scmp.eq.s32.totalorder %s51, 1
      %p224 = por %p222, %p223
      %p226 = scmp.ne.s32.totalorder %s211, %s225
      %p227 = scmp.eq.s32.totalorder %s51, 0
      %p228 = por %p226, %p227
      %s230 = sadd.s32 %s229, 1
      %p233 = scmp.eq.s32.totalorder %s45, 1
      %p234 = scmp.ne.s32.totalorder %s229, %s231
      %p235 = scmp.eq.s32.totalorder %s45, 0
      %p236 = por %p234, %p235
      %p237 = scmp.ne.s32.totalorder %s229, %s231
      %p238 = scmp.eq.s32.totalorder %s50, 1
      %p239 = por %p237, %p238
      %p240 = scmp.ne.s32.totalorder %s231, %s232
      %p241 = scmp.eq.s32.totalorder %s50, 0
      %p242 = por %p240, %p241
      %p243 = scmp.ne.s32.totalorder %s231, %s232
      %p244 = scmp.eq.s32.totalorder %s51, 1
      %p245 = por %p243, %p244
      %p247 = scmp.ne.s32.totalorder %s232, %s246
      %p248 = scmp.eq.s32.totalorder %s51, 0
      %p249 = por %p247, %p248
      %s251 = sadd.s32 %s250, 1
      %p254 = scmp.eq.s32.totalorder %s45, 1
      %p255 = scmp.ne.s32.totalorder %s250, %s252
      %p256 = scmp.eq.s32.totalorder %s45, 0
      %p257 = por %p255, %p256
      %p258 = scmp.ne.s32.totalorder %s250, %s252
      %p259 = scmp.eq.s32.totalorder %s50, 1
      %p260 = por %p258, %p259
      %p261 = scmp.ne.s32.totalorder %s252, %s253
      %p262 = scmp.eq.s32.totalorder %s50, 0
      %p263 = por %p261, %p262
      %p264 = scmp.ne.s32.totalorder %s252, %s253
      %p265 = scmp.eq.s32.totalorder %s51, 1
      %p266 = por %p264, %p265
      %p268 = scmp.ne.s32.totalorder %s253, %s267
      %p269 = scmp.eq.s32.totalorder %s51, 0
      %p270 = por %p268, %p269
      %s272 = sadd.s32 %s271, 1
      %p275 = scmp.eq.s32.totalorder %s45, 1
      %p276 = scmp.ne.s32.totalorder %s271, %s273
      %p277 = scmp.eq.s32.totalorder %s45, 0
      %p278 = por %p276, %p277
      %p279 = scmp.ne.s32.totalorder %s271, %s273
      %p280 = scmp.eq.s32.totalorder %s50, 1
      %p281 = por %p279, %p280
      %p282 = scmp.ne.s32.totalorder %s273, %s274
      %p283 = scmp.eq.s32.totalorder %s50, 0
      %p284 = por %p282, %p283
      %p285 = scmp.ne.s32.totalorder %s273, %s274
      %p286 = scmp.eq.s32.totalorder %s51, 1
      %p287 = por %p285, %p286
      %p289 = scmp.ne.s32.totalorder %s274, %s288
      %p290 = scmp.eq.s32.totalorder %s51, 0
      %p291 = por %p289, %p290
      %s293 = sadd.s32 %s292, 1
      %p296 = scmp.eq.s32.totalorder %s45, 1
      %p297 = scmp.ne.s32.totalorder %s292, %s294
      %p298 = scmp.eq.s32.totalorder %s45, 0
      %p299 = por %p297, %p298
      %p300 = scmp.ne.s32.totalorder %s292, %s294
      %p301 = scmp.eq.s32.totalorder %s50, 1
      %p302 = por %p300, %p301
      %p303 = scmp.ne.s32.totalorder %s294, %s295
      %p304 = scmp.eq.s32.totalorder %s50, 0
      %p305 = por %p303, %p304
      %p306 = scmp.ne.s32.totalorder %s294, %s295
      %p307 = scmp.eq.s32.totalorder %s51, 1
      %p308 = por %p306, %p307
      %p310 = scmp.ne.s32.totalorder %s295, %s309
      %p311 = scmp.eq.s32.totalorder %s51, 0
      %p312 = por %p310, %p311
      %s314 = sadd.s32 %s313, 1
      %p317 = scmp.eq.s32.totalorder %s45, 1
      %p318 = scmp.ne.s32.totalorder %s313, %s315
      %p319 = scmp.eq.s32.totalorder %s45, 0
      %p320 = por %p318, %p319
      %p321 = scmp.ne.s32.totalorder %s313, %s315
      %p322 = scmp.eq.s32.totalorder %s50, 1
      %p323 = por %p321, %p322
      %p324 = scmp.ne.s32.totalorder %s315, %s316
      %p325 = scmp.eq.s32.totalorder %s50, 0
      %p326 = por %p324, %p325
      %p327 = scmp.ne.s32.totalorder %s315, %s316
      %p328 = scmp.eq.s32.totalorder %s51, 1
      %p329 = por %p327, %p328
      %p331 = scmp.ne.s32.totalorder %s316, %s330
      %p332 = scmp.eq.s32.totalorder %s51, 0
      %p333 = por %p331, %p332
      %s335 = sadd.s32 %s334, 1
      %p338 = scmp.eq.s32.totalorder %s45, 1
      %p339 = scmp.ne.s32.totalorder %s334, %s336
      %p340 = scmp.eq.s32.totalorder %s45, 0
      %p341 = por %p339, %p340
      %p342 = scmp.ne.s32.totalorder %s334, %s336
      %p343 = scmp.eq.s32.totalorder %s50, 1
      %p344 = por %p342, %p343
      %p345 = scmp.ne.s32.totalorder %s336, %s337
      %p346 = scmp.eq.s32.totalorder %s50, 0
      %p347 = por %p345, %p346
      %p348 = scmp.ne.s32.totalorder %s336, %s337
      %p349 = scmp.eq.s32.totalorder %s51, 1
      %p350 = por %p348, %p349
      %p352 = scmp.ne.s32.totalorder %s337, %s351
      %p353 = scmp.eq.s32.totalorder %s51, 0
      %p354 = por %p352, %p353
      %s356 = sadd.s32 %s355, 1
      %p359 = scmp.eq.s32.totalorder %s45, 1
      %p360 = scmp.ne.s32.totalorder %s355, %s357
      %p361 = scmp.eq.s32.totalorder %s45, 0
      %p362 = por %p360, %p361
      %p363 = scmp.ne.s32.totalorder %s355, %s357
      %p364 = scmp.eq.s32.totalorder %s50, 1
      %p365 = por %p363, %p364
      %p366 = scmp.ne.s32.totalorder %s357, %s358
      %p367 = scmp.eq.s32.totalorder %s50, 0
      %p368 = por %p366, %p367
      %p369 = scmp.ne.s32.totalorder %s357, %s358
      %p370 = scmp.eq.s32.totalorder %s51, 1
      %p371 = por %p369, %p370
      %p373 = scmp.ne.s32.totalorder %s358, %s372
      %p374 = scmp.eq.s32.totalorder %s51, 0
      %p375 = por %p373, %p374
      %s377 = sadd.s32 %s376, 1
      %p380 = scmp.eq.s32.totalorder %s45, 1
      %p381 = scmp.ne.s32.totalorder %s376, %s378
      %p382 = scmp.eq.s32.totalorder %s45, 0
      %p383 = por %p381, %p382
      %p384 = scmp.ne.s32.totalorder %s376, %s378
      %p385 = scmp.eq.s32.totalorder %s50, 1
      %p386 = por %p384, %p385
      %p387 = scmp.ne.s32.totalorder %s378, %s379
      %p388 = scmp.eq.s32.totalorder %s50, 0
      %p389 = por %p387, %p388
      %p390 = scmp.ne.s32.totalorder %s378, %s379
      %p391 = scmp.eq.s32.totalorder %s51, 1
      %p392 = por %p390, %p391
      %p394 = scmp.ne.s32.totalorder %s379, %s393
      %p395 = scmp.eq.s32.totalorder %s51, 0
      %p396 = por %p394, %p395
      %s398 = sadd.s32 %s397, 1
      %p401 = scmp.eq.s32.totalorder %s45, 1
      %p402 = scmp.ne.s32.totalorder %s397, %s399
      %p403 = scmp.eq.s32.totalorder %s45, 0
      %p404 = por %p402, %p403
      %p405 = scmp.ne.s32.totalorder %s397, %s399
      %p406 = scmp.eq.s32.totalorder %s50, 1
      %p407 = por %p405, %p406
      %p408 = scmp.ne.s32.totalorder %s399, %s400
      %p409 = scmp.eq.s32.totalorder %s50, 0
      %p410 = por %p408, %p409
      %p411 = scmp.ne.s32.totalorder %s399, %s400
      %p412 = scmp.eq.s32.totalorder %s51, 1
      %p413 = por %p411, %p412
      %p415 = scmp.ne.s32.totalorder %s400, %s414
      %p416 = scmp.eq.s32.totalorder %s51, 0
      %p417 = por %p415, %p416
      %s419 = sadd.s32 %s418, 1
      %p422 = scmp.eq.s32.totalorder %s45, 1
      %p423 = scmp.ne.s32.totalorder %s418, %s420
      %p424 = scmp.eq.s32.totalorder %s45, 0
      %p425 = por %p423, %p424
      %p426 = scmp.ne.s32.totalorder %s418, %s420
      %p427 = scmp.eq.s32.totalorder %s50, 1
      %p428 = por %p426, %p427
      %p429 = scmp.ne.s32.totalorder %s420, %s421
      %p430 = scmp.eq.s32.totalorder %s50, 0
      %p431 = por %p429, %p430
      %p432 = scmp.ne.s32.totalorder %s420, %s421
      %p433 = scmp.eq.s32.totalorder %s51, 1
      %p434 = por %p432, %p433
      %p436 = scmp.ne.s32.totalorder %s421, %s435
      %p437 = scmp.eq.s32.totalorder %s51, 0
      %p438 = por %p436, %p437
      %s440 = sadd.s32 %s439, 1
      %p443 = scmp.eq.s32.totalorder %s45, 1
      %p444 = scmp.ne.s32.totalorder %s439, %s441
      %p445 = scmp.eq.s32.totalorder %s45, 0
      %p446 = por %p444, %p445
      %p447 = scmp.ne.s32.totalorder %s439, %s441
      %p448 = scmp.eq.s32.totalorder %s50, 1
      %p449 = por %p447, %p448
      %p450 = scmp.ne.s32.totalorder %s441, %s442
      %p451 = scmp.eq.s32.totalorder %s50, 0
      %p452 = por %p450, %p451
      %p453 = scmp.ne.s32.totalorder %s441, %s442
      %p454 = scmp.eq.s32.totalorder %s51, 1
      %p455 = por %p453, %p454
      %p457 = scmp.ne.s32.totalorder %s442, %s456
      %p458 = scmp.eq.s32.totalorder %s51, 0
      %p459 = por %p457, %p458
      %s461 = sadd.s32 %s460, 1
      %p464 = scmp.eq.s32.totalorder %s45, 1
      %p465 = scmp.ne.s32.totalorder %s460, %s462
      %p466 = scmp.eq.s32.totalorder %s45, 0
      %p467 = por %p465, %p466
      %p468 = scmp.ne.s32.totalorder %s460, %s462
      %p469 = scmp.eq.s32.totalorder %s50, 1
      %p470 = por %p468, %p469
      %p471 = scmp.ne.s32.totalorder %s462, %s463
      %p472 = scmp.eq.s32.totalorder %s50, 0
      %p473 = por %p471, %p472
      %p474 = scmp.ne.s32.totalorder %s462, %s463
      %p475 = scmp.eq.s32.totalorder %s51, 1
      %p476 = por %p474, %p475
      %p478 = scmp.ne.s32.totalorder %s463, %s477
      %p479 = scmp.eq.s32.totalorder %s51, 0
      %p480 = por %p478, %p479
      %s482 = sadd.s32 %s481, 1
      %p485 = scmp.eq.s32.totalorder %s45, 1
      %p486 = scmp.ne.s32.totalorder %s481, %s483
      %p487 = scmp.eq.s32.totalorder %s45, 0
      %p488 = por %p486, %p487
      %p489 = scmp.ne.s32.totalorder %s481, %s483
      %p490 = scmp.eq.s32.totalorder %s50, 1
      %p491 = por %p489, %p490
      %p492 = scmp.ne.s32.totalorder %s483, %s484
      %p493 = scmp.eq.s32.totalorder %s50, 0
      %p494 = por %p492, %p493
      %p495 = scmp.ne.s32.totalorder %s483, %s484
      %p496 = scmp.eq.s32.totalorder %s51, 1
      %p497 = por %p495, %p496
      %p499 = scmp.ne.s32.totalorder %s484, %s498
      %p500 = scmp.eq.s32.totalorder %s51, 0
      %p501 = por %p499, %p500
      %s503 = sadd.s32 %s502, 1
      %p506 = scmp.eq.s32.totalorder %s45, 1
      %p507 = scmp.ne.s32.totalorder %s502, %s504
      %p508 = scmp.eq.s32.totalorder %s45, 0
      %p509 = por %p507, %p508
      %p510 = scmp.ne.s32.totalorder %s502, %s504
      %p511 = scmp.eq.s32.totalorder %s50, 1
      %p512 = por %p510, %p511
      %p513 = scmp.ne.s32.totalorder %s504, %s505
      %p514 = scmp.eq.s32.totalorder %s50, 0
      %p515 = por %p513, %p514
      %p516 = scmp.ne.s32.totalorder %s504, %s505
      %p517 = scmp.eq.s32.totalorder %s51, 1
      %p518 = por %p516, %p517
      %p520 = scmp.ne.s32.totalorder %s505, %s519
      %p521 = scmp.eq.s32.totalorder %s51, 0
      %p522 = por %p520, %p521
      %s523 = ssub.s32 %s52, %s64
      %s524 = ssub.s32 %s53, %s60
      %s525 = sor.u32 %s523, %s524
      %p526 = scmp.eq.s32.totalorder %s525, 0
      %s528 = sadd.s32 %s527, 1
      %s529 = scalar_select %p526, %s527, %s528
      %p532 = pneg %p526
      %p533 = scmp.eq.s32.totalorder %s45, 1
      %p534 = por %p532, %p533
      %p535 = scmp.ne.s32.totalorder %s527, %s530
      %p536 = scmp.eq.s32.totalorder %s45, 0
      %p537 = por %p535, %p536
      %p538 = scmp.ne.s32.totalorder %s527, %s530
      %p539 = scmp.eq.s32.totalorder %s50, 1
      %p540 = por %p538, %p539
      %p541 = scmp.ne.s32.totalorder %s530, %s531
      %p542 = scmp.eq.s32.totalorder %s50, 0
      %p543 = por %p541, %p542
      %p544 = scmp.ne.s32.totalorder %s530, %s531
      %p545 = scmp.eq.s32.totalorder %s51, 1
      %p546 = por %p544, %p545
      %p548 = scmp.ne.s32.totalorder %s531, %s547
      %p549 = scmp.eq.s32.totalorder %s51, 0
      %p550 = por %p548, %p549
      %p551 = scmp.le.s32.totalorder 1, %s45
      %p552 = scmp.lt.s32.totalorder %s45, 3
      %p553 = pnand %p551, %p552
      %p554 = pneg %p553
      // Predicated region
      $region9: #{tpu_custom_call.1} parent=5 // pred_check
        _
      $region10: #{tpu_custom_call.1} parent=5 // pred_check_branch
        %556 = sbr.rel (%p553) target = $region12
      $region11: #{tpu_custom_call.1} parent=5 // pred_region
        %s557 = ssub.s32 %s45, 1
        // Predicated region
        $region13: #{tpu_custom_call.1} parent=11 // pred_check
          %p558 = pneg %p158
        $region14: #{tpu_custom_call.1} parent=11 // pred_check_branch
          %560 = sbr.rel (%p558) target = $region16
        $region15: #{tpu_custom_call.1} parent=11 // pred_region
          %s562 = ssub.s32 256, 256
          %563 = vsyncadd [#allocation9], %s562
          %s564 = sshll.u32 [#allocation8], 4
          %s565 = int_to_ptr.vmem [resolvable:$true] %s564
          %570 = dma.hbm_to_vmem [thread:$0]  %s3, 256, %s565, [#allocation9], 64, 64, 4
        $region16: #{tpu_custom_call.1} parent=11 // pred_fallthru
          _
        // Predicated region
        $region17: #{tpu_custom_call.1} parent=11 // pred_check
          %p571 = pneg %p179
        $region18: #{tpu_custom_call.1} parent=11 // pred_check_branch
          %573 = sbr.rel (%p571) target = $region20
        $region19: #{tpu_custom_call.1} parent=11 // pred_region
          %s575 = ssub.s32 16, 16
          %576 = vsyncadd [#allocation9], %s575
          %s578 = sshll.u32 [#allocation10], 4
          %s579 = int_to_ptr.vmem [resolvable:$true] %s578
          %581 = dma.hbm_to_vmem [thread:$0]  %s4, 16, %s579, [#allocation9]
        $region20: #{tpu_custom_call.1} parent=11 // pred_fallthru
          _
        // Predicated region
        $region21: #{tpu_custom_call.1} parent=11 // pred_check
          %p582 = pneg %p200
        $region22: #{tpu_custom_call.1} parent=11 // pred_check_branch
          %584 = sbr.rel (%p582) target = $region24
        $region23: #{tpu_custom_call.1} parent=11 // pred_region
          %s586 = ssub.s32 256, 256
          %587 = vsyncadd [#allocation12], %s586
          %s588 = sshll.u32 [#allocation11], 4
          %s589 = int_to_ptr.vmem [resolvable:$true] %s588
          %594 = dma.hbm_to_vmem [thread:$0]  %s5, 256, %s589, [#allocation12], 64, 64, 4
        $region24: #{tpu_custom_call.1} parent=11 // pred_fallthru
          _
        // Predicated region
        $region25: #{tpu_custom_call.1} parent=11 // pred_check
          %p595 = pneg %p221
        $region26: #{tpu_custom_call.1} parent=11 // pred_check_branch
          %597 = sbr.rel (%p595) target = $region28
        $region27: #{tpu_custom_call.1} parent=11 // pred_region
          %s599 = ssub.s32 16, 16
          %600 = vsyncadd [#allocation12], %s599
          %s602 = sshll.u32 [#allocation13], 4
          %s603 = int_to_ptr.vmem [resolvable:$true] %s602
          %605 = dma.hbm_to_vmem [thread:$0]  %s6, 16, %s603, [#allocation12]
        $region28: #{tpu_custom_call.1} parent=11 // pred_fallthru
          _
        // Predicated region
        $region29: #{tpu_custom_call.1} parent=11 // pred_check
          %p606 = pneg %p242
        $region30: #{tpu_custom_call.1} parent=11 // pred_check_branch
          %608 = sbr.rel (%p606) target = $region32
        $region31: #{tpu_custom_call.1} parent=11 // pred_region
          %s610 = ssub.s32 256, 256
          %611 = vsyncadd [#allocation15], %s610
          %s612 = sshll.u32 [#allocation14], 4
          %s613 = int_to_ptr.vmem [resolvable:$true] %s612
          %618 = dma.hbm_to_vmem [thread:$0]  %s7, 256, %s613, [#allocation15], 64, 64, 4
        $region32: #{tpu_custom_call.1} parent=11 // pred_fallthru
          _
        // Predicated region
        $region33: #{tpu_custom_call.1} parent=11 // pred_check
          %p619 = pneg %p263
        $region34: #{tpu_custom_call.1} parent=11 // pred_check_branch
          %621 = sbr.rel (%p619) target = $region36
        $region35: #{tpu_custom_call.1} parent=11 // pred_region
          %s623 = ssub.s32 16, 16
          %624 = vsyncadd [#allocation15], %s623
          %s626 = sshll.u32 [#allocation16], 4
          %s627 = int_to_ptr.vmem [resolvable:$true] %s626
          %629 = dma.hbm_to_vmem [thread:$0]  %s8, 16, %s627, [#allocation15]
        $region36: #{tpu_custom_call.1} parent=11 // pred_fallthru
          _
        // Predicated region
        $region37: #{tpu_custom_call.1} parent=11 // pred_check
          %p630 = pneg %p284
        $region38: #{tpu_custom_call.1} parent=11 // pred_check_branch
          %632 = sbr.rel (%p630) target = $region40
        $region39: #{tpu_custom_call.1} parent=11 // pred_region
          %s634 = ssub.s32 256, 256
          %635 = vsyncadd [#allocation18], %s634
          %s636 = sshll.u32 [#allocation17], 4
          %s637 = int_to_ptr.vmem [resolvable:$true] %s636
          %642 = dma.hbm_to_vmem [thread:$0]  %s9, 256, %s637, [#allocation18], 64, 64, 4
        $region40: #{tpu_custom_call.1} parent=11 // pred_fallthru
          _
        // Predicated region
        $region41: #{tpu_custom_call.1} parent=11 // pred_check
          %p643 = pneg %p305
        $region42: #{tpu_custom_call.1} parent=11 // pred_check_branch
          %645 = sbr.rel (%p643) target = $region44
        $region43: #{tpu_custom_call.1} parent=11 // pred_region
          %s647 = ssub.s32 16, 16
          %648 = vsyncadd [#allocation18], %s647
          %s650 = sshll.u32 [#allocation19], 4
          %s651 = int_to_ptr.vmem [resolvable:$true] %s650
          %653 = dma.hbm_to_vmem [thread:$0]  %s10, 16, %s651, [#allocation18]
        $region44: #{tpu_custom_call.1} parent=11 // pred_fallthru
          _
        // Predicated region
        $region45: #{tpu_custom_call.1} parent=11 // pred_check
          %p654 = pneg %p326
        $region46: #{tpu_custom_call.1} parent=11 // pred_check_branch
          %656 = sbr.rel (%p654) target = $region48
        $region47: #{tpu_custom_call.1} parent=11 // pred_region
          %s658 = ssub.s32 16, 16
          %659 = vsyncadd [#allocation21], %s658
          %s661 = sshll.u32 [#allocation20], 4
          %s662 = int_to_ptr.vmem [resolvable:$true] %s661
          %664 = dma.hbm_to_vmem [thread:$0]  %s11, 16, %s662, [#allocation21]
        $region48: #{tpu_custom_call.1} parent=11 // pred_fallthru
          _
        // Predicated region
        $region49: #{tpu_custom_call.1} parent=11 // pred_check
          %p665 = pneg %p347
        $region50: #{tpu_custom_call.1} parent=11 // pred_check_branch
          %667 = sbr.rel (%p665) target = $region52
        $region51: #{tpu_custom_call.1} parent=11 // pred_region
          %s669 = ssub.s32 16, 16
          %670 = vsyncadd [#allocation21], %s669
          %s672 = sshll.u32 [#allocation22], 4
          %s673 = int_to_ptr.vmem [resolvable:$true] %s672
          %675 = dma.hbm_to_vmem [thread:$0]  %s12, 16, %s673, [#allocation21]
        $region52: #{tpu_custom_call.1} parent=11 // pred_fallthru
          _
        // Predicated region
        $region53: #{tpu_custom_call.1} parent=11 // pred_check
          %p676 = pneg %p368
        $region54: #{tpu_custom_call.1} parent=11 // pred_check_branch
          %678 = sbr.rel (%p676) target = $region56
        $region55: #{tpu_custom_call.1} parent=11 // pred_region
          %s680 = ssub.s32 16, 16
          %681 = vsyncadd [#allocation24], %s680
          %s683 = sshll.u32 [#allocation23], 4
          %s684 = int_to_ptr.vmem [resolvable:$true] %s683
          %686 = dma.hbm_to_vmem [thread:$0]  %s13, 16, %s684, [#allocation24]
        $region56: #{tpu_custom_call.1} parent=11 // pred_fallthru
          _
        // Predicated region
        $region57: #{tpu_custom_call.1} parent=11 // pred_check
          %p687 = pneg %p389
        $region58: #{tpu_custom_call.1} parent=11 // pred_check_branch
          %689 = sbr.rel (%p687) target = $region60
        $region59: #{tpu_custom_call.1} parent=11 // pred_region
          %s691 = ssub.s32 16, 16
          %692 = vsyncadd [#allocation24], %s691
          %s694 = sshll.u32 [#allocation25], 4
          %s695 = int_to_ptr.vmem [resolvable:$true] %s694
          %697 = dma.hbm_to_vmem [thread:$0]  %s14, 16, %s695, [#allocation24]
        $region60: #{tpu_custom_call.1} parent=11 // pred_fallthru
          _
        // Predicated region
        $region61: #{tpu_custom_call.1} parent=11 // pred_check
          %p698 = pneg %p410
        $region62: #{tpu_custom_call.1} parent=11 // pred_check_branch
          %700 = sbr.rel (%p698) target = $region64
        $region63: #{tpu_custom_call.1} parent=11 // pred_region
          %s702 = ssub.s32 256, 256
          %703 = vsyncadd [#allocation27], %s702
          %s704 = sshll.u32 [#allocation26], 4
          %s705 = int_to_ptr.vmem [resolvable:$true] %s704
          %710 = dma.hbm_to_vmem [thread:$0]  %s15, 256, %s705, [#allocation27], 64, 64, 4
        $region64: #{tpu_custom_call.1} parent=11 // pred_fallthru
          _
        // Predicated region
        $region65: #{tpu_custom_call.1} parent=11 // pred_check
          %p711 = pneg %p431
        $region66: #{tpu_custom_call.1} parent=11 // pred_check_branch
          %713 = sbr.rel (%p711) target = $region68
        $region67: #{tpu_custom_call.1} parent=11 // pred_region
          %s715 = ssub.s32 16, 16
          %716 = vsyncadd [#allocation27], %s715
          %s718 = sshll.u32 [#allocation28], 4
          %s719 = int_to_ptr.vmem [resolvable:$true] %s718
          %721 = dma.hbm_to_vmem [thread:$0]  %s16, 16, %s719, [#allocation27]
        $region68: #{tpu_custom_call.1} parent=11 // pred_fallthru
          _
        // Predicated region
        $region69: #{tpu_custom_call.1} parent=11 // pred_check
          %p722 = pneg %p452
        $region70: #{tpu_custom_call.1} parent=11 // pred_check_branch
          %724 = sbr.rel (%p722) target = $region72
        $region71: #{tpu_custom_call.1} parent=11 // pred_region
          %s726 = ssub.s32 512, 512
          %727 = vsyncadd [#allocation30], %s726
          %s728 = sshll.u32 [#allocation29], 4
          %s729 = int_to_ptr.vmem [resolvable:$true] %s728
          %734 = dma.hbm_to_vmem [thread:$0]  %s17, 512, %s729, [#allocation30], 64, 64, 4
        $region72: #{tpu_custom_call.1} parent=11 // pred_fallthru
          _
        // Predicated region
        $region73: #{tpu_custom_call.1} parent=11 // pred_check
          %p735 = pneg %p473
        $region74: #{tpu_custom_call.1} parent=11 // pred_check_branch
          %737 = sbr.rel (%p735) target = $region76
        $region75: #{tpu_custom_call.1} parent=11 // pred_region
          %s739 = ssub.s32 16, 16
          %740 = vsyncadd [#allocation30], %s739
          %s742 = sshll.u32 [#allocation31], 4
          %s743 = int_to_ptr.vmem [resolvable:$true] %s742
          %745 = dma.hbm_to_vmem [thread:$0]  %s18, 16, %s743, [#allocation30]
        $region76: #{tpu_custom_call.1} parent=11 // pred_fallthru
          _
        // Predicated region
        $region77: #{tpu_custom_call.1} parent=11 // pred_check
          %p746 = pneg %p494
        $region78: #{tpu_custom_call.1} parent=11 // pred_check_branch
          %748 = sbr.rel (%p746) target = $region80
        $region79: #{tpu_custom_call.1} parent=11 // pred_region
          %s750 = ssub.s32 16, 16
          %751 = vsyncadd [#allocation33], %s750
          %s753 = sshll.u32 [#allocation32], 4
          %s754 = int_to_ptr.vmem [resolvable:$true] %s753
          %756 = dma.hbm_to_vmem [thread:$0]  %s19, 16, %s754, [#allocation33]
        $region80: #{tpu_custom_call.1} parent=11 // pred_fallthru
          _
        // Predicated region
        $region81: #{tpu_custom_call.1} parent=11 // pred_check
          %p757 = pneg %p515
        $region82: #{tpu_custom_call.1} parent=11 // pred_check_branch
          %759 = sbr.rel (%p757) target = $region84
        $region83: #{tpu_custom_call.1} parent=11 // pred_region
          %s761 = ssub.s32 16, 16
          %762 = vsyncadd [#allocation33], %s761
          %s764 = sshll.u32 [#allocation34], 4
          %s765 = int_to_ptr.vmem [resolvable:$true] %s764
          %767 = dma.hbm_to_vmem [thread:$0]  %s20, 16, %s765, [#allocation33]
        $region84: #{tpu_custom_call.1} parent=11 // pred_fallthru
          _
      $region12: #{tpu_custom_call.1} parent=5 // pred_fallthru
        _
      %p768 = scmp.lt.s32.totalorder %s45, 2
      // Predicated region
      $region85: #{tpu_custom_call.1} parent=5 // pred_check
        %p769 = pneg %p768
      $region86: #{tpu_custom_call.1} parent=5 // pred_check_branch
        %771 = sbr.rel (%p769) target = $region88
      $region87: #{tpu_custom_call.1} parent=5 // pred_region
        // Predicated region
        $region89: #{tpu_custom_call.1} parent=87 // pred_check
          %p772 = pneg %p79
        $region90: #{tpu_custom_call.1} parent=87 // pred_check_branch
          %774 = sbr.rel (%p772) target = $region92
        $region91: #{tpu_custom_call.1} parent=87 // pred_region
          %s775 = sand.u32 %s69, 1
          %s776 = scalar_lea.sflag [#allocation3], %s775
          %s777 = sand.u32 %s69, 1
          %s778 = smul.addr %s777, 8
          %s779 = scalar_lea.vmem [#allocation2], %s778
          %s781 = ssub.s32 128, 128
          %782 = vsyncadd %s776, %s781
          %s783 = sadd.s32 %s53, %s52
          %s784 = smul.addr %s783, 128
          %s785 = scalar_lea.hbm %s0, %s784
          %s787 = sshll.u32 %s779, 4
          %s788 = int_to_ptr.vmem [resolvable:$true] %s787
          %790 = dma.hbm_to_vmem [thread:$0]  %s785, 128, %s788, %s776
        $region92: #{tpu_custom_call.1} parent=87 // pred_fallthru
          _
        // Predicated region
        $region93: #{tpu_custom_call.1} parent=87 // pred_check
          %p791 = pneg %p105
        $region94: #{tpu_custom_call.1} parent=87 // pred_check_branch
          %793 = sbr.rel (%p791) target = $region96
        $region95: #{tpu_custom_call.1} parent=87 // pred_region
          %s794 = sand.u32 %s45, 1
          %s795 = scalar_lea.sflag [#allocation6], %s794
          %s796 = sand.u32 %s95, 1
          %s797 = smul.addr %s796, 8
          %s798 = scalar_lea.vmem [#allocation5], %s797
          %s800 = ssub.s32 128, 128
          %801 = vsyncadd %s795, %s800
          %s802 = smul.addr %s52, 128
          %s803 = scalar_lea.hbm %s1, %s802
          %s805 = sshll.u32 %s798, 4
          %s806 = int_to_ptr.vmem [resolvable:$true] %s805
          %808 = dma.hbm_to_vmem [thread:$0]  %s803, 128, %s806, %s795
        $region96: #{tpu_custom_call.1} parent=87 // pred_fallthru
          _
        // Predicated region
        $region97: #{tpu_custom_call.1} parent=87 // pred_check
          %p809 = pneg %p131
        $region98: #{tpu_custom_call.1} parent=87 // pred_check_branch
          %811 = sbr.rel (%p809) target = $region100
        $region99: #{tpu_custom_call.1} parent=87 // pred_region
          %s812 = sand.u32 %s45, 1
          %s813 = scalar_lea.sflag [#allocation6], %s812
          %s814 = sand.u32 %s121, 1
          %s815 = smul.addr %s814, 8
          %s816 = scalar_lea.vmem [#allocation7], %s815
          %s818 = ssub.s32 128, 128
          %819 = vsyncadd %s813, %s818
          %s820 = smul.addr %s52, 128
          %s821 = scalar_lea.hbm %s2, %s820
          %s823 = sshll.u32 %s816, 4
          %s824 = int_to_ptr.vmem [resolvable:$true] %s823
          %826 = dma.hbm_to_vmem [thread:$0]  %s821, 128, %s824, %s813
        $region100: #{tpu_custom_call.1} parent=87 // pred_fallthru
          _
      $region88: #{tpu_custom_call.1} parent=5 // pred_fallthru
        _
      %p827 = scmp.le.s32.totalorder 1, %s45
      %p828 = scmp.lt.s32.totalorder %s45, 3
      %p829 = pnand %p827, %p828
      %p830 = pneg %p829
      // Predicated region
      $region101: #{tpu_custom_call.1} parent=5 // pred_check
        _
      $region102: #{tpu_custom_call.1} parent=5 // pred_check_branch
        %832 = sbr.rel (%p829) target = $region104
      $region103: #{tpu_custom_call.1} parent=5 // pred_region
        %s833 = ssub.s32 %s45, 1
        %s834 = sand.u32 %s72, 1
        %s835 = scalar_lea.sflag [#allocation3], %s834
        %s836 = sand.u32 %s72, 1
        %s837 = smul.addr %s836, 8
        %s838 = scalar_lea.vmem [#allocation2], %s837
        // Predicated region
        $region105: #{tpu_custom_call.1} parent=103 // pred_check
          %p839 = pneg %p85
        $region106: #{tpu_custom_call.1} parent=103 // pred_check_branch
          %841 = sbr.rel (%p839) target = $region108
        $region107: #{tpu_custom_call.1} parent=103 // pred_region
          %842 = dma.done %s835, 128
        $region108: #{tpu_custom_call.1} parent=103 // pred_fallthru
          _
        %s843 = sand.u32 %s50, 1
        %s844 = scalar_lea.sflag [#allocation6], %s843
        %s845 = sand.u32 %s98, 1
        %s846 = smul.addr %s845, 8
        %s847 = scalar_lea.vmem [#allocation5], %s846
        // Predicated region
        $region109: #{tpu_custom_call.1} parent=103 // pred_check
          %p848 = pneg %p111
        $region110: #{tpu_custom_call.1} parent=103 // pred_check_branch
          %850 = sbr.rel (%p848) target = $region112
        $region111: #{tpu_custom_call.1} parent=103 // pred_region
          %851 = dma.done %s844, 128
        $region112: #{tpu_custom_call.1} parent=103 // pred_fallthru
          _
        %s852 = sand.u32 %s50, 1
        %s853 = scalar_lea.sflag [#allocation6], %s852
        %s854 = sand.u32 %s124, 1
        %s855 = smul.addr %s854, 8
        %s856 = scalar_lea.vmem [#allocation7], %s855
        // Predicated region
        $region113: #{tpu_custom_call.1} parent=103 // pred_check
          %p857 = pneg %p137
        $region114: #{tpu_custom_call.1} parent=103 // pred_check_branch
          %859 = sbr.rel (%p857) target = $region116
        $region115: #{tpu_custom_call.1} parent=103 // pred_region
          %860 = dma.done %s853, 128
        $region116: #{tpu_custom_call.1} parent=103 // pred_fallthru
          _
        // Predicated region
        $region117: #{tpu_custom_call.1} parent=103 // pred_check
          %p861 = pneg %p158
        $region118: #{tpu_custom_call.1} parent=103 // pred_check_branch
          %863 = sbr.rel (%p861) target = $region120
        $region119: #{tpu_custom_call.1} parent=103 // pred_region
          %864 = dma.done [#allocation9], 256
        $region120: #{tpu_custom_call.1} parent=103 // pred_fallthru
          _
        // Predicated region
        $region121: #{tpu_custom_call.1} parent=103 // pred_check
          %p865 = pneg %p179
        $region122: #{tpu_custom_call.1} parent=103 // pred_check_branch
          %867 = sbr.rel (%p865) target = $region124
        $region123: #{tpu_custom_call.1} parent=103 // pred_region
          %868 = dma.done [#allocation9], 16
        $region124: #{tpu_custom_call.1} parent=103 // pred_fallthru
          _
        // Predicated region
        $region125: #{tpu_custom_call.1} parent=103 // pred_check
          %p869 = pneg %p200
        $region126: #{tpu_custom_call.1} parent=103 // pred_check_branch
          %871 = sbr.rel (%p869) target = $region128
        $region127: #{tpu_custom_call.1} parent=103 // pred_region
          %872 = dma.done [#allocation12], 256
        $region128: #{tpu_custom_call.1} parent=103 // pred_fallthru
          _
        // Predicated region
        $region129: #{tpu_custom_call.1} parent=103 // pred_check
          %p873 = pneg %p221
        $region130: #{tpu_custom_call.1} parent=103 // pred_check_branch
          %875 = sbr.rel (%p873) target = $region132
        $region131: #{tpu_custom_call.1} parent=103 // pred_region
          %876 = dma.done [#allocation12], 16
        $region132: #{tpu_custom_call.1} parent=103 // pred_fallthru
          _
        // Predicated region
        $region133: #{tpu_custom_call.1} parent=103 // pred_check
          %p877 = pneg %p242
        $region134: #{tpu_custom_call.1} parent=103 // pred_check_branch
          %879 = sbr.rel (%p877) target = $region136
        $region135: #{tpu_custom_call.1} parent=103 // pred_region
          %880 = dma.done [#allocation15], 256
        $region136: #{tpu_custom_call.1} parent=103 // pred_fallthru
          _
        // Predicated region
        $region137: #{tpu_custom_call.1} parent=103 // pred_check
          %p881 = pneg %p263
        $region138: #{tpu_custom_call.1} parent=103 // pred_check_branch
          %883 = sbr.rel (%p881) target = $region140
        $region139: #{tpu_custom_call.1} parent=103 // pred_region
          %884 = dma.done [#allocation15], 16
        $region140: #{tpu_custom_call.1} parent=103 // pred_fallthru
          _
        // Predicated region
        $region141: #{tpu_custom_call.1} parent=103 // pred_check
          %p885 = pneg %p284
        $region142: #{tpu_custom_call.1} parent=103 // pred_check_branch
          %887 = sbr.rel (%p885) target = $region144
        $region143: #{tpu_custom_call.1} parent=103 // pred_region
          %888 = dma.done [#allocation18], 256
        $region144: #{tpu_custom_call.1} parent=103 // pred_fallthru
          _
        // Predicated region
        $region145: #{tpu_custom_call.1} parent=103 // pred_check
          %p889 = pneg %p305
        $region146: #{tpu_custom_call.1} parent=103 // pred_check_branch
          %891 = sbr.rel (%p889) target = $region148
        $region147: #{tpu_custom_call.1} parent=103 // pred_region
          %892 = dma.done [#allocation18], 16
        $region148: #{tpu_custom_call.1} parent=103 // pred_fallthru
          _
        // Predicated region
        $region149: #{tpu_custom_call.1} parent=103 // pred_check
          %p893 = pneg %p326
        $region150: #{tpu_custom_call.1} parent=103 // pred_check_branch
          %895 = sbr.rel (%p893) target = $region152
        $region151: #{tpu_custom_call.1} parent=103 // pred_region
          %896 = dma.done [#allocation21], 16
        $region152: #{tpu_custom_call.1} parent=103 // pred_fallthru
          _
        // Predicated region
        $region153: #{tpu_custom_call.1} parent=103 // pred_check
          %p897 = pneg %p347
        $region154: #{tpu_custom_call.1} parent=103 // pred_check_branch
          %899 = sbr.rel (%p897) target = $region156
        $region155: #{tpu_custom_call.1} parent=103 // pred_region
          %900 = dma.done [#allocation21], 16
        $region156: #{tpu_custom_call.1} parent=103 // pred_fallthru
          _
        // Predicated region
        $region157: #{tpu_custom_call.1} parent=103 // pred_check
          %p901 = pneg %p368
        $region158: #{tpu_custom_call.1} parent=103 // pred_check_branch
          %903 = sbr.rel (%p901) target = $region160
        $region159: #{tpu_custom_call.1} parent=103 // pred_region
          %904 = dma.done [#allocation24], 16
        $region160: #{tpu_custom_call.1} parent=103 // pred_fallthru
          _
        // Predicated region
        $region161: #{tpu_custom_call.1} parent=103 // pred_check
          %p905 = pneg %p389
        $region162: #{tpu_custom_call.1} parent=103 // pred_check_branch
          %907 = sbr.rel (%p905) target = $region164
        $region163: #{tpu_custom_call.1} parent=103 // pred_region
          %908 = dma.done [#allocation24], 16
        $region164: #{tpu_custom_call.1} parent=103 // pred_fallthru
          _
        // Predicated region
        $region165: #{tpu_custom_call.1} parent=103 // pred_check
          %p909 = pneg %p410
        $region166: #{tpu_custom_call.1} parent=103 // pred_check_branch
          %911 = sbr.rel (%p909) target = $region168
        $region167: #{tpu_custom_call.1} parent=103 // pred_region
          %912 = dma.done [#allocation27], 256
        $region168: #{tpu_custom_call.1} parent=103 // pred_fallthru
          _
        // Predicated region
        $region169: #{tpu_custom_call.1} parent=103 // pred_check
          %p913 = pneg %p431
        $region170: #{tpu_custom_call.1} parent=103 // pred_check_branch
          %915 = sbr.rel (%p913) target = $region172
        $region171: #{tpu_custom_call.1} parent=103 // pred_region
          %916 = dma.done [#allocation27], 16
        $region172: #{tpu_custom_call.1} parent=103 // pred_fallthru
          _
        // Predicated region
        $region173: #{tpu_custom_call.1} parent=103 // pred_check
          %p917 = pneg %p452
        $region174: #{tpu_custom_call.1} parent=103 // pred_check_branch
          %919 = sbr.rel (%p917) target = $region176
        $region175: #{tpu_custom_call.1} parent=103 // pred_region
          %920 = dma.done [#allocation30], 512
        $region176: #{tpu_custom_call.1} parent=103 // pred_fallthru
          _
        // Predicated region
        $region177: #{tpu_custom_call.1} parent=103 // pred_check
          %p921 = pneg %p473
        $region178: #{tpu_custom_call.1} parent=103 // pred_check_branch
          %923 = sbr.rel (%p921) target = $region180
        $region179: #{tpu_custom_call.1} parent=103 // pred_region
          %924 = dma.done [#allocation30], 16
        $region180: #{tpu_custom_call.1} parent=103 // pred_fallthru
          _
        // Predicated region
        $region181: #{tpu_custom_call.1} parent=103 // pred_check
          %p925 = pneg %p494
        $region182: #{tpu_custom_call.1} parent=103 // pred_check_branch
          %927 = sbr.rel (%p925) target = $region184
        $region183: #{tpu_custom_call.1} parent=103 // pred_region
          %928 = dma.done [#allocation33], 16
        $region184: #{tpu_custom_call.1} parent=103 // pred_fallthru
          _
        // Predicated region
        $region185: #{tpu_custom_call.1} parent=103 // pred_check
          %p929 = pneg %p515
        $region186: #{tpu_custom_call.1} parent=103 // pred_check_branch
          %931 = sbr.rel (%p929) target = $region188
        $region187: #{tpu_custom_call.1} parent=103 // pred_region
          %932 = dma.done [#allocation33], 16
        $region188: #{tpu_custom_call.1} parent=103 // pred_fallthru
          _
        %s933 = sand.u32 %s72, 1
        %s934 = scalar_lea.sflag [#allocation3], %s933
        %s935 = sand.u32 %s72, 1
        %s936 = smul.addr %s935, 8
        %s937 = scalar_lea.vmem [#allocation2], %s936
        %p938 = pneg %p85
        %p939 = pneg %p82
        %s940 = sand.u32 %s50, 1
        %s941 = scalar_lea.sflag [#allocation6], %s940
        %s942 = sand.u32 %s98, 1
        %s943 = smul.addr %s942, 8
        %s944 = scalar_lea.vmem [#allocation5], %s943
        %p945 = pneg %p111
        %p946 = pneg %p108
        %s947 = sand.u32 %s50, 1
        %s948 = scalar_lea.sflag [#allocation6], %s947
        %s949 = sand.u32 %s124, 1
        %s950 = smul.addr %s949, 8
        %s951 = scalar_lea.vmem [#allocation7], %s950
        %p952 = pneg %p137
        %p953 = pneg %p134
        %p954 = pneg %p158
        %p955 = pneg %p155
        %p956 = pneg %p179
        %p957 = pneg %p176
        %p958 = pneg %p200
        %p959 = pneg %p197
        %p960 = pneg %p221
        %p961 = pneg %p218
        %p962 = pneg %p242
        %p963 = pneg %p239
        %p964 = pneg %p263
        %p965 = pneg %p260
        %p966 = pneg %p284
        %p967 = pneg %p281
        %p968 = pneg %p305
        %p969 = pneg %p302
        %p970 = pneg %p326
        %p971 = pneg %p323
        %p972 = pneg %p347
        %p973 = pneg %p344
        %p974 = pneg %p368
        %p975 = pneg %p365
        %p976 = pneg %p389
        %p977 = pneg %p386
        %p978 = pneg %p410
        %p979 = pneg %p407
        %p980 = pneg %p431
        %p981 = pneg %p428
        %p982 = pneg %p452
        %p983 = pneg %p449
        %p984 = pneg %p473
        %p985 = pneg %p470
        %p986 = pneg %p494
        %p987 = pneg %p491
        %p988 = pneg %p515
        %p989 = pneg %p512
        %p990 = pneg %p543
        %p991 = pneg %p540
        %s992 = sand.u32 %s530, 1
        %s993 = scalar_lea.sflag [#allocation4], %s992
        %s994 = sand.u32 %s530, 1
        %s995 = smul.addr %s994, 8
        %s996 = scalar_lea.vmem [#allocation35], %s995
        %v998 = vld [vmem:[%s838] sm:$0xff]
        %v999 = vpack.c.bf16 %v998, %v998
        %v1000 = vld [vmem:[%s847] sm:$0xff]
        %v1001 = vpack.c.bf16 %v1000, %v1000
        %v1002 = vld [vmem:[%s856] sm:$0xff]
        %v1003 = vpack.c.bf16 %v1002, %v1002
        %v1004 = vld [vmem:[#allocation8] sm:$0xf]
        %v1005 = vld [vmem:[#allocation8 + $0x4] sm:$0xf]
        %v1006 = vld [vmem:[#allocation8 + $0x8] sm:$0xf]
        %v1007 = vld [vmem:[#allocation8 + $0xc] sm:$0xf]
        %v1008 = vld [vmem:[#allocation10] sm:$0x1]
        %v1010 = vlaneseq
        %v1011 = vshrl.u32 %v1010, 7
        %v1012 = vsub.s32 0, %v1011
        %v1013 = vrot.slane %v1008, %v1012
        %v1019 = vunpack.c.l.b16 %v1004
        %v1020 = vunpack.c.l.b16 %v1005
        %v1021 = vunpack.c.l.b16 %v1006
        %v1022 = vunpack.c.l.b16 %v1007
        %v1023 = vpack.c.b16 %v1020, %v1019
        %v1024 = vpack.c.b16 %v1022, %v1021
        %vm1027 = vcmask 261120
        %v1029 = vsel %vm1027, %v999, 0
        %1031 = vmatprep.subr.bf16.mxu0 0
        %1032 = vmatpush1.bf16.msra.mxu0 %v1023
        %1033 = vmatprep.subr.bf16.mxu0 0
        %1034 = vmatpush1.bf16.msra.mxu0 %v1024
        %1035 = vmatprep.subr.bf16.mxu0 0
        %1036 = vmatpush1.bf16.msra.mxu0 0
        %1037 = vmatprep.subr.bf16.mxu0 0
        %1038 = vmatpush1.bf16.msra.mxu0 0
        %1039 = vmatprep.subr.bf16.mxu0 0
        %1040 = vmatpush1.bf16.msra.mxu0 0
        %1041 = vmatprep.subr.bf16.mxu0 0
        %1042 = vmatpush1.bf16.msra.mxu0 0
        %1043 = vmatprep.subr.bf16.mxu0 0
        %1044 = vmatpush1.bf16.msra.mxu0 0
        %1045 = vmatprep.subr.bf16.mxu0 0
        %1046 = vmatpush1.bf16.msra.mxu0 0
        %1047 = vmatprep.subr.bf16.mxu0 0
        %1048 = vmatpush1.bf16.msra.mxu0 0
        %1049 = vmatprep.subr.bf16.mxu0 0
        %1050 = vmatpush1.bf16.msra.mxu0 0
        %1051 = vmatprep.subr.bf16.mxu0 0
        %1052 = vmatpush1.bf16.msra.mxu0 0
        %1053 = vmatprep.subr.bf16.mxu0 0
        %1054 = vmatpush1.bf16.msra.mxu0 0
        %1055 = vmatprep.subr.bf16.mxu0 0
        %1056 = vmatpush1.bf16.msra.mxu0 0
        %1057 = vmatprep.subr.bf16.mxu0 0
        %1058 = vmatpush1.bf16.msra.mxu0 0
        %1059 = vmatprep.subr.bf16.mxu0 0
        %1060 = vmatpush1.bf16.msra.mxu0 0
        %1061 = vmatprep.subr.bf16.mxu0 0
        %1062 = vmatpush1.bf16.msra.mxu0 0
        %1063 = vmatprep.mubr.bf16.mxu0 0
        %1064 = vmatmul.mubr.bf16.gmra.mrb[0].mxu0 %v1029
        %v1065 = vpop.f32.mrb[0].mxu0
        %v1066 = vadd.f32 %v1013, %v1065
        %v1067 = vpop.f32.mrb[0].mxu0
        %v1068 = vpop.f32.mrb[0].mxu0
        %v1069 = vpop.f32.mrb[0].mxu0
        %1070 = vdwg.mxu0
        %v1071 = vpack.c.bf16 %v1066, %v1066
        %v1072 = vld [vmem:[#allocation11] sm:$0xf]
        %v1073 = vld [vmem:[#allocation11 + $0x4] sm:$0xf]
        %v1074 = vld [vmem:[#allocation11 + $0x8] sm:$0xf]
        %v1075 = vld [vmem:[#allocation11 + $0xc] sm:$0xf]
        %v1076 = vld [vmem:[#allocation13] sm:$0x1]
        %v1078 = vlaneseq
        %v1079 = vshrl.u32 %v1078, 7
        %v1080 = vsub.s32 0, %v1079
        %v1081 = vrot.slane %v1076, %v1080
        %v1087 = vunpack.c.l.b16 %v1072
        %v1088 = vunpack.c.l.b16 %v1073
        %v1089 = vunpack.c.l.b16 %v1074
        %v1090 = vunpack.c.l.b16 %v1075
        %v1091 = vpack.c.b16 %v1088, %v1087
        %v1092 = vpack.c.b16 %v1090, %v1089
        %v1096 = vsel %vm1027, %v1001, 0
        %1098 = vmatprep.subr.bf16.mxu0 0
        %1099 = vmatpush1.bf16.msra.mxu0 %v1091
        %1100 = vmatprep.subr.bf16.mxu0 0
        %1101 = vmatpush1.bf16.msra.mxu0 %v1092
        %1102 = vmatprep.subr.bf16.mxu0 0
        %1103 = vmatpush1.bf16.msra.mxu0 0
        %1104 = vmatprep.subr.bf16.mxu0 0
        %1105 = vmatpush1.bf16.msra.mxu0 0
        %1106 = vmatprep.subr.bf16.mxu0 0
        %1107 = vmatpush1.bf16.msra.mxu0 0
        %1108 = vmatprep.subr.bf16.mxu0 0
        %1109 = vmatpush1.bf16.msra.mxu0 0
        %1110 = vmatprep.subr.bf16.mxu0 0
        %1111 = vmatpush1.bf16.msra.mxu0 0
        %1112 = vmatprep.subr.bf16.mxu0 0
        %1113 = vmatpush1.bf16.msra.mxu0 0
        %1114 = vmatprep.subr.bf16.mxu0 0
        %1115 = vmatpush1.bf16.msra.mxu0 0
        %1116 = vmatprep.subr.bf16.mxu0 0
        %1117 = vmatpush1.bf16.msra.mxu0 0
        %1118 = vmatprep.subr.bf16.mxu0 0
        %1119 = vmatpush1.bf16.msra.mxu0 0
        %1120 = vmatprep.subr.bf16.mxu0 0
        %1121 = vmatpush1.bf16.msra.mxu0 0
        %1122 = vmatprep.subr.bf16.mxu0 0
        %1123 = vmatpush1.bf16.msra.mxu0 0
        %1124 = vmatprep.subr.bf16.mxu0 0
        %1125 = vmatpush1.bf16.msra.mxu0 0
        %1126 = vmatprep.subr.bf16.mxu0 0
        %1127 = vmatpush1.bf16.msra.mxu0 0
        %1128 = vmatprep.subr.bf16.mxu0 0
        %1129 = vmatpush1.bf16.msra.mxu0 0
        %1130 = vmatprep.mubr.bf16.mxu0 0
        %1131 = vmatmul.mubr.bf16.gmra.mrb[0].mxu0 %v1096
        %v1132 = vpop.f32.mrb[0].mxu0
        %v1133 = vadd.f32 %v1081, %v1132
        %v1134 = vpop.f32.mrb[0].mxu0
        %v1135 = vpop.f32.mrb[0].mxu0
        %v1136 = vpop.f32.mrb[0].mxu0
        %1137 = vdwg.mxu0
        %v1138 = vpack.c.bf16 %v1133, %v1133
        %v1139 = vld [vmem:[#allocation14] sm:$0xf]
        %v1140 = vld [vmem:[#allocation14 + $0x4] sm:$0xf]
        %v1141 = vld [vmem:[#allocation14 + $0x8] sm:$0xf]
        %v1142 = vld [vmem:[#allocation14 + $0xc] sm:$0xf]
        %v1143 = vld [vmem:[#allocation16] sm:$0x1]
        %v1145 = vlaneseq
        %v1146 = vshrl.u32 %v1145, 7
        %v1147 = vsub.s32 0, %v1146
        %v1148 = vrot.slane %v1143, %v1147
        %v1154 = vunpack.c.l.b16 %v1139
        %v1155 = vunpack.c.l.b16 %v1140
        %v1156 = vunpack.c.l.b16 %v1141
        %v1157 = vunpack.c.l.b16 %v1142
        %v1158 = vpack.c.b16 %v1155, %v1154
        %v1159 = vpack.c.b16 %v1157, %v1156
        %v1163 = vsel %vm1027, %v1003, 0
        %1165 = vmatprep.subr.bf16.mxu0 0
        %1166 = vmatpush1.bf16.msra.mxu0 %v1158
        %1167 = vmatprep.subr.bf16.mxu0 0
        %1168 = vmatpush1.bf16.msra.mxu0 %v1159
        %1169 = vmatprep.subr.bf16.mxu0 0
        %1170 = vmatpush1.bf16.msra.mxu0 0
        %1171 = vmatprep.subr.bf16.mxu0 0
        %1172 = vmatpush1.bf16.msra.mxu0 0
        %1173 = vmatprep.subr.bf16.mxu0 0
        %1174 = vmatpush1.bf16.msra.mxu0 0
        %1175 = vmatprep.subr.bf16.mxu0 0
        %1176 = vmatpush1.bf16.msra.mxu0 0
        %1177 = vmatprep.subr.bf16.mxu0 0
        %1178 = vmatpush1.bf16.msra.mxu0 0
        %1179 = vmatprep.subr.bf16.mxu0 0
        %1180 = vmatpush1.bf16.msra.mxu0 0
        %1181 = vmatprep.subr.bf16.mxu0 0
        %1182 = vmatpush1.bf16.msra.mxu0 0
        %1183 = vmatprep.subr.bf16.mxu0 0
        %1184 = vmatpush1.bf16.msra.mxu0 0
        %1185 = vmatprep.subr.bf16.mxu0 0
        %1186 = vmatpush1.bf16.msra.mxu0 0
        %1187 = vmatprep.subr.bf16.mxu0 0
        %1188 = vmatpush1.bf16.msra.mxu0 0
        %1189 = vmatprep.subr.bf16.mxu0 0
        %1190 = vmatpush1.bf16.msra.mxu0 0
        %1191 = vmatprep.subr.bf16.mxu0 0
        %1192 = vmatpush1.bf16.msra.mxu0 0
        %1193 = vmatprep.subr.bf16.mxu0 0
        %1194 = vmatpush1.bf16.msra.mxu0 0
        %1195 = vmatprep.subr.bf16.mxu0 0
        %1196 = vmatpush1.bf16.msra.mxu0 0
        %1197 = vmatprep.mubr.bf16.mxu0 0
        %1198 = vmatmul.mubr.bf16.gmra.mrb[0].mxu0 %v1163
        %v1199 = vpop.f32.mrb[0].mxu0
        %v1200 = vadd.f32 %v1148, %v1199
        %v1201 = vpop.f32.mrb[0].mxu0
        %v1202 = vpop.f32.mrb[0].mxu0
        %v1203 = vpop.f32.mrb[0].mxu0
        %1204 = vdwg.mxu0
        %v1205 = vpack.c.bf16 %v1200, %v1200
        %vm1206 = vcmask 64512
        %v1208 = vsel %vm1206, %v1071, 0
        %v1211 = vsel %vm1206, %v1138, 0
        %1213 = vmatprep.subr.bf16.mxu0 0
        %1214 = vmatpush1.bf16.xpose.msra.mxu0 %v1211
        %1215 = vmatprep.subr.bf16.mxu0 0
        %1216 = vmatpush1.bf16.xpose.msra.mxu0 0
        %1217 = vmatprep.subr.bf16.mxu0 0
        %1218 = vmatpush1.bf16.xpose.msra.mxu0 0
        %1219 = vmatprep.subr.bf16.mxu0 0
        %1220 = vmatpush1.bf16.xpose.msra.mxu0 0
        %1221 = vmatprep.subr.bf16.mxu0 0
        %1222 = vmatpush1.bf16.xpose.msra.mxu0 0
        %1223 = vmatprep.subr.bf16.mxu0 0
        %1224 = vmatpush1.bf16.xpose.msra.mxu0 0
        %1225 = vmatprep.subr.bf16.mxu0 0
        %1226 = vmatpush1.bf16.xpose.msra.mxu0 0
        %1227 = vmatprep.subr.bf16.mxu0 0
        %1228 = vmatpush1.bf16.xpose.msra.mxu0 0
        %1229 = vmatprep.subr.bf16.mxu0 0
        %1230 = vmatpush1.bf16.xpose.msra.mxu0 0
        %1231 = vmatprep.subr.bf16.mxu0 0
        %1232 = vmatpush1.bf16.xpose.msra.mxu0 0
        %1233 = vmatprep.subr.bf16.mxu0 0
        %1234 = vmatpush1.bf16.xpose.msra.mxu0 0
        %1235 = vmatprep.subr.bf16.mxu0 0
        %1236 = vmatpush1.bf16.xpose.msra.mxu0 0
        %1237 = vmatprep.subr.bf16.mxu0 0
        %1238 = vmatpush1.bf16.xpose.msra.mxu0 0
        %1239 = vmatprep.subr.bf16.mxu0 0
        %1240 = vmatpush1.bf16.xpose.msra.mxu0 0
        %1241 = vmatprep.subr.bf16.mxu0 0
        %1242 = vmatpush1.bf16.xpose.msra.mxu0 0
        %1243 = vmatprep.subr.bf16.mxu0 0
        %1244 = vmatpush1.bf16.xpose.msra.mxu0 0
        %1245 = vmatprep.mubr.bf16.mxu0 0
        %1246 = vmatmul.mubr.bf16.gmra.mrb[0].mxu0 %v1208
        %v1247 = vpop.f32.mrb[0].mxu0
        %v1248 = vadd.f32 0.0, %v1247
        %v1249 = vpop.f32.mrb[0].mxu0
        %v1250 = vpop.f32.mrb[0].mxu0
        %v1251 = vpop.f32.mrb[0].mxu0
        %1252 = vdwg.mxu0
        %v1253 = vsel %vm1206, %v1248, -inf
        %1254 = vmax.xlane.f32.xlu0 %v1253
        %v1255 = vpop.xlane.xlu0 %1254
        %v1256 = vsub.f32 %v1248, %v1255
        %v1257 = vmul.f32 %v1256, 1.442695
        %v1258 = vpow.pop %v1257
        %v1259 = vsel %vm1206, %v1258, 0.0
        %1260 = vadd.xlane.f32.xlu0 %v1259
        %v1261 = vpop.xlane.xlu0 %1260
        %v1262 = vrcp.pop %v1261
        %v1263 = vmul.f32 %v1258, %v1262
        %v1264 = vpack.c.bf16 %v1263, %v1263
        %v1266 = vsel %vm1206, %v1264, 0
        %vm1268 = vcmask 1043456
        %v1270 = vsel %vm1268, %v1205, 0
        %1272 = vmatprep.subr.bf16.mxu0 0
        %1273 = vmatpush1.bf16.msra.mxu0 %v1270
        %1274 = vmatprep.subr.bf16.mxu0 0
        %1275 = vmatpush1.bf16.msra.mxu0 0
        %1276 = vmatprep.subr.bf16.mxu0 0
        %1277 = vmatpush1.bf16.msra.mxu0 0
        %1278 = vmatprep.subr.bf16.mxu0 0
        %1279 = vmatpush1.bf16.msra.mxu0 0
        %1280 = vmatprep.subr.bf16.mxu0 0
        %1281 = vmatpush1.bf16.msra.mxu0 0
        %1282 = vmatprep.subr.bf16.mxu0 0
        %1283 = vmatpush1.bf16.msra.mxu0 0
        %1284 = vmatprep.subr.bf16.mxu0 0
        %1285 = vmatpush1.bf16.msra.mxu0 0
        %1286 = vmatprep.subr.bf16.mxu0 0
        %1287 = vmatpush1.bf16.msra.mxu0 0
        %1288 = vmatprep.subr.bf16.mxu0 0
        %1289 = vmatpush1.bf16.msra.mxu0 0
        %1290 = vmatprep.subr.bf16.mxu0 0
        %1291 = vmatpush1.bf16.msra.mxu0 0
        %1292 = vmatprep.subr.bf16.mxu0 0
        %1293 = vmatpush1.bf16.msra.mxu0 0
        %1294 = vmatprep.subr.bf16.mxu0 0
        %1295 = vmatpush1.bf16.msra.mxu0 0
        %1296 = vmatprep.subr.bf16.mxu0 0
        %1297 = vmatpush1.bf16.msra.mxu0 0
        %1298 = vmatprep.subr.bf16.mxu0 0
        %1299 = vmatpush1.bf16.msra.mxu0 0
        %1300 = vmatprep.subr.bf16.mxu0 0
        %1301 = vmatpush1.bf16.msra.mxu0 0
        %1302 = vmatprep.subr.bf16.mxu0 0
        %1303 = vmatpush1.bf16.msra.mxu0 0
        %1304 = vmatprep.mubr.bf16.mxu0 0
        %1305 = vmatmul.mubr.bf16.gmra.mrb[0].mxu0 %v1266
        %v1306 = vpop.f32.mrb[0].mxu0
        %v1307 = vadd.f32 0.0, %v1306
        %v1308 = vpop.f32.mrb[0].mxu0
        %v1309 = vpop.f32.mrb[0].mxu0
        %v1310 = vpop.f32.mrb[0].mxu0
        %1311 = vdwg.mxu0
        %1313 = vrot.lane.b32.xlu0 %v1071, 120
        %v1314 = vpop.permute.xlu0 %1313
        %1316 = vrot.lane.b32.xlu0 %v1138, 120
        %v1317 = vpop.permute.xlu0 %1316
        %v1319 = vsel %vm1206, %v1314, 0
        %v1322 = vsel %vm1206, %v1317, 0
        %1324 = vmatprep.subr.bf16.mxu0 0
        %1325 = vmatpush1.bf16.xpose.msra.mxu0 %v1322
        %1326 = vmatprep.subr.bf16.mxu0 0
        %1327 = vmatpush1.bf16.xpose.msra.mxu0 0
        %1328 = vmatprep.subr.bf16.mxu0 0
        %1329 = vmatpush1.bf16.xpose.msra.mxu0 0
        %1330 = vmatprep.subr.bf16.mxu0 0
        %1331 = vmatpush1.bf16.xpose.msra.mxu0 0
        %1332 = vmatprep.subr.bf16.mxu0 0
        %1333 = vmatpush1.bf16.xpose.msra.mxu0 0
        %1334 = vmatprep.subr.bf16.mxu0 0
        %1335 = vmatpush1.bf16.xpose.msra.mxu0 0
        %1336 = vmatprep.subr.bf16.mxu0 0
        %1337 = vmatpush1.bf16.xpose.msra.mxu0 0
        %1338 = vmatprep.subr.bf16.mxu0 0
        %1339 = vmatpush1.bf16.xpose.msra.mxu0 0
        %1340 = vmatprep.subr.bf16.mxu0 0
        %1341 = vmatpush1.bf16.xpose.msra.mxu0 0
        %1342 = vmatprep.subr.bf16.mxu0 0
        %1343 = vmatpush1.bf16.xpose.msra.mxu0 0
        %1344 = vmatprep.subr.bf16.mxu0 0
        %1345 = vmatpush1.bf16.xpose.msra.mxu0 0
        %1346 = vmatprep.subr.bf16.mxu0 0
        %1347 = vmatpush1.bf16.xpose.msra.mxu0 0
        %1348 = vmatprep.subr.bf16.mxu0 0
        %1349 = vmatpush1.bf16.xpose.msra.mxu0 0
        %1350 = vmatprep.subr.bf16.mxu0 0
        %1351 = vmatpush1.bf16.xpose.msra.mxu0 0
        %1352 = vmatprep.subr.bf16.mxu0 0
        %1353 = vmatpush1.bf16.xpose.msra.mxu0 0
        %1354 = vmatprep.subr.bf16.mxu0 0
        %1355 = vmatpush1.bf16.xpose.msra.mxu0 0
        %1356 = vmatprep.mubr.bf16.mxu0 0
        %1357 = vmatmul.mubr.bf16.gmra.mrb[0].mxu0 %v1319
        %v1358 = vpop.f32.mrb[0].mxu0
        %v1359 = vadd.f32 0.0, %v1358
        %v1360 = vpop.f32.mrb[0].mxu0
        %v1361 = vpop.f32.mrb[0].mxu0
        %v1362 = vpop.f32.mrb[0].mxu0
        %1363 = vdwg.mxu0
        %v1364 = vsel %vm1206, %v1359, -inf
        %1365 = vmax.xlane.f32.xlu0 %v1364
        %v1366 = vpop.xlane.xlu0 %1365
        %v1367 = vsub.f32 %v1359, %v1366
        %v1368 = vmul.f32 %v1367, 1.442695
        %v1369 = vpow.pop %v1368
        %v1370 = vsel %vm1206, %v1369, 0.0
        %1371 = vadd.xlane.f32.xlu0 %v1370
        %v1372 = vpop.xlane.xlu0 %1371
        %v1373 = vrcp.pop %v1372
        %v1374 = vmul.f32 %v1369, %v1373
        %v1375 = vpack.c.bf16 %v1374, %v1374
        %1377 = vrot.lane.b32.xlu0 %v1205, 120
        %v1378 = vpop.permute.xlu0 %1377
        %v1380 = vsel %vm1206, %v1375, 0
        %v1383 = vsel %vm1268, %v1378, 0
        %1385 = vmatprep.subr.bf16.mxu0 0
        %1386 = vmatpush1.bf16.msra.mxu0 %v1383
        %1387 = vmatprep.subr.bf16.mxu0 0
        %1388 = vmatpush1.bf16.msra.mxu0 0
        %1389 = vmatprep.subr.bf16.mxu0 0
        %1390 = vmatpush1.bf16.msra.mxu0 0
        %1391 = vmatprep.subr.bf16.mxu0 0
        %1392 = vmatpush1.bf16.msra.mxu0 0
        %1393 = vmatprep.subr.bf16.mxu0 0
        %1394 = vmatpush1.bf16.msra.mxu0 0
        %1395 = vmatprep.subr.bf16.mxu0 0
        %1396 = vmatpush1.bf16.msra.mxu0 0
        %1397 = vmatprep.subr.bf16.mxu0 0
        %1398 = vmatpush1.bf16.msra.mxu0 0
        %1399 = vmatprep.subr.bf16.mxu0 0
        %1400 = vmatpush1.bf16.msra.mxu0 0
        %1401 = vmatprep.subr.bf16.mxu0 0
        %1402 = vmatpush1.bf16.msra.mxu0 0
        %1403 = vmatprep.subr.bf16.mxu0 0
        %1404 = vmatpush1.bf16.msra.mxu0 0
        %1405 = vmatprep.subr.bf16.mxu0 0
        %1406 = vmatpush1.bf16.msra.mxu0 0
        %1407 = vmatprep.subr.bf16.mxu0 0
        %1408 = vmatpush1.bf16.msra.mxu0 0
        %1409 = vmatprep.subr.bf16.mxu0 0
        %1410 = vmatpush1.bf16.msra.mxu0 0
        %1411 = vmatprep.subr.bf16.mxu0 0
        %1412 = vmatpush1.bf16.msra.mxu0 0
        %1413 = vmatprep.subr.bf16.mxu0 0
        %1414 = vmatpush1.bf16.msra.mxu0 0
        %1415 = vmatprep.subr.bf16.mxu0 0
        %1416 = vmatpush1.bf16.msra.mxu0 0
        %1417 = vmatprep.mubr.bf16.mxu0 0
        %1418 = vmatmul.mubr.bf16.gmra.mrb[0].mxu0 %v1380
        %v1419 = vpop.f32.mrb[0].mxu0
        %v1420 = vadd.f32 0.0, %v1419
        %v1421 = vpop.f32.mrb[0].mxu0
        %v1422 = vpop.f32.mrb[0].mxu0
        %v1423 = vpop.f32.mrb[0].mxu0
        %1424 = vdwg.mxu0
        %1425 = vrot.lane.b32.xlu0 %v1071, 112
        %v1426 = vpop.permute.xlu0 %1425
        %1427 = vrot.lane.b32.xlu0 %v1138, 112
        %v1428 = vpop.permute.xlu0 %1427
        %v1430 = vsel %vm1206, %v1426, 0
        %v1433 = vsel %vm1206, %v1428, 0
        %1435 = vmatprep.subr.bf16.mxu0 0
        %1436 = vmatpush1.bf16.xpose.msra.mxu0 %v1433
        %1437 = vmatprep.subr.bf16.mxu0 0
        %1438 = vmatpush1.bf16.xpose.msra.mxu0 0
        %1439 = vmatprep.subr.bf16.mxu0 0
        %1440 = vmatpush1.bf16.xpose.msra.mxu0 0
        %1441 = vmatprep.subr.bf16.mxu0 0
        %1442 = vmatpush1.bf16.xpose.msra.mxu0 0
        %1443 = vmatprep.subr.bf16.mxu0 0
        %1444 = vmatpush1.bf16.xpose.msra.mxu0 0
        %1445 = vmatprep.subr.bf16.mxu0 0
        %1446 = vmatpush1.bf16.xpose.msra.mxu0 0
        %1447 = vmatprep.subr.bf16.mxu0 0
        %1448 = vmatpush1.bf16.xpose.msra.mxu0 0
        %1449 = vmatprep.subr.bf16.mxu0 0
        %1450 = vmatpush1.bf16.xpose.msra.mxu0 0
        %1451 = vmatprep.subr.bf16.mxu0 0
        %1452 = vmatpush1.bf16.xpose.msra.mxu0 0
        %1453 = vmatprep.subr.bf16.mxu0 0
        %1454 = vmatpush1.bf16.xpose.msra.mxu0 0
        %1455 = vmatprep.subr.bf16.mxu0 0
        %1456 = vmatpush1.bf16.xpose.msra.mxu0 0
        %1457 = vmatprep.subr.bf16.mxu0 0
        %1458 = vmatpush1.bf16.xpose.msra.mxu0 0
        %1459 = vmatprep.subr.bf16.mxu0 0
        %1460 = vmatpush1.bf16.xpose.msra.mxu0 0
        %1461 = vmatprep.subr.bf16.mxu0 0
        %1462 = vmatpush1.bf16.xpose.msra.mxu0 0
        %1463 = vmatprep.subr.bf16.mxu0 0
        %1464 = vmatpush1.bf16.xpose.msra.mxu0 0
        %1465 = vmatprep.subr.bf16.mxu0 0
        %1466 = vmatpush1.bf16.xpose.msra.mxu0 0
        %1467 = vmatprep.mubr.bf16.mxu0 0
        %1468 = vmatmul.mubr.bf16.gmra.mrb[0].mxu0 %v1430
        %v1469 = vpop.f32.mrb[0].mxu0
        %v1470 = vadd.f32 0.0, %v1469
        %v1471 = vpop.f32.mrb[0].mxu0
        %v1472 = vpop.f32.mrb[0].mxu0
        %v1473 = vpop.f32.mrb[0].mxu0
        %1474 = vdwg.mxu0
        %v1475 = vsel %vm1206, %v1470, -inf
        %1476 = vmax.xlane.f32.xlu0 %v1475
        %v1477 = vpop.xlane.xlu0 %1476
        %v1478 = vsub.f32 %v1470, %v1477
        %v1479 = vmul.f32 %v1478, 1.442695
        %v1480 = vpow.pop %v1479
        %v1481 = vsel %vm1206, %v1480, 0.0
        %1482 = vadd.xlane.f32.xlu0 %v1481
        %v1483 = vpop.xlane.xlu0 %1482
        %v1484 = vrcp.pop %v1483
        %v1485 = vmul.f32 %v1480, %v1484
        %v1486 = vpack.c.bf16 %v1485, %v1485
        %1487 = vrot.lane.b32.xlu0 %v1205, 112
        %v1488 = vpop.permute.xlu0 %1487
        %v1490 = vsel %vm1206, %v1486, 0
        %v1493 = vsel %vm1268, %v1488, 0
        %1495 = vmatprep.subr.bf16.mxu0 0
        %1496 = vmatpush1.bf16.msra.mxu0 %v1493
        %1497 = vmatprep.subr.bf16.mxu0 0
        %1498 = vmatpush1.bf16.msra.mxu0 0
        %1499 = vmatprep.subr.bf16.mxu0 0
        %1500 = vmatpush1.bf16.msra.mxu0 0
        %1501 = vmatprep.subr.bf16.mxu0 0
        %1502 = vmatpush1.bf16.msra.mxu0 0
        %1503 = vmatprep.subr.bf16.mxu0 0
        %1504 = vmatpush1.bf16.msra.mxu0 0
        %1505 = vmatprep.subr.bf16.mxu0 0
        %1506 = vmatpush1.bf16.msra.mxu0 0
        %1507 = vmatprep.subr.bf16.mxu0 0
        %1508 = vmatpush1.bf16.msra.mxu0 0
        %1509 = vmatprep.subr.bf16.mxu0 0
        %1510 = vmatpush1.bf16.msra.mxu0 0
        %1511 = vmatprep.subr.bf16.mxu0 0
        %1512 = vmatpush1.bf16.msra.mxu0 0
        %1513 = vmatprep.subr.bf16.mxu0 0
        %1514 = vmatpush1.bf16.msra.mxu0 0
        %1515 = vmatprep.subr.bf16.mxu0 0
        %1516 = vmatpush1.bf16.msra.mxu0 0
        %1517 = vmatprep.subr.bf16.mxu0 0
        %1518 = vmatpush1.bf16.msra.mxu0 0
        %1519 = vmatprep.subr.bf16.mxu0 0
        %1520 = vmatpush1.bf16.msra.mxu0 0
        %1521 = vmatprep.subr.bf16.mxu0 0
        %1522 = vmatpush1.bf16.msra.mxu0 0
        %1523 = vmatprep.subr.bf16.mxu0 0
        %1524 = vmatpush1.bf16.msra.mxu0 0
        %1525 = vmatprep.subr.bf16.mxu0 0
        %1526 = vmatpush1.bf16.msra.mxu0 0
        %1527 = vmatprep.mubr.bf16.mxu0 0
        %1528 = vmatmul.mubr.bf16.gmra.mrb[0].mxu0 %v1490
        %v1529 = vpop.f32.mrb[0].mxu0
        %v1530 = vadd.f32 0.0, %v1529
        %v1531 = vpop.f32.mrb[0].mxu0
        %v1532 = vpop.f32.mrb[0].mxu0
        %v1533 = vpop.f32.mrb[0].mxu0
        %1534 = vdwg.mxu0
        %1535 = vrot.lane.b32.xlu0 %v1071, 104
        %v1536 = vpop.permute.xlu0 %1535
        %1537 = vrot.lane.b32.xlu0 %v1138, 104
        %v1538 = vpop.permute.xlu0 %1537
        %v1540 = vsel %vm1206, %v1536, 0
        %v1543 = vsel %vm1206, %v1538, 0
        %1545 = vmatprep.subr.bf16.mxu0 0
        %1546 = vmatpush1.bf16.xpose.msra.mxu0 %v1543
        %1547 = vmatprep.subr.bf16.mxu0 0
        %1548 = vmatpush1.bf16.xpose.msra.mxu0 0
        %1549 = vmatprep.subr.bf16.mxu0 0
        %1550 = vmatpush1.bf16.xpose.msra.mxu0 0
        %1551 = vmatprep.subr.bf16.mxu0 0
        %1552 = vmatpush1.bf16.xpose.msra.mxu0 0
        %1553 = vmatprep.subr.bf16.mxu0 0
        %1554 = vmatpush1.bf16.xpose.msra.mxu0 0
        %1555 = vmatprep.subr.bf16.mxu0 0
        %1556 = vmatpush1.bf16.xpose.msra.mxu0 0
        %1557 = vmatprep.subr.bf16.mxu0 0
        %1558 = vmatpush1.bf16.xpose.msra.mxu0 0
        %1559 = vmatprep.subr.bf16.mxu0 0
        %1560 = vmatpush1.bf16.xpose.msra.mxu0 0
        %1561 = vmatprep.subr.bf16.mxu0 0
        %1562 = vmatpush1.bf16.xpose.msra.mxu0 0
        %1563 = vmatprep.subr.bf16.mxu0 0
        %1564 = vmatpush1.bf16.xpose.msra.mxu0 0
        %1565 = vmatprep.subr.bf16.mxu0 0
        %1566 = vmatpush1.bf16.xpose.msra.mxu0 0
        %1567 = vmatprep.subr.bf16.mxu0 0
        %1568 = vmatpush1.bf16.xpose.msra.mxu0 0
        %1569 = vmatprep.subr.bf16.mxu0 0
        %1570 = vmatpush1.bf16.xpose.msra.mxu0 0
        %1571 = vmatprep.subr.bf16.mxu0 0
        %1572 = vmatpush1.bf16.xpose.msra.mxu0 0
        %1573 = vmatprep.subr.bf16.mxu0 0
        %1574 = vmatpush1.bf16.xpose.msra.mxu0 0
        %1575 = vmatprep.subr.bf16.mxu0 0
        %1576 = vmatpush1.bf16.xpose.msra.mxu0 0
        %1577 = vmatprep.mubr.bf16.mxu0 0
        %1578 = vmatmul.mubr.bf16.gmra.mrb[0].mxu0 %v1540
        %v1579 = vpop.f32.mrb[0].mxu0
        %v1580 = vadd.f32 0.0, %v1579
        %v1581 = vpop.f32.mrb[0].mxu0
        %v1582 = vpop.f32.mrb[0].mxu0
        %v1583 = vpop.f32.mrb[0].mxu0
        %1584 = vdwg.mxu0
        %v1585 = vsel %vm1206, %v1580, -inf
        %1586 = vmax.xlane.f32.xlu0 %v1585
        %v1587 = vpop.xlane.xlu0 %1586
        %v1588 = vsub.f32 %v1580, %v1587
        %v1589 = vmul.f32 %v1588, 1.442695
        %v1590 = vpow.pop %v1589
        %v1591 = vsel %vm1206, %v1590, 0.0
        %1592 = vadd.xlane.f32.xlu0 %v1591
        %v1593 = vpop.xlane.xlu0 %1592
        %v1594 = vrcp.pop %v1593
        %v1595 = vmul.f32 %v1590, %v1594
        %v1596 = vpack.c.bf16 %v1595, %v1595
        %1597 = vrot.lane.b32.xlu0 %v1205, 104
        %v1598 = vpop.permute.xlu0 %1597
        %v1600 = vsel %vm1206, %v1596, 0
        %v1603 = vsel %vm1268, %v1598, 0
        %1605 = vmatprep.subr.bf16.mxu0 0
        %1606 = vmatpush1.bf16.msra.mxu0 %v1603
        %1607 = vmatprep.subr.bf16.mxu0 0
        %1608 = vmatpush1.bf16.msra.mxu0 0
        %1609 = vmatprep.subr.bf16.mxu0 0
        %1610 = vmatpush1.bf16.msra.mxu0 0
        %1611 = vmatprep.subr.bf16.mxu0 0
        %1612 = vmatpush1.bf16.msra.mxu0 0
        %1613 = vmatprep.subr.bf16.mxu0 0
        %1614 = vmatpush1.bf16.msra.mxu0 0
        %1615 = vmatprep.subr.bf16.mxu0 0
        %1616 = vmatpush1.bf16.msra.mxu0 0
        %1617 = vmatprep.subr.bf16.mxu0 0
        %1618 = vmatpush1.bf16.msra.mxu0 0
        %1619 = vmatprep.subr.bf16.mxu0 0
        %1620 = vmatpush1.bf16.msra.mxu0 0
        %1621 = vmatprep.subr.bf16.mxu0 0
        %1622 = vmatpush1.bf16.msra.mxu0 0
        %1623 = vmatprep.subr.bf16.mxu0 0
        %1624 = vmatpush1.bf16.msra.mxu0 0
        %1625 = vmatprep.subr.bf16.mxu0 0
        %1626 = vmatpush1.bf16.msra.mxu0 0
        %1627 = vmatprep.subr.bf16.mxu0 0
        %1628 = vmatpush1.bf16.msra.mxu0 0
        %1629 = vmatprep.subr.bf16.mxu0 0
        %1630 = vmatpush1.bf16.msra.mxu0 0
        %1631 = vmatprep.subr.bf16.mxu0 0
        %1632 = vmatpush1.bf16.msra.mxu0 0
        %1633 = vmatprep.subr.bf16.mxu0 0
        %1634 = vmatpush1.bf16.msra.mxu0 0
        %1635 = vmatprep.subr.bf16.mxu0 0
        %1636 = vmatpush1.bf16.msra.mxu0 0
        %1637 = vmatprep.mubr.bf16.mxu0 0
        %1638 = vmatmul.mubr.bf16.gmra.mrb[0].mxu0 %v1600
        %v1639 = vpop.f32.mrb[0].mxu0
        %v1640 = vadd.f32 0.0, %v1639
        %v1641 = vpop.f32.mrb[0].mxu0
        %v1642 = vpop.f32.mrb[0].mxu0
        %v1643 = vpop.f32.mrb[0].mxu0
        %1644 = vdwg.mxu0
        %1646 = vrot.lane.b32.xlu0 %v1420, 8
        %v1647 = vpop.permute.xlu0 %1646
        %1650 = vrot.lane.b32.xlu0 %v1530, 16
        %v1651 = vpop.permute.xlu0 %1650
        %1654 = vrot.lane.b32.xlu0 %v1640, 24
        %v1655 = vpop.permute.xlu0 %1654
        %v1657 = vsel %vm1206, %v1307, %v1647
        %vm1658 = vcmask 130048
        %v1659 = vsel %vm1658, %v1657, %v1651
        %vm1660 = vcmask 195584
        %v1661 = vsel %vm1660, %v1659, %v1655
        %v1662 = vpack.c.bf16 %v1661, %v1661
        %v1663 = vld [vmem:[#allocation17] sm:$0xf]
        %v1664 = vld [vmem:[#allocation17 + $0x4] sm:$0xf]
        %v1665 = vld [vmem:[#allocation17 + $0x8] sm:$0xf]
        %v1666 = vld [vmem:[#allocation17 + $0xc] sm:$0xf]
        %v1667 = vld [vmem:[#allocation19] sm:$0x1]
        %v1669 = vlaneseq
        %v1670 = vshrl.u32 %v1669, 7
        %v1671 = vsub.s32 0, %v1670
        %v1672 = vrot.slane %v1667, %v1671
        %v1678 = vunpack.c.l.b16 %v1663
        %v1679 = vunpack.c.l.b16 %v1664
        %v1680 = vunpack.c.l.b16 %v1665
        %v1681 = vunpack.c.l.b16 %v1666
        %v1682 = vpack.c.b16 %v1679, %v1678
        %v1683 = vpack.c.b16 %v1681, %v1680
        %v1687 = vsel %vm1027, %v1662, 0
        %1689 = vmatprep.subr.bf16.mxu0 0
        %1690 = vmatpush1.bf16.msra.mxu0 %v1682
        %1691 = vmatprep.subr.bf16.mxu0 0
        %1692 = vmatpush1.bf16.msra.mxu0 %v1683
        %1693 = vmatprep.subr.bf16.mxu0 0
        %1694 = vmatpush1.bf16.msra.mxu0 0
        %1695 = vmatprep.subr.bf16.mxu0 0
        %1696 = vmatpush1.bf16.msra.mxu0 0
        %1697 = vmatprep.subr.bf16.mxu0 0
        %1698 = vmatpush1.bf16.msra.mxu0 0
        %1699 = vmatprep.subr.bf16.mxu0 0
        %1700 = vmatpush1.bf16.msra.mxu0 0
        %1701 = vmatprep.subr.bf16.mxu0 0
        %1702 = vmatpush1.bf16.msra.mxu0 0
        %1703 = vmatprep.subr.bf16.mxu0 0
        %1704 = vmatpush1.bf16.msra.mxu0 0
        %1705 = vmatprep.subr.bf16.mxu0 0
        %1706 = vmatpush1.bf16.msra.mxu0 0
        %1707 = vmatprep.subr.bf16.mxu0 0
        %1708 = vmatpush1.bf16.msra.mxu0 0
        %1709 = vmatprep.subr.bf16.mxu0 0
        %1710 = vmatpush1.bf16.msra.mxu0 0
        %1711 = vmatprep.subr.bf16.mxu0 0
        %1712 = vmatpush1.bf16.msra.mxu0 0
        %1713 = vmatprep.subr.bf16.mxu0 0
        %1714 = vmatpush1.bf16.msra.mxu0 0
        %1715 = vmatprep.subr.bf16.mxu0 0
        %1716 = vmatpush1.bf16.msra.mxu0 0
        %1717 = vmatprep.subr.bf16.mxu0 0
        %1718 = vmatpush1.bf16.msra.mxu0 0
        %1719 = vmatprep.subr.bf16.mxu0 0
        %1720 = vmatpush1.bf16.msra.mxu0 0
        %1721 = vmatprep.mubr.bf16.mxu0 0
        %1722 = vmatmul.mubr.bf16.gmra.mrb[0].mxu0 %v1687
        %v1723 = vpop.f32.mrb[0].mxu0
        %v1724 = vadd.f32 %v1672, %v1723
        %v1725 = vpop.f32.mrb[0].mxu0
        %v1726 = vpop.f32.mrb[0].mxu0
        %v1727 = vpop.f32.mrb[0].mxu0
        %1728 = vdwg.mxu0
        %v1729 = vadd.f32 %v998, %v1724
        %v1730 = vsel %vm1027, %v1729, 0.0
        %1731 = vadd.xlane.f32.xlu0 %v1730
        %v1732 = vpop.xlane.xlu0 %1731
        %v1733 = vrcp.pop 32.0
        %v1734 = vmul.f32 %v1732, %v1733
        %v1735 = vsub.f32 %v1729, %v1734
        %v1736 = vmul.f32 %v1735, %v1735
        %v1737 = vsel %vm1027, %v1736, 0.0
        %1738 = vadd.xlane.f32.xlu0 %v1737
        %v1739 = vpop.xlane.xlu0 %1738
        %v1740 = vmul.f32 %v1739, %v1733
        %v1741 = vadd.f32 %v1740, 1e-05
        %v1742 = vrsqrt.pop %v1741
        %v1743 = vmul.f32 %v1735, %v1742
        %v1744 = vld [vmem:[#allocation20] sm:$0x1]
        %v1746 = vlaneseq
        %v1747 = vshrl.u32 %v1746, 7
        %v1748 = vsub.s32 0, %v1747
        %v1749 = vrot.slane %v1744, %v1748
        %v1751 = vmul.f32 %v1743, %v1749
        %v1752 = vld [vmem:[#allocation22] sm:$0x1]
        %v1754 = vlaneseq
        %v1755 = vshrl.u32 %v1754, 7
        %v1756 = vsub.s32 0, %v1755
        %v1757 = vrot.slane %v1752, %v1756
        %v1759 = vadd.f32 %v1751, %v1757
        %v1760 = vadd.f32 %v998, %v1759
        %v1761 = vsel %vm1027, %v1760, 0.0
        %1762 = vadd.xlane.f32.xlu0 %v1761
        %v1763 = vpop.xlane.xlu0 %1762
        %v1764 = vmul.f32 %v1763, %v1733
        %v1765 = vsub.f32 %v1760, %v1764
        %v1766 = vmul.f32 %v1765, %v1765
        %v1767 = vsel %vm1027, %v1766, 0.0
        %1768 = vadd.xlane.f32.xlu0 %v1767
        %v1769 = vpop.xlane.xlu0 %1768
        %v1770 = vmul.f32 %v1769, %v1733
        %v1771 = vadd.f32 %v1770, 1e-05
        %v1772 = vrsqrt.pop %v1771
        %v1773 = vmul.f32 %v1765, %v1772
        %v1774 = vld [vmem:[#allocation23] sm:$0x1]
        %v1776 = vlaneseq
        %v1777 = vshrl.u32 %v1776, 7
        %v1778 = vsub.s32 0, %v1777
        %v1779 = vrot.slane %v1774, %v1778
        %v1781 = vmul.f32 %v1773, %v1779
        %v1782 = vld [vmem:[#allocation25] sm:$0x1]
        %v1784 = vlaneseq
        %v1785 = vshrl.u32 %v1784, 7
        %v1786 = vsub.s32 0, %v1785
        %v1787 = vrot.slane %v1782, %v1786
        %v1789 = vadd.f32 %v1781, %v1787
        %v1790 = vpack.c.bf16 %v1789, %v1789
        %v1791 = vld [vmem:[#allocation26] sm:$0xf]
        %v1792 = vld [vmem:[#allocation26 + $0x4] sm:$0xf]
        %v1793 = vld [vmem:[#allocation26 + $0x8] sm:$0xf]
        %v1794 = vld [vmem:[#allocation26 + $0xc] sm:$0xf]
        %v1795 = vld [vmem:[#allocation28] sm:$0x1]
        %v1797 = vlaneseq
        %v1798 = vshrl.u32 %v1797, 7
        %v1799 = vsub.s32 0, %v1798
        %v1800 = vrot.slane %v1795, %v1799
        %v1806 = vunpack.c.l.b16 %v1791
        %v1807 = vunpack.c.l.b16 %v1792
        %v1808 = vunpack.c.l.b16 %v1793
        %v1809 = vunpack.c.l.b16 %v1794
        %v1810 = vpack.c.b16 %v1807, %v1806
        %v1811 = vpack.c.b16 %v1809, %v1808
        %v1815 = vsel %vm1027, %v1790, 0
        %1817 = vmatprep.subr.bf16.mxu0 0
        %1818 = vmatpush1.bf16.msra.mxu0 %v1810
        %1819 = vmatprep.subr.bf16.mxu0 0
        %1820 = vmatpush1.bf16.msra.mxu0 %v1811
        %1821 = vmatprep.subr.bf16.mxu0 0
        %1822 = vmatpush1.bf16.msra.mxu0 0
        %1823 = vmatprep.subr.bf16.mxu0 0
        %1824 = vmatpush1.bf16.msra.mxu0 0
        %1825 = vmatprep.subr.bf16.mxu0 0
        %1826 = vmatpush1.bf16.msra.mxu0 0
        %1827 = vmatprep.subr.bf16.mxu0 0
        %1828 = vmatpush1.bf16.msra.mxu0 0
        %1829 = vmatprep.subr.bf16.mxu0 0
        %1830 = vmatpush1.bf16.msra.mxu0 0
        %1831 = vmatprep.subr.bf16.mxu0 0
        %1832 = vmatpush1.bf16.msra.mxu0 0
        %1833 = vmatprep.subr.bf16.mxu0 0
        %1834 = vmatpush1.bf16.msra.mxu0 0
        %1835 = vmatprep.subr.bf16.mxu0 0
        %1836 = vmatpush1.bf16.msra.mxu0 0
        %1837 = vmatprep.subr.bf16.mxu0 0
        %1838 = vmatpush1.bf16.msra.mxu0 0
        %1839 = vmatprep.subr.bf16.mxu0 0
        %1840 = vmatpush1.bf16.msra.mxu0 0
        %1841 = vmatprep.subr.bf16.mxu0 0
        %1842 = vmatpush1.bf16.msra.mxu0 0
        %1843 = vmatprep.subr.bf16.mxu0 0
        %1844 = vmatpush1.bf16.msra.mxu0 0
        %1845 = vmatprep.subr.bf16.mxu0 0
        %1846 = vmatpush1.bf16.msra.mxu0 0
        %1847 = vmatprep.subr.bf16.mxu0 0
        %1848 = vmatpush1.bf16.msra.mxu0 0
        %1849 = vmatprep.mubr.bf16.mxu0 0
        %1850 = vmatmul.mubr.bf16.gmra.mrb[0].mxu0 %v1815
        %v1851 = vpop.f32.mrb[0].mxu0
        %v1852 = vadd.f32 %v1800, %v1851
        %v1853 = vpop.f32.mrb[0].mxu0
        %v1854 = vpop.f32.mrb[0].mxu0
        %v1855 = vpop.f32.mrb[0].mxu0
        %1856 = vdwg.mxu0
        %v1857 = vmax.f32 %v1852, 0.0
        %v1858 = vpack.c.bf16 %v1857, %v1857
        %v1859 = vld [vmem:[#allocation29] sm:$0xf]
        %v1860 = vld [vmem:[#allocation29 + $0x4] sm:$0xf]
        %v1861 = vld [vmem:[#allocation29 + $0x8] sm:$0xf]
        %v1862 = vld [vmem:[#allocation29 + $0xc] sm:$0xf]
        %v1863 = vld [vmem:[#allocation29 + $0x10] sm:$0xf]
        %v1864 = vld [vmem:[#allocation29 + $0x14] sm:$0xf]
        %v1865 = vld [vmem:[#allocation29 + $0x18] sm:$0xf]
        %v1866 = vld [vmem:[#allocation29 + $0x1c] sm:$0xf]
        %v1867 = vld [vmem:[#allocation31] sm:$0x1]
        %v1869 = vlaneseq
        %v1870 = vshrl.u32 %v1869, 7
        %v1871 = vsub.s32 0, %v1870
        %v1872 = vrot.slane %v1867, %v1871
        %v1882 = vunpack.c.l.b16 %v1859
        %v1883 = vunpack.c.l.b16 %v1860
        %v1884 = vunpack.c.l.b16 %v1861
        %v1885 = vunpack.c.l.b16 %v1862
        %v1886 = vunpack.c.l.b16 %v1863
        %v1887 = vunpack.c.l.b16 %v1864
        %v1888 = vunpack.c.l.b16 %v1865
        %v1889 = vunpack.c.l.b16 %v1866
        %v1890 = vpack.c.b16 %v1883, %v1882
        %v1891 = vpack.c.b16 %v1885, %v1884
        %v1892 = vpack.c.b16 %v1887, %v1886
        %v1893 = vpack.c.b16 %v1889, %v1888
        %vm1898 = vcmask 523264
        %v1900 = vsel %vm1898, %v1858, 0
        %1902 = vmatprep.subr.bf16.mxu0 0
        %1903 = vmatpush1.bf16.msra.mxu0 %v1890
        %1904 = vmatprep.subr.bf16.mxu0 0
        %1905 = vmatpush1.bf16.msra.mxu0 %v1891
        %1906 = vmatprep.subr.bf16.mxu0 0
        %1907 = vmatpush1.bf16.msra.mxu0 %v1892
        %1908 = vmatprep.subr.bf16.mxu0 0
        %1909 = vmatpush1.bf16.msra.mxu0 %v1893
        %1910 = vmatprep.subr.bf16.mxu0 0
        %1911 = vmatpush1.bf16.msra.mxu0 0
        %1912 = vmatprep.subr.bf16.mxu0 0
        %1913 = vmatpush1.bf16.msra.mxu0 0
        %1914 = vmatprep.subr.bf16.mxu0 0
        %1915 = vmatpush1.bf16.msra.mxu0 0
        %1916 = vmatprep.subr.bf16.mxu0 0
        %1917 = vmatpush1.bf16.msra.mxu0 0
        %1918 = vmatprep.subr.bf16.mxu0 0
        %1919 = vmatpush1.bf16.msra.mxu0 0
        %1920 = vmatprep.subr.bf16.mxu0 0
        %1921 = vmatpush1.bf16.msra.mxu0 0
        %1922 = vmatprep.subr.bf16.mxu0 0
        %1923 = vmatpush1.bf16.msra.mxu0 0
        %1924 = vmatprep.subr.bf16.mxu0 0
        %1925 = vmatpush1.bf16.msra.mxu0 0
        %1926 = vmatprep.subr.bf16.mxu0 0
        %1927 = vmatpush1.bf16.msra.mxu0 0
        %1928 = vmatprep.subr.bf16.mxu0 0
        %1929 = vmatpush1.bf16.msra.mxu0 0
        %1930 = vmatprep.subr.bf16.mxu0 0
        %1931 = vmatpush1.bf16.msra.mxu0 0
        %1932 = vmatprep.subr.bf16.mxu0 0
        %1933 = vmatpush1.bf16.msra.mxu0 0
        %1934 = vmatprep.mubr.bf16.mxu0 0
        %1935 = vmatmul.mubr.bf16.gmra.mrb[0].mxu0 %v1900
        %v1936 = vpop.f32.mrb[0].mxu0
        %v1937 = vadd.f32 %v1872, %v1936
        %v1938 = vpop.f32.mrb[0].mxu0
        %v1939 = vpop.f32.mrb[0].mxu0
        %v1940 = vpop.f32.mrb[0].mxu0
        %1941 = vdwg.mxu0
        %v1942 = vadd.f32 %v1789, %v1937
        %v1943 = vsel %vm1027, %v1942, 0.0
        %1944 = vadd.xlane.f32.xlu0 %v1943
        %v1945 = vpop.xlane.xlu0 %1944
        %v1946 = vmul.f32 %v1945, %v1733
        %v1947 = vsub.f32 %v1942, %v1946
        %v1948 = vmul.f32 %v1947, %v1947
        %v1949 = vsel %vm1027, %v1948, 0.0
        %1950 = vadd.xlane.f32.xlu0 %v1949
        %v1951 = vpop.xlane.xlu0 %1950
        %v1952 = vmul.f32 %v1951, %v1733
        %v1953 = vadd.f32 %v1952, 1e-05
        %v1954 = vrsqrt.pop %v1953
        %v1955 = vmul.f32 %v1947, %v1954
        %v1956 = vld [vmem:[#allocation32] sm:$0x1]
        %v1958 = vlaneseq
        %v1959 = vshrl.u32 %v1958, 7
        %v1960 = vsub.s32 0, %v1959
        %v1961 = vrot.slane %v1956, %v1960
        %v1963 = vmul.f32 %v1955, %v1961
        %v1964 = vld [vmem:[#allocation34] sm:$0x1]
        %v1966 = vlaneseq
        %v1967 = vshrl.u32 %v1966, 7
        %v1968 = vsub.s32 0, %v1967
        %v1969 = vrot.slane %v1964, %v1968
        %v1971 = vadd.f32 %v1963, %v1969
        %1972 = vst.msk [vmem:[%s996] sm:$0xff] %vm1027, %v1971
        %s1973 = sand.u32 %s530, 1
        %s1974 = scalar_lea.sflag [#allocation4], %s1973
        %s1975 = sand.u32 %s530, 1
        %s1976 = smul.addr %s1975, 8
        %s1977 = scalar_lea.vmem [#allocation35], %s1976
        // Predicated region
        $region189: #{tpu_custom_call.1} parent=103 // pred_check
          %p1978 = pneg %p540
        $region190: #{tpu_custom_call.1} parent=103 // pred_check_branch
          %1980 = sbr.rel (%p1978) target = $region192
        $region191: #{tpu_custom_call.1} parent=103 // pred_region
          %s1982 = ssub.s32 128, 128
          %1983 = vsyncadd %s1974, %s1982
          %s1984 = sadd.s32 %s55, %s54
          %s1985 = smul.addr %s1984, 128
          %s1986 = scalar_lea.hbm %s21, %s1985
          %s1988 = sshll.u32 %s1977, 4
          %s1989 = int_to_ptr.vmem [resolvable:$true] %s1988
          %1991 = dma.vmem_to_hbm [thread:$0]  %s1989, 128, %s1986, %s1974
        $region192: #{tpu_custom_call.1} parent=103 // pred_fallthru
          _
      $region104: #{tpu_custom_call.1} parent=5 // pred_fallthru
        _
      %p1992 = scmp.le.s32.totalorder 2, %s45
      // Predicated region
      $region193: #{tpu_custom_call.1} parent=5 // pred_check
        %p1993 = pneg %p1992
      $region194: #{tpu_custom_call.1} parent=5 // pred_check_branch
        %1995 = sbr.rel (%p1993) target = $region196
      $region195: #{tpu_custom_call.1} parent=5 // pred_region
        %s1996 = ssub.s32 %s45, 2
        // Predicated region
        $region197: #{tpu_custom_call.1} parent=195 // pred_check
          %p1997 = pneg %p546
        $region198: #{tpu_custom_call.1} parent=195 // pred_check_branch
          %1999 = sbr.rel (%p1997) target = $region200
        $region199: #{tpu_custom_call.1} parent=195 // pred_region
          %s2000 = sand.u32 %s531, 1
          %s2001 = scalar_lea.sflag [#allocation4], %s2000
          %s2002 = sand.u32 %s531, 1
          %s2003 = smul.addr %s2002, 8
          %s2004 = scalar_lea.vmem [#allocation35], %s2003
          %2005 = dma.done %s2001, 128
        $region200: #{tpu_custom_call.1} parent=195 // pred_fallthru
          _
      $region196: #{tpu_custom_call.1} parent=5 // pred_fallthru
        _
    $region6: #{tpu_custom_call.1} parent=1 // loop_footer
      %s49 = sadd.s32 1, %s45
    $region7: #{tpu_custom_call.1} parent=1 // loop_footer_branch
      %44 = sbr.rel target = $region3
    $region8: #{tpu_custom_call.1} parent=1 // loop_exit
      _
    %2006 = vsyncpa [#allocation3], 1
    %s2007 = scalar_lea.sflag [#allocation3], 1
    %2008 = vsyncpa %s2007, 1
    %2009 = vsyncpa [#allocation6], 1
    %s2010 = scalar_lea.sflag [#allocation6], 1
    %2011 = vsyncpa %s2010, 1
    %2012 = vsyncpa [#allocation9], 1
    %2013 = vsyncpa [#allocation12], 1
    %2014 = vsyncpa [#allocation15], 1
    %2015 = vsyncpa [#allocation18], 1
    %2016 = vsyncpa [#allocation21], 1
    %2017 = vsyncpa [#allocation24], 1
    %2018 = vsyncpa [#allocation27], 1
    %2019 = vsyncpa [#allocation30], 1
    %2020 = vsyncpa [#allocation33], 1
    %2021 = vsyncpa [#allocation4], 1
    %s2022 = scalar_lea.sflag [#allocation4], 1
    %2023 = vsyncpa %s2022, 1

</llo_original>
